<compile_context>
chip_gen: v6e
topology: v6e:2x2x1
jax: 0.10.0
libtpu: 0.0.40
codegen_flags: <defaults>
</compile_context>

<pallas_src>
import functools

import jax
import jax.numpy as jnp
from jax import lax
from jax.experimental import pallas as pl
from jax.experimental.pallas import tpu as pltpu

EPS = 1e-5
_VMEM_LIMIT = 32 * 1024 * 1024   # safe on v5e/v6e (128 MiB) and v7x (64 MiB)
_TARGET_TM = 1024                # rows per M-tile (sweep 512/1024 at real sizes)


def _compiler_params(semantics):
    return pltpu.CompilerParams(dimension_semantics=semantics,
                                vmem_limit_bytes=_VMEM_LIMIT)


def _pick_tile(m, target=_TARGET_TM):
    """Largest divisor of m that is <= target and a multiple of 8 (else m)."""
    if m <= target:
        return m
    for cand in range(target, 7, -1):
        if cand % 8 == 0 and m % cand == 0:
            return cand
    return m  # fallback: a single full-extent block is always legal


# --------------------------- stage 1: fused 1x1 convs -----------------------
# main 1x1/s2 conv and downsample 1x1/s2 conv share the input tile; raw outputs
# plus per-channel sum / sumsq accumulators (two-pass BN, pass 1).

def _stage1_kernel(x_ref, w1_ref, b1_ref, wd_ref, bd_ref,
                   y0_ref, yd_ref, s0_ref, q0_ref, sd_ref, qd_ref):
    x = x_ref[...].astype(jnp.bfloat16)
    y0 = jnp.dot(x, w1_ref[...], preferred_element_type=jnp.float32) + b1_ref[...]
    yd = jnp.dot(x, wd_ref[...], preferred_element_type=jnp.float32) + bd_ref[...]
    y0_ref[...] = y0
    yd_ref[...] = yd

    ps0 = jnp.sum(y0, axis=0, keepdims=True)
    pq0 = jnp.sum(y0 * y0, axis=0, keepdims=True)
    psd = jnp.sum(yd, axis=0, keepdims=True)
    pqd = jnp.sum(yd * yd, axis=0, keepdims=True)

    @pl.when(pl.program_id(0) == 0)
    def _init():
        s0_ref[...] = ps0
        q0_ref[...] = pq0
        sd_ref[...] = psd
        qd_ref[...] = pqd

    @pl.when(pl.program_id(0) > 0)
    def _acc():
        s0_ref[...] += ps0
        q0_ref[...] += pq0
        sd_ref[...] += psd
        qd_ref[...] += pqd


def _stage1(xs2d, w1, b1, wd, bd, tm):
    m, c = xs2d.shape
    f0 = w1.shape[1]
    f2 = wd.shape[1]
    out_shape = (
        jax.ShapeDtypeStruct((m, f0), jnp.float32),
        jax.ShapeDtypeStruct((m, f2), jnp.float32),
        jax.ShapeDtypeStruct((1, f0), jnp.float32),
        jax.ShapeDtypeStruct((1, f0), jnp.float32),
        jax.ShapeDtypeStruct((1, f2), jnp.float32),
        jax.ShapeDtypeStruct((1, f2), jnp.float32),
    )
    in_specs = [
        pl.BlockSpec((tm, c), lambda i: (i, 0)),
        pl.BlockSpec((c, f0), lambda i: (0, 0)),
        pl.BlockSpec((1, f0), lambda i: (0, 0)),
        pl.BlockSpec((c, f2), lambda i: (0, 0)),
        pl.BlockSpec((1, f2), lambda i: (0, 0)),
    ]
    out_specs = (
        pl.BlockSpec((tm, f0), lambda i: (i, 0)),
        pl.BlockSpec((tm, f2), lambda i: (i, 0)),
        pl.BlockSpec((1, f0), lambda i: (0, 0)),
        pl.BlockSpec((1, f0), lambda i: (0, 0)),
        pl.BlockSpec((1, f2), lambda i: (0, 0)),
        pl.BlockSpec((1, f2), lambda i: (0, 0)),
    )
    cost = pl.CostEstimate(flops=2 * m * c * (f0 + f2) + 6 * m * (f0 + f2),
                           transcendentals=0,
                           bytes_accessed=4 * m * (c + f0 + f2))
    return pl.pallas_call(
        _stage1_kernel,
        grid=(m // tm,), in_specs=in_specs, out_specs=out_specs,
        out_shape=out_shape, cost_estimate=cost,
        compiler_params=_compiler_params(("arbitrary",)),
    )(xs2d, w1, b1, wd, bd)


# ------------------- stage 2: BN1+ReLU fused into 3x3 conv ------------------
# Per batch image: normalize the raw 1x1 output in-register, zero-pad it into a
# VMEM scratch, run 9 shifted matmuls (no HBM im2col), accumulate BN2 stats.

def _conv3x3_kernel(y0_ref, s0_ref, q0_ref, g1_ref, be1_ref, w2_ref, b2_ref,
                    y1_ref, s1_ref, q1_ref, pad_ref, *, inv_m, ho, wo):
    f0 = y0_ref.shape[-1]
    f1 = w2_ref.shape[-1]

    mean = s0_ref[...] * inv_m
    var = q0_ref[...] * inv_m - mean * mean
    scale = lax.rsqrt(var + EPS) * g1_ref[...]
    shift = be1_ref[...] - mean * scale
    y0n = jnp.maximum(y0_ref[0] * scale + shift, 0.0)        # (ho*wo, f0) f32

    pad_ref[...] = jnp.zeros_like(pad_ref)
    pad_ref[1:ho + 1, 1:wo + 1, :] = y0n.reshape(ho, wo, f0)

    acc = jnp.zeros((ho * wo, f1), jnp.float32)
    for k in range(9):
        dy, dx = k // 3, k % 3
        win = pad_ref[dy:dy + ho, dx:dx + wo, :].reshape(ho * wo, f0)
        acc = acc + jnp.dot(win.astype(jnp.bfloat16), w2_ref[k],
                            preferred_element_type=jnp.float32)
    y1 = acc + b2_ref[...]
    y1_ref[0] = y1

    ps = jnp.sum(y1, axis=0, keepdims=True)
    pq = jnp.sum(y1 * y1, axis=0, keepdims=True)

    @pl.when(pl.program_id(0) == 0)
    def _init():
        s1_ref[...] = ps
        q1_ref[...] = pq

    @pl.when(pl.program_id(0) > 0)
    def _acc():
        s1_ref[...] += ps
        q1_ref[...] += pq


def _conv3x3(y0_raw3d, s0, q0, g1, be1, w2, b2, ho, wo, inv_m):
    n, hw, f0 = y0_raw3d.shape
    f1 = w2.shape[-1]
    m = n * hw
    out_shape = (
        jax.ShapeDtypeStruct((n, hw, f1), jnp.float32),
        jax.ShapeDtypeStruct((1, f1), jnp.float32),
        jax.ShapeDtypeStruct((1, f1), jnp.float32),
    )
    in_specs = [
        pl.BlockSpec((1, hw, f0), lambda i: (i, 0, 0)),
        pl.BlockSpec((1, f0), lambda i: (0, 0)),
        pl.BlockSpec((1, f0), lambda i: (0, 0)),
        pl.BlockSpec((1, f0), lambda i: (0, 0)),
        pl.BlockSpec((1, f0), lambda i: (0, 0)),
        pl.BlockSpec((9, f0, f1), lambda i: (0, 0, 0)),
        pl.BlockSpec((1, f1), lambda i: (0, 0)),
    ]
    out_specs = (
        pl.BlockSpec((1, hw, f1), lambda i: (i, 0, 0)),
        pl.BlockSpec((1, f1), lambda i: (0, 0)),
        pl.BlockSpec((1, f1), lambda i: (0, 0)),
    )
    cost = pl.CostEstimate(flops=2 * m * 9 * f0 * f1 + 8 * m * f0,
                           transcendentals=0,
                           bytes_accessed=4 * m * (f0 + f1))
    return pl.pallas_call(
        functools.partial(_conv3x3_kernel, inv_m=inv_m, ho=ho, wo=wo),
        grid=(n,), in_specs=in_specs, out_specs=out_specs,
        out_shape=out_shape, cost_estimate=cost,
        scratch_shapes=[pltpu.VMEM((ho + 2, wo + 2, f0), jnp.float32)],
        compiler_params=_compiler_params(("arbitrary",)),
    )(y0_raw3d, s0, q0, g1, be1, w2, b2)


# ----------------- stage 3: BN2+ReLU fused into the last 1x1 ----------------

def _stage3_kernel(y1_ref, s1_ref, q1_ref, g2_ref, be2_ref, w3_ref, b3_ref,
                   y3_ref, s3_ref, q3_ref, *, inv_m):
    mean = s1_ref[...] * inv_m
    var = q1_ref[...] * inv_m - mean * mean
    scale = lax.rsqrt(var + EPS) * g2_ref[...]
    shift = be2_ref[...] - mean * scale
    y1n = jnp.maximum(y1_ref[...] * scale + shift, 0.0).astype(jnp.bfloat16)
    y3 = jnp.dot(y1n, w3_ref[...], preferred_element_type=jnp.float32) + b3_ref[...]
    y3_ref[...] = y3

    ps = jnp.sum(y3, axis=0, keepdims=True)
    pq = jnp.sum(y3 * y3, axis=0, keepdims=True)

    @pl.when(pl.program_id(0) == 0)
    def _init():
        s3_ref[...] = ps
        q3_ref[...] = pq

    @pl.when(pl.program_id(0) > 0)
    def _acc():
        s3_ref[...] += ps
        q3_ref[...] += pq


def _stage3(y1_2d, s1, q1, g2, be2, w3, b3, tm, inv_m):
    m, f1 = y1_2d.shape
    f2 = w3.shape[1]
    out_shape = (
        jax.ShapeDtypeStruct((m, f2), jnp.float32),
        jax.ShapeDtypeStruct((1, f2), jnp.float32),
        jax.ShapeDtypeStruct((1, f2), jnp.float32),
    )
    in_specs = [
        pl.BlockSpec((tm, f1), lambda i: (i, 0)),
        pl.BlockSpec((1, f1), lambda i: (0, 0)),
        pl.BlockSpec((1, f1), lambda i: (0, 0)),
        pl.BlockSpec((1, f1), lambda i: (0, 0)),
        pl.BlockSpec((1, f1), lambda i: (0, 0)),
        pl.BlockSpec((f1, f2), lambda i: (0, 0)),
        pl.BlockSpec((1, f2), lambda i: (0, 0)),
    ]
    out_specs = (
        pl.BlockSpec((tm, f2), lambda i: (i, 0)),
        pl.BlockSpec((1, f2), lambda i: (0, 0)),
        pl.BlockSpec((1, f2), lambda i: (0, 0)),
    )
    cost = pl.CostEstimate(flops=2 * m * f1 * f2 + 8 * m * f1,
                           transcendentals=0,
                           bytes_accessed=4 * m * (f1 + f2))
    return pl.pallas_call(
        functools.partial(_stage3_kernel, inv_m=inv_m),
        grid=(m // tm,), in_specs=in_specs, out_specs=out_specs,
        out_shape=out_shape, cost_estimate=cost,
        compiler_params=_compiler_params(("arbitrary",)),
    )(y1_2d, s1, q1, g2, be2, w3, b3)


# -------------- stage 4: BN3 + BN_down + residual add + ReLU ----------------

def _final_kernel(y3_ref, s3_ref, q3_ref, g3_ref, be3_ref,
                  yd_ref, sd_ref, qd_ref, gd_ref, bed_ref, o_ref, *, inv_m):
    def _norm(y, s, q, g, be):
        mean = s * inv_m
        var = q * inv_m - mean * mean
        scale = lax.rsqrt(var + EPS) * g
        return y * scale + (be - mean * scale)

    y3n = _norm(y3_ref[...], s3_ref[...], q3_ref[...], g3_ref[...], be3_ref[...])
    ydn = _norm(yd_ref[...], sd_ref[...], qd_ref[...], gd_ref[...], bed_ref[...])
    o_ref[...] = jnp.maximum(y3n + ydn, 0.0)


def _final(y3_2d, s3, q3, g3, be3, yd_2d, sd, qd, gd, bed, tm, inv_m):
    m, f2 = y3_2d.shape
    in_specs = [
        pl.BlockSpec((tm, f2), lambda i: (i, 0)),
        pl.BlockSpec((1, f2), lambda i: (0, 0)),
        pl.BlockSpec((1, f2), lambda i: (0, 0)),
        pl.BlockSpec((1, f2), lambda i: (0, 0)),
        pl.BlockSpec((1, f2), lambda i: (0, 0)),
        pl.BlockSpec((tm, f2), lambda i: (i, 0)),
        pl.BlockSpec((1, f2), lambda i: (0, 0)),
        pl.BlockSpec((1, f2), lambda i: (0, 0)),
        pl.BlockSpec((1, f2), lambda i: (0, 0)),
        pl.BlockSpec((1, f2), lambda i: (0, 0)),
    ]
    cost = pl.CostEstimate(flops=14 * m * f2, transcendentals=0,
                           bytes_accessed=4 * m * 3 * f2)
    return pl.pallas_call(
        functools.partial(_final_kernel, inv_m=inv_m),
        grid=(m // tm,), in_specs=in_specs,
        out_specs=pl.BlockSpec((tm, f2), lambda i: (i, 0)),
        out_shape=jax.ShapeDtypeStruct((m, f2), jnp.float32),
        cost_estimate=cost,
        compiler_params=_compiler_params(("parallel",)),
    )(y3_2d, s3, q3, g3, be3, yd_2d, sd, qd, gd, bed)


# --------------------------------- forward ----------------------------------

def conv_block_forward(x_nchw, p):
    n, c, h, w = x_nchw.shape
    f0 = p["w1"].shape[1]
    f1 = p["w2"].shape[-1]
    f2 = p["w3"].shape[1]

    x = jnp.transpose(x_nchw, (0, 2, 3, 1))                   # NHWC
    # TODO(synk): fold this stride-2 subsample into stage 1's index_map/strided
    # DMA instead of an XLA slice (one extra pass over the input today).
    xs = x[:, ::2, ::2, :]
    ho, wo = xs.shape[1], xs.shape[2]
    m = n * ho * wo
    inv_m = 1.0 / m
    tm = _pick_tile(m)

    xs2d = xs.reshape(m, c)
    row = lambda v: v.reshape(1, -1).astype(jnp.float32)
    bf = lambda v: v.astype(jnp.bfloat16)

    # stage 1: fused 1x1/s2 main conv + 1x1/s2 downsample conv (BN stats pass)
    y0_raw, yd_raw, s0, q0, sd, qd = _stage1(
        xs2d, bf(p["w1"]), row(p["b1"]), bf(p["wd"]), row(p["bd"]), tm)

    # stage 2: BN1+ReLU fused into the 3x3 conv (9 shifted matmuls, no im2col)
    w2 = bf(p["w2"]).reshape(9, f0, f1)
    y1_raw, s1, q1 = _conv3x3(
        y0_raw.reshape(n, ho * wo, f0), s0, q0, row(p["g1"]), row(p["be1"]),
        w2, row(p["b2"]), ho, wo, inv_m)

    # stage 3: BN2+ReLU fused into the last 1x1 conv (BN stats pass)
    y3_raw, s3, q3 = _stage3(
        y1_raw.reshape(m, f1), s1, q1, row(p["g2"]), row(p["be2"]),
        bf(p["w3"]), row(p["b3"]), tm, inv_m)

    # stage 4: BN3 + BN_down + residual add + ReLU
    out2d = _final(y3_raw, s3, q3, row(p["g3"]), row(p["be3"]),
                   yd_raw, sd, qd, row(p["gd"]), row(p["bed"]), tm, inv_m)

    return jnp.transpose(out2d.reshape(n, ho, wo, f2), (0, 3, 1, 2))  # NCHW


# --------------------------- pure-JAX references -----------------------------

def _ref_conv(x, w_hwio, b, stride, pad, bf16_matmul):
    if bf16_matmul:
        x = x.astype(jnp.bfloat16)
        w_hwio = w_hwio.astype(jnp.bfloat16)
    y = lax.conv_general_dilated(
        x, w_hwio, (stride, stride), [(pad, pad), (pad, pad)],
        dimension_numbers=("NHWC", "HWIO", "NHWC"),
        preferred_element_type=jnp.float32)
    return y + b.reshape(1, 1, 1, -1)


def _ref_bn(y, g, b):
    mean = jnp.mean(y, axis=(0, 1, 2), keepdims=True)
    var = jnp.mean((y - mean) ** 2, axis=(0, 1, 2), keepdims=True)
    return (y - mean) * lax.rsqrt(var + EPS) * g.reshape(1, 1, 1, -1) \
        + b.reshape(1, 1, 1, -1)


def conv_block_reference(x_nchw, p, bf16_matmul):
    x = jnp.transpose(x_nchw, (0, 2, 3, 1))
    y = _ref_bn(_ref_conv(x, p["w1"][None, None], p["b1"], 2, 0, bf16_matmul),
                p["g1"], p["be1"])
    y = jnp.maximum(y, 0.0)
    y = _ref_bn(_ref_conv(y, p["w2"], p["b2"], 1, 1, bf16_matmul),
                p["g2"], p["be2"])
    y = jnp.maximum(y, 0.0)
    y = _ref_bn(_ref_conv(y, p["w3"][None, None], p["b3"], 1, 0, bf16_matmul),
                p["g3"], p["be3"])
    d = _ref_bn(_ref_conv(x, p["wd"][None, None], p["bd"], 2, 0, bf16_matmul),
                p["gd"], p["bed"])
    return jnp.transpose(jnp.maximum(y + d, 0.0), (0, 3, 1, 2))


# ----------------------------------- main ------------------------------------

if __name__ == "__main__":
    channels = 4
    filters = (8, 8, 16)
    N, H, W = 2, 16, 16

    ks = jax.random.split(jax.random.PRNGKey(0), 17)
    p = {
        "w1": 0.1 * jax.random.normal(ks[0], (channels, filters[0]), jnp.float32),
        "b1": 0.1 * jax.random.normal(ks[1], (filters[0],), jnp.float32),
        "g1": 1.0 + 0.1 * jax.random.normal(ks[2], (filters[0],), jnp.float32),
        "be1": 0.1 * jax.random.normal(ks[3], (filters[0],), jnp.float32),
        "w2": 0.1 * jax.random.normal(ks[4], (3, 3, filters[0], filters[1]), jnp.float32),
        "b2": 0.1 * jax.random.normal(ks[5], (filters[1],), jnp.float32),
        "g2": 1.0 + 0.1 * jax.random.normal(ks[6], (filters[1],), jnp.float32),
        "be2": 0.1 * jax.random.normal(ks[7], (filters[1],), jnp.float32),
        "w3": 0.1 * jax.random.normal(ks[8], (filters[1], filters[2]), jnp.float32),
        "b3": 0.1 * jax.random.normal(ks[9], (filters[2],), jnp.float32),
        "g3": 1.0 + 0.1 * jax.random.normal(ks[10], (filters[2],), jnp.float32),
        "be3": 0.1 * jax.random.normal(ks[11], (filters[2],), jnp.float32),
        "wd": 0.1 * jax.random.normal(ks[12], (channels, filters[2]), jnp.float32),
        "bd": 0.1 * jax.random.normal(ks[13], (filters[2],), jnp.float32),
        "gd": 1.0 + 0.1 * jax.random.normal(ks[14], (filters[2],), jnp.float32),
        "bed": 0.1 * jax.random.normal(ks[15], (filters[2],), jnp.float32),
    }
    x = jax.random.normal(ks[16], (N, channels, H, W), jnp.float32)

    out = jax.block_until_ready(jax.jit(conv_block_forward)(x, p))

    # Tight check: reference with the same matmul precision recipe
    # (bf16 operands, f32 accumulation, f32 BN math) -> validates kernel logic.
    ref_bf16 = jax.block_until_ready(
        jax.jit(functools.partial(conv_block_reference, bf16_matmul=True))(x, p))
    # Loose check: full-f32 reference (PyTorch module semantics); bf16 MXU
    # operands are a deliberate TPU optimization, hence the looser tolerance.
    ref_f32 = jax.block_until_ready(
        jax.jit(functools.partial(conv_block_reference, bf16_matmul=False))(x, p))

    assert out.shape == (N, filters[2], H // 2, W // 2), out.shape
    err_tight = float(jnp.max(jnp.abs(out - ref_bf16)))
    err_loose = float(jnp.max(jnp.abs(out - ref_f32)))
    assert jnp.allclose(out, ref_bf16, atol=5e-3, rtol=5e-3), err_tight
    assert jnp.allclose(out, ref_f32, atol=1e-1, rtol=1e-1), err_loose
    print("KERNEL_OK")
</pallas_src>

<mosaic_0001>
module attributes {stable_mosaic.version = 11 : i64} {
  func.func @_stage1_kernel(%arg0: i32, %arg1: memref<128x4xf32, #tpu.memory_space<vmem>>, %arg2: memref<4x8xbf16, #tpu.memory_space<vmem>>, %arg3: memref<1x8xf32, #tpu.memory_space<vmem>>, %arg4: memref<4x16xbf16, #tpu.memory_space<vmem>>, %arg5: memref<1x16xf32, #tpu.memory_space<vmem>>, %arg6: memref<128x8xf32, #tpu.memory_space<vmem>>, %arg7: memref<128x16xf32, #tpu.memory_space<vmem>>, %arg8: memref<1x8xf32, #tpu.memory_space<vmem>>, %arg9: memref<1x8xf32, #tpu.memory_space<vmem>>, %arg10: memref<1x16xf32, #tpu.memory_space<vmem>>, %arg11: memref<1x16xf32, #tpu.memory_space<vmem>>) attributes {dimension_semantics = [#tpu.dimension_semantics<arbitrary>], iteration_bounds = array<i64: 1>, scalar_prefetch = 0 : i64, scratch_operands = 0 : i64, tpu.core_type = #tpu.core_type<tc>, window_params = [{transform_indices = @transform_0, window_bounds = array<i64: 128, 4>}, {pipeline_mode = #tpu.pipeline_mode<synchronous>, transform_indices = @transform_1, window_bounds = array<i64: 4, 8>}, {pipeline_mode = #tpu.pipeline_mode<synchronous>, transform_indices = @transform_2, window_bounds = array<i64: 1, 8>}, {pipeline_mode = #tpu.pipeline_mode<synchronous>, transform_indices = @transform_3, window_bounds = array<i64: 4, 16>}, {pipeline_mode = #tpu.pipeline_mode<synchronous>, transform_indices = @transform_4, window_bounds = array<i64: 1, 16>}, {transform_indices = @transform_5, window_bounds = array<i64: 128, 8>}, {transform_indices = @transform_6, window_bounds = array<i64: 128, 16>}, {pipeline_mode = #tpu.pipeline_mode<synchronous>, transform_indices = @transform_7, window_bounds = array<i64: 1, 8>}, {pipeline_mode = #tpu.pipeline_mode<synchronous>, transform_indices = @transform_8, window_bounds = array<i64: 1, 8>}, {pipeline_mode = #tpu.pipeline_mode<synchronous>, transform_indices = @transform_9, window_bounds = array<i64: 1, 16>}, {pipeline_mode = #tpu.pipeline_mode<synchronous>, transform_indices = @transform_10, window_bounds = array<i64: 1, 16>}]} {
    %c0 = arith.constant 0 : index
    %c0_0 = arith.constant 0 : index
    %0 = vector.load %arg1[%c0, %c0_0] : memref<128x4xf32, #tpu.memory_space<vmem>>, vector<128x4xf32>
    %1 = arith.truncf %0 : vector<128x4xf32> to vector<128x4xbf16>
    %c0_1 = arith.constant 0 : index
    %c0_2 = arith.constant 0 : index
    %2 = vector.load %arg2[%c0_1, %c0_2] : memref<4x8xbf16, #tpu.memory_space<vmem>>, vector<4x8xbf16>
    %cst = arith.constant dense<0.000000e+00> : vector<128x8xf32>
    %3 = tpu.matmul %1, %2, %cst {dimension_numbers = #tpu.dot_dimension_numbers<[1], [0], [0], [1], [0, 0, 1, 1], [], []>} : vector<128x4xbf16>, vector<4x8xbf16>, vector<128x8xf32> -> vector<128x8xf32>
    %c0_3 = arith.constant 0 : index
    %c0_4 = arith.constant 0 : index
    %4 = vector.load %arg3[%c0_3, %c0_4] : memref<1x8xf32, #tpu.memory_space<vmem>>, vector<1x8xf32>
    %5 = vector.broadcast %4 : vector<1x8xf32> to vector<128x8xf32>
    %6 = arith.addf %3, %5 : vector<128x8xf32>
    %c0_5 = arith.constant 0 : index
    %c0_6 = arith.constant 0 : index
    %7 = vector.load %arg4[%c0_5, %c0_6] : memref<4x16xbf16, #tpu.memory_space<vmem>>, vector<4x16xbf16>
    %cst_7 = arith.constant dense<0.000000e+00> : vector<128x16xf32>
    %8 = tpu.matmul %1, %7, %cst_7 {dimension_numbers = #tpu.dot_dimension_numbers<[1], [0], [0], [1], [0, 0, 1, 1], [], []>} : vector<128x4xbf16>, vector<4x16xbf16>, vector<128x16xf32> -> vector<128x16xf32>
    %c0_8 = arith.constant 0 : index
    %c0_9 = arith.constant 0 : index
    %9 = vector.load %arg5[%c0_8, %c0_9] : memref<1x16xf32, #tpu.memory_space<vmem>>, vector<1x16xf32>
    %10 = vector.broadcast %9 : vector<1x16xf32> to vector<128x16xf32>
    %11 = arith.addf %8, %10 : vector<128x16xf32>
    %c0_10 = arith.constant 0 : index
    %c0_11 = arith.constant 0 : index
    %12 = vector.load %arg6[%c0_10, %c0_11] : memref<128x8xf32, #tpu.memory_space<vmem>>, vector<128x8xf32>
    tpu.vector_store %arg6[%c0_10, %c0_11], %6 {strides = array<i32>} : memref<128x8xf32, #tpu.memory_space<vmem>>, vector<128x8xf32>,
    %c0_12 = arith.constant 0 : index
    %c0_13 = arith.constant 0 : index
    %13 = vector.load %arg7[%c0_12, %c0_13] : memref<128x16xf32, #tpu.memory_space<vmem>>, vector<128x16xf32>
    tpu.vector_store %arg7[%c0_12, %c0_13], %11 {strides = array<i32>} : memref<128x16xf32, #tpu.memory_space<vmem>>, vector<128x16xf32>,
    %cst_14 = arith.constant dense<0.000000e+00> : vector<8xf32>
    %14 = vector.multi_reduction <add>, %6, %cst_14 [0] : vector<128x8xf32> to vector<8xf32>
    %15 = vector.shape_cast %14 : vector<8xf32> to vector<1x8xf32>
    %16 = arith.mulf %6, %6 : vector<128x8xf32>
    %cst_15 = arith.constant dense<0.000000e+00> : vector<8xf32>
    %17 = vector.multi_reduction <add>, %16, %cst_15 [0] : vector<128x8xf32> to vector<8xf32>
    %18 = vector.shape_cast %17 : vector<8xf32> to vector<1x8xf32>
    %cst_16 = arith.constant dense<0.000000e+00> : vector<16xf32>
    %19 = vector.multi_reduction <add>, %11, %cst_16 [0] : vector<128x16xf32> to vector<16xf32>
    %20 = vector.shape_cast %19 : vector<16xf32> to vector<1x16xf32>
    %21 = arith.mulf %11, %11 : vector<128x16xf32>
    %cst_17 = arith.constant dense<0.000000e+00> : vector<16xf32>
    %22 = vector.multi_reduction <add>, %21, %cst_17 [0] : vector<128x16xf32> to vector<16xf32>
    %23 = vector.shape_cast %22 : vector<16xf32> to vector<1x16xf32>
    %c0_i32 = arith.constant 0 : i32
    %24 = arith.cmpi eq, %arg0, %c0_i32 : i32
    %25 = arith.extui %24 : i1 to i32
    %c0_i32_18 = arith.constant 0 : i32
    %26 = arith.cmpi ne, %25, %c0_i32_18 : i32
    scf.if %26 {
      %c0_21 = arith.constant 0 : index
      %c0_22 = arith.constant 0 : index
      %30 = vector.load %arg8[%c0_21, %c0_22] : memref<1x8xf32, #tpu.memory_space<vmem>>, vector<1x8xf32>
      tpu.vector_store %arg8[%c0_21, %c0_22], %15 {strides = array<i32>} : memref<1x8xf32, #tpu.memory_space<vmem>>, vector<1x8xf32>,
      %c0_23 = arith.constant 0 : index
      %c0_24 = arith.constant 0 : index
      %31 = vector.load %arg9[%c0_23, %c0_24] : memref<1x8xf32, #tpu.memory_space<vmem>>, vector<1x8xf32>
      tpu.vector_store %arg9[%c0_23, %c0_24], %18 {strides = array<i32>} : memref<1x8xf32, #tpu.memory_space<vmem>>, vector<1x8xf32>,
      %c0_25 = arith.constant 0 : index
      %c0_26 = arith.constant 0 : index
      %32 = vector.load %arg10[%c0_25, %c0_26] : memref<1x16xf32, #tpu.memory_space<vmem>>, vector<1x16xf32>
      tpu.vector_store %arg10[%c0_25, %c0_26], %20 {strides = array<i32>} : memref<1x16xf32, #tpu.memory_space<vmem>>, vector<1x16xf32>,
      %c0_27 = arith.constant 0 : index
      %c0_28 = arith.constant 0 : index
      %33 = vector.load %arg11[%c0_27, %c0_28] : memref<1x16xf32, #tpu.memory_space<vmem>>, vector<1x16xf32>
      tpu.vector_store %arg11[%c0_27, %c0_28], %23 {strides = array<i32>} : memref<1x16xf32, #tpu.memory_space<vmem>>, vector<1x16xf32>,
    } else {
    }
    %c0_i32_19 = arith.constant 0 : i32
    %27 = arith.cmpi sgt, %arg0, %c0_i32_19 : i32
    %28 = arith.extui %27 : i1 to i32
    %c0_i32_20 = arith.constant 0 : i32
    %29 = arith.cmpi ne, %28, %c0_i32_20 : i32
    scf.if %29 {
      %c0_21 = arith.constant 0 : index
      %c0_22 = arith.constant 0 : index
      %30 = vector.load %arg8[%c0_21, %c0_22] : memref<1x8xf32, #tpu.memory_space<vmem>>, vector<1x8xf32>
      %31 = arith.addf %30, %15 : vector<1x8xf32>
      %c0_23 = arith.constant 0 : index
      %c0_24 = arith.constant 0 : index
      %32 = vector.load %arg8[%c0_23, %c0_24] : memref<1x8xf32, #tpu.memory_space<vmem>>, vector<1x8xf32>
      tpu.vector_store %arg8[%c0_23, %c0_24], %31 {strides = array<i32>} : memref<1x8xf32, #tpu.memory_space<vmem>>, vector<1x8xf32>,
      %c0_25 = arith.constant 0 : index
      %c0_26 = arith.constant 0 : index
      %33 = vector.load %arg9[%c0_25, %c0_26] : memref<1x8xf32, #tpu.memory_space<vmem>>, vector<1x8xf32>
      %34 = arith.addf %33, %18 : vector<1x8xf32>
      %c0_27 = arith.constant 0 : index
      %c0_28 = arith.constant 0 : index
      %35 = vector.load %arg9[%c0_27, %c0_28] : memref<1x8xf32, #tpu.memory_space<vmem>>, vector<1x8xf32>
      tpu.vector_store %arg9[%c0_27, %c0_28], %34 {strides = array<i32>} : memref<1x8xf32, #tpu.memory_space<vmem>>, vector<1x8xf32>,
      %c0_29 = arith.constant 0 : index
      %c0_30 = arith.constant 0 : index
      %36 = vector.load %arg10[%c0_29, %c0_30] : memref<1x16xf32, #tpu.memory_space<vmem>>, vector<1x16xf32>
      %37 = arith.addf %36, %20 : vector<1x16xf32>
      %c0_31 = arith.constant 0 : index
      %c0_32 = arith.constant 0 : index
      %38 = vector.load %arg10[%c0_31, %c0_32] : memref<1x16xf32, #tpu.memory_space<vmem>>, vector<1x16xf32>
      tpu.vector_store %arg10[%c0_31, %c0_32], %37 {strides = array<i32>} : memref<1x16xf32, #tpu.memory_space<vmem>>, vector<1x16xf32>,
      %c0_33 = arith.constant 0 : index
      %c0_34 = arith.constant 0 : index
      %39 = vector.load %arg11[%c0_33, %c0_34] : memref<1x16xf32, #tpu.memory_space<vmem>>, vector<1x16xf32>
      %40 = arith.addf %39, %23 : vector<1x16xf32>
      %c0_35 = arith.constant 0 : index
      %c0_36 = arith.constant 0 : index
      %41 = vector.load %arg11[%c0_35, %c0_36] : memref<1x16xf32, #tpu.memory_space<vmem>>, vector<1x16xf32>
      tpu.vector_store %arg11[%c0_35, %c0_36], %40 {strides = array<i32>} : memref<1x16xf32, #tpu.memory_space<vmem>>, vector<1x16xf32>,
    } else {
    }
    return
  }
  func.func @transform_0(%arg0: i32) -> (i32, i32) {
    %c0_i32 = arith.constant 0 : i32
    %c0_i32_0 = arith.constant 0 : i32
    return %arg0, %c0_i32 : i32, i32
  }
  func.func @transform_1(%arg0: i32) -> (i32, i32) {
    %c0_i32 = arith.constant 0 : i32
    %c0_i32_0 = arith.constant 0 : i32
    %c0_i32_1 = arith.constant 0 : i32
    return %c0_i32, %c0_i32_0 : i32, i32
  }
  func.func @transform_2(%arg0: i32) -> (i32, i32) {
    %c0_i32 = arith.constant 0 : i32
    %c0_i32_0 = arith.constant 0 : i32
    %c0_i32_1 = arith.constant 0 : i32
    return %c0_i32, %c0_i32_0 : i32, i32
  }
  func.func @transform_3(%arg0: i32) -> (i32, i32) {
    %c0_i32 = arith.constant 0 : i32
    %c0_i32_0 = arith.constant 0 : i32
    %c0_i32_1 = arith.constant 0 : i32
    return %c0_i32, %c0_i32_0 : i32, i32
  }
  func.func @transform_4(%arg0: i32) -> (i32, i32) {
    %c0_i32 = arith.constant 0 : i32
    %c0_i32_0 = arith.constant 0 : i32
    %c0_i32_1 = arith.constant 0 : i32
    return %c0_i32, %c0_i32_0 : i32, i32
  }
  func.func @transform_5(%arg0: i32) -> (i32, i32) {
    %c0_i32 = arith.constant 0 : i32
    %c0_i32_0 = arith.constant 0 : i32
    return %arg0, %c0_i32 : i32, i32
  }
  func.func @transform_6(%arg0: i32) -> (i32, i32) {
    %c0_i32 = arith.constant 0 : i32
    %c0_i32_0 = arith.constant 0 : i32
    return %arg0, %c0_i32 : i32, i32
  }
  func.func @transform_7(%arg0: i32) -> (i32, i32) {
    %c0_i32 = arith.constant 0 : i32
    %c0_i32_0 = arith.constant 0 : i32
    %c0_i32_1 = arith.constant 0 : i32
    return %c0_i32, %c0_i32_0 : i32, i32
  }
  func.func @transform_8(%arg0: i32) -> (i32, i32) {
    %c0_i32 = arith.constant 0 : i32
    %c0_i32_0 = arith.constant 0 : i32
    %c0_i32_1 = arith.constant 0 : i32
    return %c0_i32, %c0_i32_0 : i32, i32
  }
  func.func @transform_9(%arg0: i32) -> (i32, i32) {
    %c0_i32 = arith.constant 0 : i32
    %c0_i32_0 = arith.constant 0 : i32
    %c0_i32_1 = arith.constant 0 : i32
    return %c0_i32, %c0_i32_0 : i32, i32
  }
  func.func @transform_10(%arg0: i32) -> (i32, i32) {
    %c0_i32 = arith.constant 0 : i32
    %c0_i32_0 = arith.constant 0 : i32
    %c0_i32_1 = arith.constant 0 : i32
    return %c0_i32, %c0_i32_0 : i32, i32
  }
}

module attributes {stable_mosaic.version = 11 : i64} {
  func.func @_conv3x3_kernel(%arg0: i32, %arg1: memref<1x64x8xf32, #tpu.memory_space<vmem>>, %arg2: memref<1x8xf32, #tpu.memory_space<vmem>>, %arg3: memref<1x8xf32, #tpu.memory_space<vmem>>, %arg4: memref<1x8xf32, #tpu.memory_space<vmem>>, %arg5: memref<1x8xf32, #tpu.memory_space<vmem>>, %arg6: memref<9x8x8xbf16, #tpu.memory_space<vmem>>, %arg7: memref<1x8xf32, #tpu.memory_space<vmem>>, %arg8: memref<1x64x8xf32, #tpu.memory_space<vmem>>, %arg9: memref<1x8xf32, #tpu.memory_space<vmem>>, %arg10: memref<1x8xf32, #tpu.memory_space<vmem>>, %arg11: memref<10x10x8xf32, #tpu.memory_space<vmem>>) attributes {dimension_semantics = [#tpu.dimension_semantics<arbitrary>], iteration_bounds = array<i64: 2>, scalar_prefetch = 0 : i64, scratch_operands = 1 : i64, tpu.core_type = #tpu.core_type<tc>, window_params = [{transform_indices = @transform_0, window_bounds = array<i64: 1, 64, 8>}, {pipeline_mode = #tpu.pipeline_mode<synchronous>, transform_indices = @transform_1, window_bounds = array<i64: 1, 8>}, {pipeline_mode = #tpu.pipeline_mode<synchronous>, transform_indices = @transform_2, window_bounds = array<i64: 1, 8>}, {pipeline_mode = #tpu.pipeline_mode<synchronous>, transform_indices = @transform_3, window_bounds = array<i64: 1, 8>}, {pipeline_mode = #tpu.pipeline_mode<synchronous>, transform_indices = @transform_4, window_bounds = array<i64: 1, 8>}, {pipeline_mode = #tpu.pipeline_mode<synchronous>, transform_indices = @transform_5, window_bounds = array<i64: 9, 8, 8>}, {pipeline_mode = #tpu.pipeline_mode<synchronous>, transform_indices = @transform_6, window_bounds = array<i64: 1, 8>}, {transform_indices = @transform_7, window_bounds = array<i64: 1, 64, 8>}, {pipeline_mode = #tpu.pipeline_mode<synchronous>, transform_indices = @transform_8, window_bounds = array<i64: 1, 8>}, {pipeline_mode = #tpu.pipeline_mode<synchronous>, transform_indices = @transform_9, window_bounds = array<i64: 1, 8>}]} {
    %c0 = arith.constant 0 : index
    %c0_0 = arith.constant 0 : index
    %0 = vector.load %arg2[%c0, %c0_0] : memref<1x8xf32, #tpu.memory_space<vmem>>, vector<1x8xf32>
    %cst = arith.constant 7.812500e-03 : f32
    %1 = vector.broadcast %cst : f32 to vector<1x8xf32>
    %2 = arith.mulf %0, %1 : vector<1x8xf32>
    %c0_1 = arith.constant 0 : index
    %c0_2 = arith.constant 0 : index
    %3 = vector.load %arg3[%c0_1, %c0_2] : memref<1x8xf32, #tpu.memory_space<vmem>>, vector<1x8xf32>
    %cst_3 = arith.constant 7.812500e-03 : f32
    %4 = vector.broadcast %cst_3 : f32 to vector<1x8xf32>
    %5 = arith.mulf %3, %4 : vector<1x8xf32>
    %6 = arith.mulf %2, %2 : vector<1x8xf32>
    %7 = arith.subf %5, %6 : vector<1x8xf32>
    %cst_4 = arith.constant 9.99999974E-6 : f32
    %8 = vector.broadcast %cst_4 : f32 to vector<1x8xf32>
    %9 = arith.addf %7, %8 : vector<1x8xf32>
    %10 = math.rsqrt %9 : vector<1x8xf32>
    %c0_5 = arith.constant 0 : index
    %c0_6 = arith.constant 0 : index
    %11 = vector.load %arg4[%c0_5, %c0_6] : memref<1x8xf32, #tpu.memory_space<vmem>>, vector<1x8xf32>
    %12 = arith.mulf %10, %11 : vector<1x8xf32>
    %c0_7 = arith.constant 0 : index
    %c0_8 = arith.constant 0 : index
    %13 = vector.load %arg5[%c0_7, %c0_8] : memref<1x8xf32, #tpu.memory_space<vmem>>, vector<1x8xf32>
    %14 = arith.mulf %2, %12 : vector<1x8xf32>
    %15 = arith.subf %13, %14 : vector<1x8xf32>
    %c0_9 = arith.constant 0 : index
    %c0_10 = arith.constant 0 : index
    %c0_11 = arith.constant 0 : index
    %16 = vector.load %arg1[%c0_9, %c0_10, %c0_11] : memref<1x64x8xf32, #tpu.memory_space<vmem>>, vector<1x64x8xf32>
    %17 = vector.shape_cast %16 : vector<1x64x8xf32> to vector<64x8xf32>
    %18 = vector.broadcast %12 : vector<1x8xf32> to vector<64x8xf32>
    %19 = arith.mulf %17, %18 : vector<64x8xf32>
    %20 = vector.broadcast %15 : vector<1x8xf32> to vector<64x8xf32>
    %21 = arith.addf %19, %20 : vector<64x8xf32>
    %cst_12 = arith.constant 0.000000e+00 : f32
    %22 = vector.broadcast %cst_12 : f32 to vector<64x8xf32>
    %23 = arith.maximumf %21, %22 : vector<64x8xf32>
    %cst_13 = arith.constant 0.000000e+00 : f32
    %24 = vector.broadcast %cst_13 : f32 to vector<10x10x8xf32>
    %c0_14 = arith.constant 0 : index
    %c0_15 = arith.constant 0 : index
    %c0_16 = arith.constant 0 : index
    %25 = vector.load %arg11[%c0_14, %c0_15, %c0_16] : memref<10x10x8xf32, #tpu.memory_space<vmem>>, vector<10x10x8xf32>
    tpu.vector_store %arg11[%c0_14, %c0_15, %c0_16], %24 {strides = array<i32>} : memref<10x10x8xf32, #tpu.memory_space<vmem>>, vector<10x10x8xf32>,
    %26 = vector.shape_cast %23 : vector<64x8xf32> to vector<8x8x8xf32>
    %c1 = arith.constant 1 : index
    %c1_17 = arith.constant 1 : index
    %c0_18 = arith.constant 0 : index
    %27 = vector.load %arg11[%c1, %c1_17, %c0_18] : memref<10x10x8xf32, #tpu.memory_space<vmem>>, vector<8x8x8xf32>
    tpu.vector_store %arg11[%c1, %c1_17, %c0_18], %26 {strides = array<i32>} : memref<10x10x8xf32, #tpu.memory_space<vmem>>, vector<8x8x8xf32>,
    %cst_19 = arith.constant 0.000000e+00 : f32
    %28 = vector.broadcast %cst_19 : f32 to vector<64x8xf32>
    %c0_20 = arith.constant 0 : index
    %c0_21 = arith.constant 0 : index
    %c0_22 = arith.constant 0 : index
    %29 = vector.load %arg11[%c0_20, %c0_21, %c0_22] : memref<10x10x8xf32, #tpu.memory_space<vmem>>, vector<8x8x8xf32>
    %30 = vector.shape_cast %29 : vector<8x8x8xf32> to vector<64x8xf32>
    %31 = arith.truncf %30 : vector<64x8xf32> to vector<64x8xbf16>
    %c0_23 = arith.constant 0 : index
    %c0_24 = arith.constant 0 : index
    %c0_25 = arith.constant 0 : index
    %32 = vector.load %arg6[%c0_23, %c0_24, %c0_25] : memref<9x8x8xbf16, #tpu.memory_space<vmem>>, vector<1x8x8xbf16>
    %33 = vector.shape_cast %32 : vector<1x8x8xbf16> to vector<8x8xbf16>
    %cst_26 = arith.constant dense<0.000000e+00> : vector<64x8xf32>
    %34 = tpu.matmul %31, %33, %cst_26 {dimension_numbers = #tpu.dot_dimension_numbers<[1], [0], [0], [1], [0, 0, 1, 1], [], []>} : vector<64x8xbf16>, vector<8x8xbf16>, vector<64x8xf32> -> vector<64x8xf32>
    %35 = arith.addf %28, %34 : vector<64x8xf32>
    %c0_27 = arith.constant 0 : index
    %c1_28 = arith.constant 1 : index
    %c0_29 = arith.constant 0 : index
    %36 = vector.load %arg11[%c0_27, %c1_28, %c0_29] : memref<10x10x8xf32, #tpu.memory_space<vmem>>, vector<8x8x8xf32>
    %37 = vector.shape_cast %36 : vector<8x8x8xf32> to vector<64x8xf32>
    %38 = arith.truncf %37 : vector<64x8xf32> to vector<64x8xbf16>
    %c1_30 = arith.constant 1 : index
    %c0_31 = arith.constant 0 : index
    %c0_32 = arith.constant 0 : index
    %39 = vector.load %arg6[%c1_30, %c0_31, %c0_32] : memref<9x8x8xbf16, #tpu.memory_space<vmem>>, vector<1x8x8xbf16>
    %40 = vector.shape_cast %39 : vector<1x8x8xbf16> to vector<8x8xbf16>
    %cst_33 = arith.constant dense<0.000000e+00> : vector<64x8xf32>
    %41 = tpu.matmul %38, %40, %cst_33 {dimension_numbers = #tpu.dot_dimension_numbers<[1], [0], [0], [1], [0, 0, 1, 1], [], []>} : vector<64x8xbf16>, vector<8x8xbf16>, vector<64x8xf32> -> vector<64x8xf32>
    %42 = arith.addf %35, %41 : vector<64x8xf32>
    %c0_34 = arith.constant 0 : index
    %c2 = arith.constant 2 : index
    %c0_35 = arith.constant 0 : index
    %43 = vector.load %arg11[%c0_34, %c2, %c0_35] : memref<10x10x8xf32, #tpu.memory_space<vmem>>, vector<8x8x8xf32>
    %44 = vector.shape_cast %43 : vector<8x8x8xf32> to vector<64x8xf32>
    %45 = arith.truncf %44 : vector<64x8xf32> to vector<64x8xbf16>
    %c2_36 = arith.constant 2 : index
    %c0_37 = arith.constant 0 : index
    %c0_38 = arith.constant 0 : index
    %46 = vector.load %arg6[%c2_36, %c0_37, %c0_38] : memref<9x8x8xbf16, #tpu.memory_space<vmem>>, vector<1x8x8xbf16>
    %47 = vector.shape_cast %46 : vector<1x8x8xbf16> to vector<8x8xbf16>
    %cst_39 = arith.constant dense<0.000000e+00> : vector<64x8xf32>
    %48 = tpu.matmul %45, %47, %cst_39 {dimension_numbers = #tpu.dot_dimension_numbers<[1], [0], [0], [1], [0, 0, 1, 1], [], []>} : vector<64x8xbf16>, vector<8x8xbf16>, vector<64x8xf32> -> vector<64x8xf32>
    %49 = arith.addf %42, %48 : vector<64x8xf32>
    %c1_40 = arith.constant 1 : index
    %c0_41 = arith.constant 0 : index
    %c0_42 = arith.constant 0 : index
    %50 = vector.load %arg11[%c1_40, %c0_41, %c0_42] : memref<10x10x8xf32, #tpu.memory_space<vmem>>, vector<8x8x8xf32>
    %51 = vector.shape_cast %50 : vector<8x8x8xf32> to vector<64x8xf32>
    %52 = arith.truncf %51 : vector<64x8xf32> to vector<64x8xbf16>
    %c3 = arith.constant 3 : index
    %c0_43 = arith.constant 0 : index
    %c0_44 = arith.constant 0 : index
    %53 = vector.load %arg6[%c3, %c0_43, %c0_44] : memref<9x8x8xbf16, #tpu.memory_space<vmem>>, vector<1x8x8xbf16>
    %54 = vector.shape_cast %53 : vector<1x8x8xbf16> to vector<8x8xbf16>
    %cst_45 = arith.constant dense<0.000000e+00> : vector<64x8xf32>
    %55 = tpu.matmul %52, %54, %cst_45 {dimension_numbers = #tpu.dot_dimension_numbers<[1], [0], [0], [1], [0, 0, 1, 1], [], []>} : vector<64x8xbf16>, vector<8x8xbf16>, vector<64x8xf32> -> vector<64x8xf32>
    %56 = arith.addf %49, %55 : vector<64x8xf32>
    %c1_46 = arith.constant 1 : index
    %c1_47 = arith.constant 1 : index
    %c0_48 = arith.constant 0 : index
    %57 = vector.load %arg11[%c1_46, %c1_47, %c0_48] : memref<10x10x8xf32, #tpu.memory_space<vmem>>, vector<8x8x8xf32>
    %58 = vector.shape_cast %57 : vector<8x8x8xf32> to vector<64x8xf32>
    %59 = arith.truncf %58 : vector<64x8xf32> to vector<64x8xbf16>
    %c4 = arith.constant 4 : index
    %c0_49 = arith.constant 0 : index
    %c0_50 = arith.constant 0 : index
    %60 = vector.load %arg6[%c4, %c0_49, %c0_50] : memref<9x8x8xbf16, #tpu.memory_space<vmem>>, vector<1x8x8xbf16>
    %61 = vector.shape_cast %60 : vector<1x8x8xbf16> to vector<8x8xbf16>
    %cst_51 = arith.constant dense<0.000000e+00> : vector<64x8xf32>
    %62 = tpu.matmul %59, %61, %cst_51 {dimension_numbers = #tpu.dot_dimension_numbers<[1], [0], [0], [1], [0, 0, 1, 1], [], []>} : vector<64x8xbf16>, vector<8x8xbf16>, vector<64x8xf32> -> vector<64x8xf32>
    %63 = arith.addf %56, %62 : vector<64x8xf32>
    %c1_52 = arith.constant 1 : index
    %c2_53 = arith.constant 2 : index
    %c0_54 = arith.constant 0 : index
    %64 = vector.load %arg11[%c1_52, %c2_53, %c0_54] : memref<10x10x8xf32, #tpu.memory_space<vmem>>, vector<8x8x8xf32>
    %65 = vector.shape_cast %64 : vector<8x8x8xf32> to vector<64x8xf32>
    %66 = arith.truncf %65 : vector<64x8xf32> to vector<64x8xbf16>
    %c5 = arith.constant 5 : index
    %c0_55 = arith.constant 0 : index
    %c0_56 = arith.constant 0 : index
    %67 = vector.load %arg6[%c5, %c0_55, %c0_56] : memref<9x8x8xbf16, #tpu.memory_space<vmem>>, vector<1x8x8xbf16>
    %68 = vector.shape_cast %67 : vector<1x8x8xbf16> to vector<8x8xbf16>
    %cst_57 = arith.constant dense<0.000000e+00> : vector<64x8xf32>
    %69 = tpu.matmul %66, %68, %cst_57 {dimension_numbers = #tpu.dot_dimension_numbers<[1], [0], [0], [1], [0, 0, 1, 1], [], []>} : vector<64x8xbf16>, vector<8x8xbf16>, vector<64x8xf32> -> vector<64x8xf32>
    %70 = arith.addf %63, %69 : vector<64x8xf32>
    %c2_58 = arith.constant 2 : index
    %c0_59 = arith.constant 0 : index
    %c0_60 = arith.constant 0 : index
    %71 = vector.load %arg11[%c2_58, %c0_59, %c0_60] : memref<10x10x8xf32, #tpu.memory_space<vmem>>, vector<8x8x8xf32>
    %72 = vector.shape_cast %71 : vector<8x8x8xf32> to vector<64x8xf32>
    %73 = arith.truncf %72 : vector<64x8xf32> to vector<64x8xbf16>
    %c6 = arith.constant 6 : index
    %c0_61 = arith.constant 0 : index
    %c0_62 = arith.constant 0 : index
    %74 = vector.load %arg6[%c6, %c0_61, %c0_62] : memref<9x8x8xbf16, #tpu.memory_space<vmem>>, vector<1x8x8xbf16>
    %75 = vector.shape_cast %74 : vector<1x8x8xbf16> to vector<8x8xbf16>
    %cst_63 = arith.constant dense<0.000000e+00> : vector<64x8xf32>
    %76 = tpu.matmul %73, %75, %cst_63 {dimension_numbers = #tpu.dot_dimension_numbers<[1], [0], [0], [1], [0, 0, 1, 1], [], []>} : vector<64x8xbf16>, vector<8x8xbf16>, vector<64x8xf32> -> vector<64x8xf32>
    %77 = arith.addf %70, %76 : vector<64x8xf32>
    %c2_64 = arith.constant 2 : index
    %c1_65 = arith.constant 1 : index
    %c0_66 = arith.constant 0 : index
    %78 = vector.load %arg11[%c2_64, %c1_65, %c0_66] : memref<10x10x8xf32, #tpu.memory_space<vmem>>, vector<8x8x8xf32>
    %79 = vector.shape_cast %78 : vector<8x8x8xf32> to vector<64x8xf32>
    %80 = arith.truncf %79 : vector<64x8xf32> to vector<64x8xbf16>
    %c7 = arith.constant 7 : index
    %c0_67 = arith.constant 0 : index
    %c0_68 = arith.constant 0 : index
    %81 = vector.load %arg6[%c7, %c0_67, %c0_68] : memref<9x8x8xbf16, #tpu.memory_space<vmem>>, vector<1x8x8xbf16>
    %82 = vector.shape_cast %81 : vector<1x8x8xbf16> to vector<8x8xbf16>
    %cst_69 = arith.constant dense<0.000000e+00> : vector<64x8xf32>
    %83 = tpu.matmul %80, %82, %cst_69 {dimension_numbers = #tpu.dot_dimension_numbers<[1], [0], [0], [1], [0, 0, 1, 1], [], []>} : vector<64x8xbf16>, vector<8x8xbf16>, vector<64x8xf32> -> vector<64x8xf32>
    %84 = arith.addf %77, %83 : vector<64x8xf32>
    %c2_70 = arith.constant 2 : index
    %c2_71 = arith.constant 2 : index
    %c0_72 = arith.constant 0 : index
    %85 = vector.load %arg11[%c2_70, %c2_71, %c0_72] : memref<10x10x8xf32, #tpu.memory_space<vmem>>, vector<8x8x8xf32>
    %86 = vector.shape_cast %85 : vector<8x8x8xf32> to vector<64x8xf32>
    %87 = arith.truncf %86 : vector<64x8xf32> to vector<64x8xbf16>
    %c8 = arith.constant 8 : index
    %c0_73 = arith.constant 0 : index
    %c0_74 = arith.constant 0 : index
    %88 = vector.load %arg6[%c8, %c0_73, %c0_74] : memref<9x8x8xbf16, #tpu.memory_space<vmem>>, vector<1x8x8xbf16>
    %89 = vector.shape_cast %88 : vector<1x8x8xbf16> to vector<8x8xbf16>
    %cst_75 = arith.constant dense<0.000000e+00> : vector<64x8xf32>
    %90 = tpu.matmul %87, %89, %cst_75 {dimension_numbers = #tpu.dot_dimension_numbers<[1], [0], [0], [1], [0, 0, 1, 1], [], []>} : vector<64x8xbf16>, vector<8x8xbf16>, vector<64x8xf32> -> vector<64x8xf32>
    %91 = arith.addf %84, %90 : vector<64x8xf32>
    %c0_76 = arith.constant 0 : index
    %c0_77 = arith.constant 0 : index
    %92 = vector.load %arg7[%c0_76, %c0_77] : memref<1x8xf32, #tpu.memory_space<vmem>>, vector<1x8xf32>
    %93 = vector.broadcast %92 : vector<1x8xf32> to vector<64x8xf32>
    %94 = arith.addf %91, %93 : vector<64x8xf32>
    %c0_78 = arith.constant 0 : index
    %c0_79 = arith.constant 0 : index
    %c0_80 = arith.constant 0 : index
    %95 = vector.load %arg8[%c0_78, %c0_79, %c0_80] : memref<1x64x8xf32, #tpu.memory_space<vmem>>, vector<1x64x8xf32>
    %96 = vector.shape_cast %95 : vector<1x64x8xf32> to vector<64x8xf32>
    %97 = vector.shape_cast %94 : vector<64x8xf32> to vector<1x64x8xf32>
    tpu.vector_store %arg8[%c0_78, %c0_79, %c0_80], %97 {strides = array<i32>} : memref<1x64x8xf32, #tpu.memory_space<vmem>>, vector<1x64x8xf32>,
    %cst_81 = arith.constant dense<0.000000e+00> : vector<8xf32>
    %98 = vector.multi_reduction <add>, %94, %cst_81 [0] : vector<64x8xf32> to vector<8xf32>
    %99 = vector.shape_cast %98 : vector<8xf32> to vector<1x8xf32>
    %100 = arith.mulf %94, %94 : vector<64x8xf32>
    %cst_82 = arith.constant dense<0.000000e+00> : vector<8xf32>
    %101 = vector.multi_reduction <add>, %100, %cst_82 [0] : vector<64x8xf32> to vector<8xf32>
    %102 = vector.shape_cast %101 : vector<8xf32> to vector<1x8xf32>
    %c0_i32 = arith.constant 0 : i32
    %103 = arith.cmpi eq, %arg0, %c0_i32 : i32
    %104 = arith.extui %103 : i1 to i32
    %c0_i32_83 = arith.constant 0 : i32
    %105 = arith.cmpi ne, %104, %c0_i32_83 : i32
    scf.if %105 {
      %c0_86 = arith.constant 0 : index
      %c0_87 = arith.constant 0 : index
      %109 = vector.load %arg9[%c0_86, %c0_87] : memref<1x8xf32, #tpu.memory_space<vmem>>, vector<1x8xf32>
      tpu.vector_store %arg9[%c0_86, %c0_87], %99 {strides = array<i32>} : memref<1x8xf32, #tpu.memory_space<vmem>>, vector<1x8xf32>,
      %c0_88 = arith.constant 0 : index
      %c0_89 = arith.constant 0 : index
      %110 = vector.load %arg10[%c0_88, %c0_89] : memref<1x8xf32, #tpu.memory_space<vmem>>, vector<1x8xf32>
      tpu.vector_store %arg10[%c0_88, %c0_89], %102 {strides = array<i32>} : memref<1x8xf32, #tpu.memory_space<vmem>>, vector<1x8xf32>,
    } else {
    }
    %c0_i32_84 = arith.constant 0 : i32
    %106 = arith.cmpi sgt, %arg0, %c0_i32_84 : i32
    %107 = arith.extui %106 : i1 to i32
    %c0_i32_85 = arith.constant 0 : i32
    %108 = arith.cmpi ne, %107, %c0_i32_85 : i32
    scf.if %108 {
      %c0_86 = arith.constant 0 : index
      %c0_87 = arith.constant 0 : index
      %109 = vector.load %arg9[%c0_86, %c0_87] : memref<1x8xf32, #tpu.memory_space<vmem>>, vector<1x8xf32>
      %110 = arith.addf %109, %99 : vector<1x8xf32>
      %c0_88 = arith.constant 0 : index
      %c0_89 = arith.constant 0 : index
      %111 = vector.load %arg9[%c0_88, %c0_89] : memref<1x8xf32, #tpu.memory_space<vmem>>, vector<1x8xf32>
      tpu.vector_store %arg9[%c0_88, %c0_89], %110 {strides = array<i32>} : memref<1x8xf32, #tpu.memory_space<vmem>>, vector<1x8xf32>,
      %c0_90 = arith.constant 0 : index
      %c0_91 = arith.constant 0 : index
      %112 = vector.load %arg10[%c0_90, %c0_91] : memref<1x8xf32, #tpu.memory_space<vmem>>, vector<1x8xf32>
      %113 = arith.addf %112, %102 : vector<1x8xf32>
      %c0_92 = arith.constant 0 : index
      %c0_93 = arith.constant 0 : index
      %114 = vector.load %arg10[%c0_92, %c0_93] : memref<1x8xf32, #tpu.memory_space<vmem>>, vector<1x8xf32>
      tpu.vector_store %arg10[%c0_92, %c0_93], %113 {strides = array<i32>} : memref<1x8xf32, #tpu.memory_space<vmem>>, vector<1x8xf32>,
    } else {
    }
    return
  }
  func.func @transform_0(%arg0: i32) -> (i32, i32, i32) {
    %c0_i32 = arith.constant 0 : i32
    %c0_i32_0 = arith.constant 0 : i32
    %c0_i32_1 = arith.constant 0 : i32
    return %arg0, %c0_i32, %c0_i32_0 : i32, i32, i32
  }
  func.func @transform_1(%arg0: i32) -> (i32, i32) {
    %c0_i32 = arith.constant 0 : i32
    %c0_i32_0 = arith.constant 0 : i32
    %c0_i32_1 = arith.constant 0 : i32
    return %c0_i32, %c0_i32_0 : i32, i32
  }
  func.func @transform_2(%arg0: i32) -> (i32, i32) {
    %c0_i32 = arith.constant 0 : i32
    %c0_i32_0 = arith.constant 0 : i32
    %c0_i32_1 = arith.constant 0 : i32
    return %c0_i32, %c0_i32_0 : i32, i32
  }
  func.func @transform_3(%arg0: i32) -> (i32, i32) {
    %c0_i32 = arith.constant 0 : i32
    %c0_i32_0 = arith.constant 0 : i32
    %c0_i32_1 = arith.constant 0 : i32
    return %c0_i32, %c0_i32_0 : i32, i32
  }
  func.func @transform_4(%arg0: i32) -> (i32, i32) {
    %c0_i32 = arith.constant 0 : i32
    %c0_i32_0 = arith.constant 0 : i32
    %c0_i32_1 = arith.constant 0 : i32
    return %c0_i32, %c0_i32_0 : i32, i32
  }
  func.func @transform_5(%arg0: i32) -> (i32, i32, i32) {
    %c0_i32 = arith.constant 0 : i32
    %c0_i32_0 = arith.constant 0 : i32
    %c0_i32_1 = arith.constant 0 : i32
    %c0_i32_2 = arith.constant 0 : i32
    return %c0_i32, %c0_i32_0, %c0_i32_1 : i32, i32, i32
  }
  func.func @transform_6(%arg0: i32) -> (i32, i32) {
    %c0_i32 = arith.constant 0 : i32
    %c0_i32_0 = arith.constant 0 : i32
    %c0_i32_1 = arith.constant 0 : i32
    return %c0_i32, %c0_i32_0 : i32, i32
  }
  func.func @transform_7(%arg0: i32) -> (i32, i32, i32) {
    %c0_i32 = arith.constant 0 : i32
    %c0_i32_0 = arith.constant 0 : i32
    %c0_i32_1 = arith.constant 0 : i32
    return %arg0, %c0_i32, %c0_i32_0 : i32, i32, i32
  }
  func.func @transform_8(%arg0: i32) -> (i32, i32) {
    %c0_i32 = arith.constant 0 : i32
    %c0_i32_0 = arith.constant 0 : i32
    %c0_i32_1 = arith.constant 0 : i32
    return %c0_i32, %c0_i32_0 : i32, i32
  }
  func.func @transform_9(%arg0: i32) -> (i32, i32) {
    %c0_i32 = arith.constant 0 : i32
    %c0_i32_0 = arith.constant 0 : i32
    %c0_i32_1 = arith.constant 0 : i32
    return %c0_i32, %c0_i32_0 : i32, i32
  }
}

module attributes {stable_mosaic.version = 11 : i64} {
  func.func @_stage3_kernel(%arg0: i32, %arg1: memref<128x8xf32, #tpu.memory_space<vmem>>, %arg2: memref<1x8xf32, #tpu.memory_space<vmem>>, %arg3: memref<1x8xf32, #tpu.memory_space<vmem>>, %arg4: memref<1x8xf32, #tpu.memory_space<vmem>>, %arg5: memref<1x8xf32, #tpu.memory_space<vmem>>, %arg6: memref<8x16xbf16, #tpu.memory_space<vmem>>, %arg7: memref<1x16xf32, #tpu.memory_space<vmem>>, %arg8: memref<128x16xf32, #tpu.memory_space<vmem>>, %arg9: memref<1x16xf32, #tpu.memory_space<vmem>>, %arg10: memref<1x16xf32, #tpu.memory_space<vmem>>) attributes {dimension_semantics = [#tpu.dimension_semantics<arbitrary>], iteration_bounds = array<i64: 1>, scalar_prefetch = 0 : i64, scratch_operands = 0 : i64, tpu.core_type = #tpu.core_type<tc>, window_params = [{transform_indices = @transform_0, window_bounds = array<i64: 128, 8>}, {pipeline_mode = #tpu.pipeline_mode<synchronous>, transform_indices = @transform_1, window_bounds = array<i64: 1, 8>}, {pipeline_mode = #tpu.pipeline_mode<synchronous>, transform_indices = @transform_2, window_bounds = array<i64: 1, 8>}, {pipeline_mode = #tpu.pipeline_mode<synchronous>, transform_indices = @transform_3, window_bounds = array<i64: 1, 8>}, {pipeline_mode = #tpu.pipeline_mode<synchronous>, transform_indices = @transform_4, window_bounds = array<i64: 1, 8>}, {pipeline_mode = #tpu.pipeline_mode<synchronous>, transform_indices = @transform_5, window_bounds = array<i64: 8, 16>}, {pipeline_mode = #tpu.pipeline_mode<synchronous>, transform_indices = @transform_6, window_bounds = array<i64: 1, 16>}, {transform_indices = @transform_7, window_bounds = array<i64: 128, 16>}, {pipeline_mode = #tpu.pipeline_mode<synchronous>, transform_indices = @transform_8, window_bounds = array<i64: 1, 16>}, {pipeline_mode = #tpu.pipeline_mode<synchronous>, transform_indices = @transform_9, window_bounds = array<i64: 1, 16>}]} {
    %c0 = arith.constant 0 : index
    %c0_0 = arith.constant 0 : index
    %0 = vector.load %arg2[%c0, %c0_0] : memref<1x8xf32, #tpu.memory_space<vmem>>, vector<1x8xf32>
    %cst = arith.constant 7.812500e-03 : f32
    %1 = vector.broadcast %cst : f32 to vector<1x8xf32>
    %2 = arith.mulf %0, %1 : vector<1x8xf32>
    %c0_1 = arith.constant 0 : index
    %c0_2 = arith.constant 0 : index
    %3 = vector.load %arg3[%c0_1, %c0_2] : memref<1x8xf32, #tpu.memory_space<vmem>>, vector<1x8xf32>
    %cst_3 = arith.constant 7.812500e-03 : f32
    %4 = vector.broadcast %cst_3 : f32 to vector<1x8xf32>
    %5 = arith.mulf %3, %4 : vector<1x8xf32>
    %6 = arith.mulf %2, %2 : vector<1x8xf32>
    %7 = arith.subf %5, %6 : vector<1x8xf32>
    %cst_4 = arith.constant 9.99999974E-6 : f32
    %8 = vector.broadcast %cst_4 : f32 to vector<1x8xf32>
    %9 = arith.addf %7, %8 : vector<1x8xf32>
    %10 = math.rsqrt %9 : vector<1x8xf32>
    %c0_5 = arith.constant 0 : index
    %c0_6 = arith.constant 0 : index
    %11 = vector.load %arg4[%c0_5, %c0_6] : memref<1x8xf32, #tpu.memory_space<vmem>>, vector<1x8xf32>
    %12 = arith.mulf %10, %11 : vector<1x8xf32>
    %c0_7 = arith.constant 0 : index
    %c0_8 = arith.constant 0 : index
    %13 = vector.load %arg5[%c0_7, %c0_8] : memref<1x8xf32, #tpu.memory_space<vmem>>, vector<1x8xf32>
    %14 = arith.mulf %2, %12 : vector<1x8xf32>
    %15 = arith.subf %13, %14 : vector<1x8xf32>
    %c0_9 = arith.constant 0 : index
    %c0_10 = arith.constant 0 : index
    %16 = vector.load %arg1[%c0_9, %c0_10] : memref<128x8xf32, #tpu.memory_space<vmem>>, vector<128x8xf32>
    %17 = vector.broadcast %12 : vector<1x8xf32> to vector<128x8xf32>
    %18 = arith.mulf %16, %17 : vector<128x8xf32>
    %19 = vector.broadcast %15 : vector<1x8xf32> to vector<128x8xf32>
    %20 = arith.addf %18, %19 : vector<128x8xf32>
    %cst_11 = arith.constant 0.000000e+00 : f32
    %21 = vector.broadcast %cst_11 : f32 to vector<128x8xf32>
    %22 = arith.maximumf %20, %21 : vector<128x8xf32>
    %23 = arith.truncf %22 : vector<128x8xf32> to vector<128x8xbf16>
    %c0_12 = arith.constant 0 : index
    %c0_13 = arith.constant 0 : index
    %24 = vector.load %arg6[%c0_12, %c0_13] : memref<8x16xbf16, #tpu.memory_space<vmem>>, vector<8x16xbf16>
    %cst_14 = arith.constant dense<0.000000e+00> : vector<128x16xf32>
    %25 = tpu.matmul %23, %24, %cst_14 {dimension_numbers = #tpu.dot_dimension_numbers<[1], [0], [0], [1], [0, 0, 1, 1], [], []>} : vector<128x8xbf16>, vector<8x16xbf16>, vector<128x16xf32> -> vector<128x16xf32>
    %c0_15 = arith.constant 0 : index
    %c0_16 = arith.constant 0 : index
    %26 = vector.load %arg7[%c0_15, %c0_16] : memref<1x16xf32, #tpu.memory_space<vmem>>, vector<1x16xf32>
    %27 = vector.broadcast %26 : vector<1x16xf32> to vector<128x16xf32>
    %28 = arith.addf %25, %27 : vector<128x16xf32>
    %c0_17 = arith.constant 0 : index
    %c0_18 = arith.constant 0 : index
    %29 = vector.load %arg8[%c0_17, %c0_18] : memref<128x16xf32, #tpu.memory_space<vmem>>, vector<128x16xf32>
    tpu.vector_store %arg8[%c0_17, %c0_18], %28 {strides = array<i32>} : memref<128x16xf32, #tpu.memory_space<vmem>>, vector<128x16xf32>,
    %cst_19 = arith.constant dense<0.000000e+00> : vector<16xf32>
    %30 = vector.multi_reduction <add>, %28, %cst_19 [0] : vector<128x16xf32> to vector<16xf32>
    %31 = vector.shape_cast %30 : vector<16xf32> to vector<1x16xf32>
    %32 = arith.mulf %28, %28 : vector<128x16xf32>
    %cst_20 = arith.constant dense<0.000000e+00> : vector<16xf32>
    %33 = vector.multi_reduction <add>, %32, %cst_20 [0] : vector<128x16xf32> to vector<16xf32>
    %34 = vector.shape_cast %33 : vector<16xf32> to vector<1x16xf32>
    %c0_i32 = arith.constant 0 : i32
    %35 = arith.cmpi eq, %arg0, %c0_i32 : i32
    %36 = arith.extui %35 : i1 to i32
    %c0_i32_21 = arith.constant 0 : i32
    %37 = arith.cmpi ne, %36, %c0_i32_21 : i32
    scf.if %37 {
      %c0_24 = arith.constant 0 : index
      %c0_25 = arith.constant 0 : index
      %41 = vector.load %arg9[%c0_24, %c0_25] : memref<1x16xf32, #tpu.memory_space<vmem>>, vector<1x16xf32>
      tpu.vector_store %arg9[%c0_24, %c0_25], %31 {strides = array<i32>} : memref<1x16xf32, #tpu.memory_space<vmem>>, vector<1x16xf32>,
      %c0_26 = arith.constant 0 : index
      %c0_27 = arith.constant 0 : index
      %42 = vector.load %arg10[%c0_26, %c0_27] : memref<1x16xf32, #tpu.memory_space<vmem>>, vector<1x16xf32>
      tpu.vector_store %arg10[%c0_26, %c0_27], %34 {strides = array<i32>} : memref<1x16xf32, #tpu.memory_space<vmem>>, vector<1x16xf32>,
    } else {
    }
    %c0_i32_22 = arith.constant 0 : i32
    %38 = arith.cmpi sgt, %arg0, %c0_i32_22 : i32
    %39 = arith.extui %38 : i1 to i32
    %c0_i32_23 = arith.constant 0 : i32
    %40 = arith.cmpi ne, %39, %c0_i32_23 : i32
    scf.if %40 {
      %c0_24 = arith.constant 0 : index
      %c0_25 = arith.constant 0 : index
      %41 = vector.load %arg9[%c0_24, %c0_25] : memref<1x16xf32, #tpu.memory_space<vmem>>, vector<1x16xf32>
      %42 = arith.addf %41, %31 : vector<1x16xf32>
      %c0_26 = arith.constant 0 : index
      %c0_27 = arith.constant 0 : index
      %43 = vector.load %arg9[%c0_26, %c0_27] : memref<1x16xf32, #tpu.memory_space<vmem>>, vector<1x16xf32>
      tpu.vector_store %arg9[%c0_26, %c0_27], %42 {strides = array<i32>} : memref<1x16xf32, #tpu.memory_space<vmem>>, vector<1x16xf32>,
      %c0_28 = arith.constant 0 : index
      %c0_29 = arith.constant 0 : index
      %44 = vector.load %arg10[%c0_28, %c0_29] : memref<1x16xf32, #tpu.memory_space<vmem>>, vector<1x16xf32>
      %45 = arith.addf %44, %34 : vector<1x16xf32>
      %c0_30 = arith.constant 0 : index
      %c0_31 = arith.constant 0 : index
      %46 = vector.load %arg10[%c0_30, %c0_31] : memref<1x16xf32, #tpu.memory_space<vmem>>, vector<1x16xf32>
      tpu.vector_store %arg10[%c0_30, %c0_31], %45 {strides = array<i32>} : memref<1x16xf32, #tpu.memory_space<vmem>>, vector<1x16xf32>,
    } else {
    }
    return
  }
  func.func @transform_0(%arg0: i32) -> (i32, i32) {
    %c0_i32 = arith.constant 0 : i32
    %c0_i32_0 = arith.constant 0 : i32
    return %arg0, %c0_i32 : i32, i32
  }
  func.func @transform_1(%arg0: i32) -> (i32, i32) {
    %c0_i32 = arith.constant 0 : i32
    %c0_i32_0 = arith.constant 0 : i32
    %c0_i32_1 = arith.constant 0 : i32
    return %c0_i32, %c0_i32_0 : i32, i32
  }
  func.func @transform_2(%arg0: i32) -> (i32, i32) {
    %c0_i32 = arith.constant 0 : i32
    %c0_i32_0 = arith.constant 0 : i32
    %c0_i32_1 = arith.constant 0 : i32
    return %c0_i32, %c0_i32_0 : i32, i32
  }
  func.func @transform_3(%arg0: i32) -> (i32, i32) {
    %c0_i32 = arith.constant 0 : i32
    %c0_i32_0 = arith.constant 0 : i32
    %c0_i32_1 = arith.constant 0 : i32
    return %c0_i32, %c0_i32_0 : i32, i32
  }
  func.func @transform_4(%arg0: i32) -> (i32, i32) {
    %c0_i32 = arith.constant 0 : i32
    %c0_i32_0 = arith.constant 0 : i32
    %c0_i32_1 = arith.constant 0 : i32
    return %c0_i32, %c0_i32_0 : i32, i32
  }
  func.func @transform_5(%arg0: i32) -> (i32, i32) {
    %c0_i32 = arith.constant 0 : i32
    %c0_i32_0 = arith.constant 0 : i32
    %c0_i32_1 = arith.constant 0 : i32
    return %c0_i32, %c0_i32_0 : i32, i32
  }
  func.func @transform_6(%arg0: i32) -> (i32, i32) {
    %c0_i32 = arith.constant 0 : i32
    %c0_i32_0 = arith.constant 0 : i32
    %c0_i32_1 = arith.constant 0 : i32
    return %c0_i32, %c0_i32_0 : i32, i32
  }
  func.func @transform_7(%arg0: i32) -> (i32, i32) {
    %c0_i32 = arith.constant 0 : i32
    %c0_i32_0 = arith.constant 0 : i32
    return %arg0, %c0_i32 : i32, i32
  }
  func.func @transform_8(%arg0: i32) -> (i32, i32) {
    %c0_i32 = arith.constant 0 : i32
    %c0_i32_0 = arith.constant 0 : i32
    %c0_i32_1 = arith.constant 0 : i32
    return %c0_i32, %c0_i32_0 : i32, i32
  }
  func.func @transform_9(%arg0: i32) -> (i32, i32) {
    %c0_i32 = arith.constant 0 : i32
    %c0_i32_0 = arith.constant 0 : i32
    %c0_i32_1 = arith.constant 0 : i32
    return %c0_i32, %c0_i32_0 : i32, i32
  }
}

module attributes {stable_mosaic.version = 11 : i64} {
  func.func @_final_kernel(%arg0: i32, %arg1: memref<128x16xf32, #tpu.memory_space<vmem>>, %arg2: memref<1x16xf32, #tpu.memory_space<vmem>>, %arg3: memref<1x16xf32, #tpu.memory_space<vmem>>, %arg4: memref<1x16xf32, #tpu.memory_space<vmem>>, %arg5: memref<1x16xf32, #tpu.memory_space<vmem>>, %arg6: memref<128x16xf32, #tpu.memory_space<vmem>>, %arg7: memref<1x16xf32, #tpu.memory_space<vmem>>, %arg8: memref<1x16xf32, #tpu.memory_space<vmem>>, %arg9: memref<1x16xf32, #tpu.memory_space<vmem>>, %arg10: memref<1x16xf32, #tpu.memory_space<vmem>>, %arg11: memref<128x16xf32, #tpu.memory_space<vmem>>) attributes {dimension_semantics = [#tpu.dimension_semantics<parallel>], iteration_bounds = array<i64: 1>, scalar_prefetch = 0 : i64, scratch_operands = 0 : i64, tpu.core_type = #tpu.core_type<tc>, window_params = [{transform_indices = @transform_0, window_bounds = array<i64: 128, 16>}, {pipeline_mode = #tpu.pipeline_mode<synchronous>, transform_indices = @transform_1, window_bounds = array<i64: 1, 16>}, {pipeline_mode = #tpu.pipeline_mode<synchronous>, transform_indices = @transform_2, window_bounds = array<i64: 1, 16>}, {pipeline_mode = #tpu.pipeline_mode<synchronous>, transform_indices = @transform_3, window_bounds = array<i64: 1, 16>}, {pipeline_mode = #tpu.pipeline_mode<synchronous>, transform_indices = @transform_4, window_bounds = array<i64: 1, 16>}, {transform_indices = @transform_5, window_bounds = array<i64: 128, 16>}, {pipeline_mode = #tpu.pipeline_mode<synchronous>, transform_indices = @transform_6, window_bounds = array<i64: 1, 16>}, {pipeline_mode = #tpu.pipeline_mode<synchronous>, transform_indices = @transform_7, window_bounds = array<i64: 1, 16>}, {pipeline_mode = #tpu.pipeline_mode<synchronous>, transform_indices = @transform_8, window_bounds = array<i64: 1, 16>}, {pipeline_mode = #tpu.pipeline_mode<synchronous>, transform_indices = @transform_9, window_bounds = array<i64: 1, 16>}, {transform_indices = @transform_10, window_bounds = array<i64: 128, 16>}]} {
    %c0 = arith.constant 0 : index
    %c0_0 = arith.constant 0 : index
    %0 = vector.load %arg1[%c0, %c0_0] : memref<128x16xf32, #tpu.memory_space<vmem>>, vector<128x16xf32>
    %c0_1 = arith.constant 0 : index
    %c0_2 = arith.constant 0 : index
    %1 = vector.load %arg2[%c0_1, %c0_2] : memref<1x16xf32, #tpu.memory_space<vmem>>, vector<1x16xf32>
    %c0_3 = arith.constant 0 : index
    %c0_4 = arith.constant 0 : index
    %2 = vector.load %arg3[%c0_3, %c0_4] : memref<1x16xf32, #tpu.memory_space<vmem>>, vector<1x16xf32>
    %c0_5 = arith.constant 0 : index
    %c0_6 = arith.constant 0 : index
    %3 = vector.load %arg4[%c0_5, %c0_6] : memref<1x16xf32, #tpu.memory_space<vmem>>, vector<1x16xf32>
    %c0_7 = arith.constant 0 : index
    %c0_8 = arith.constant 0 : index
    %4 = vector.load %arg5[%c0_7, %c0_8] : memref<1x16xf32, #tpu.memory_space<vmem>>, vector<1x16xf32>
    %cst = arith.constant 7.812500e-03 : f32
    %5 = vector.broadcast %cst : f32 to vector<1x16xf32>
    %6 = arith.mulf %1, %5 : vector<1x16xf32>
    %cst_9 = arith.constant 7.812500e-03 : f32
    %7 = vector.broadcast %cst_9 : f32 to vector<1x16xf32>
    %8 = arith.mulf %2, %7 : vector<1x16xf32>
    %9 = arith.mulf %6, %6 : vector<1x16xf32>
    %10 = arith.subf %8, %9 : vector<1x16xf32>
    %cst_10 = arith.constant 9.99999974E-6 : f32
    %11 = vector.broadcast %cst_10 : f32 to vector<1x16xf32>
    %12 = arith.addf %10, %11 : vector<1x16xf32>
    %13 = math.rsqrt %12 : vector<1x16xf32>
    %14 = arith.mulf %13, %3 : vector<1x16xf32>
    %15 = vector.broadcast %14 : vector<1x16xf32> to vector<128x16xf32>
    %16 = arith.mulf %0, %15 : vector<128x16xf32>
    %17 = arith.mulf %6, %14 : vector<1x16xf32>
    %18 = arith.subf %4, %17 : vector<1x16xf32>
    %19 = vector.broadcast %18 : vector<1x16xf32> to vector<128x16xf32>
    %20 = arith.addf %16, %19 : vector<128x16xf32>
    %c0_11 = arith.constant 0 : index
    %c0_12 = arith.constant 0 : index
    %21 = vector.load %arg6[%c0_11, %c0_12] : memref<128x16xf32, #tpu.memory_space<vmem>>, vector<128x16xf32>
    %c0_13 = arith.constant 0 : index
    %c0_14 = arith.constant 0 : index
    %22 = vector.load %arg7[%c0_13, %c0_14] : memref<1x16xf32, #tpu.memory_space<vmem>>, vector<1x16xf32>
    %c0_15 = arith.constant 0 : index
    %c0_16 = arith.constant 0 : index
    %23 = vector.load %arg8[%c0_15, %c0_16] : memref<1x16xf32, #tpu.memory_space<vmem>>, vector<1x16xf32>
    %c0_17 = arith.constant 0 : index
    %c0_18 = arith.constant 0 : index
    %24 = vector.load %arg9[%c0_17, %c0_18] : memref<1x16xf32, #tpu.memory_space<vmem>>, vector<1x16xf32>
    %c0_19 = arith.constant 0 : index
    %c0_20 = arith.constant 0 : index
    %25 = vector.load %arg10[%c0_19, %c0_20] : memref<1x16xf32, #tpu.memory_space<vmem>>, vector<1x16xf32>
    %cst_21 = arith.constant 7.812500e-03 : f32
    %26 = vector.broadcast %cst_21 : f32 to vector<1x16xf32>
    %27 = arith.mulf %22, %26 : vector<1x16xf32>
    %cst_22 = arith.constant 7.812500e-03 : f32
    %28 = vector.broadcast %cst_22 : f32 to vector<1x16xf32>
    %29 = arith.mulf %23, %28 : vector<1x16xf32>
    %30 = arith.mulf %27, %27 : vector<1x16xf32>
    %31 = arith.subf %29, %30 : vector<1x16xf32>
    %cst_23 = arith.constant 9.99999974E-6 : f32
    %32 = vector.broadcast %cst_23 : f32 to vector<1x16xf32>
    %33 = arith.addf %31, %32 : vector<1x16xf32>
    %34 = math.rsqrt %33 : vector<1x16xf32>
    %35 = arith.mulf %34, %24 : vector<1x16xf32>
    %36 = vector.broadcast %35 : vector<1x16xf32> to vector<128x16xf32>
    %37 = arith.mulf %21, %36 : vector<128x16xf32>
    %38 = arith.mulf %27, %35 : vector<1x16xf32>
    %39 = arith.subf %25, %38 : vector<1x16xf32>
    %40 = vector.broadcast %39 : vector<1x16xf32> to vector<128x16xf32>
    %41 = arith.addf %37, %40 : vector<128x16xf32>
    %42 = arith.addf %20, %41 : vector<128x16xf32>
    %cst_24 = arith.constant 0.000000e+00 : f32
    %43 = vector.broadcast %cst_24 : f32 to vector<128x16xf32>
    %44 = arith.maximumf %42, %43 : vector<128x16xf32>
    %c0_25 = arith.constant 0 : index
    %c0_26 = arith.constant 0 : index
    %45 = vector.load %arg11[%c0_25, %c0_26] : memref<128x16xf32, #tpu.memory_space<vmem>>, vector<128x16xf32>
    tpu.vector_store %arg11[%c0_25, %c0_26], %44 {strides = array<i32>} : memref<128x16xf32, #tpu.memory_space<vmem>>, vector<128x16xf32>,
    return
  }
  func.func @transform_0(%arg0: i32) -> (i32, i32) {
    %c0_i32 = arith.constant 0 : i32
    %c0_i32_0 = arith.constant 0 : i32
    return %arg0, %c0_i32 : i32, i32
  }
  func.func @transform_1(%arg0: i32) -> (i32, i32) {
    %c0_i32 = arith.constant 0 : i32
    %c0_i32_0 = arith.constant 0 : i32
    %c0_i32_1 = arith.constant 0 : i32
    return %c0_i32, %c0_i32_0 : i32, i32
  }
  func.func @transform_2(%arg0: i32) -> (i32, i32) {
    %c0_i32 = arith.constant 0 : i32
    %c0_i32_0 = arith.constant 0 : i32
    %c0_i32_1 = arith.constant 0 : i32
    return %c0_i32, %c0_i32_0 : i32, i32
  }
  func.func @transform_3(%arg0: i32) -> (i32, i32) {
    %c0_i32 = arith.constant 0 : i32
    %c0_i32_0 = arith.constant 0 : i32
    %c0_i32_1 = arith.constant 0 : i32
    return %c0_i32, %c0_i32_0 : i32, i32
  }
  func.func @transform_4(%arg0: i32) -> (i32, i32) {
    %c0_i32 = arith.constant 0 : i32
    %c0_i32_0 = arith.constant 0 : i32
    %c0_i32_1 = arith.constant 0 : i32
    return %c0_i32, %c0_i32_0 : i32, i32
  }
  func.func @transform_5(%arg0: i32) -> (i32, i32) {
    %c0_i32 = arith.constant 0 : i32
    %c0_i32_0 = arith.constant 0 : i32
    return %arg0, %c0_i32 : i32, i32
  }
  func.func @transform_6(%arg0: i32) -> (i32, i32) {
    %c0_i32 = arith.constant 0 : i32
    %c0_i32_0 = arith.constant 0 : i32
    %c0_i32_1 = arith.constant 0 : i32
    return %c0_i32, %c0_i32_0 : i32, i32
  }
  func.func @transform_7(%arg0: i32) -> (i32, i32) {
    %c0_i32 = arith.constant 0 : i32
    %c0_i32_0 = arith.constant 0 : i32
    %c0_i32_1 = arith.constant 0 : i32
    return %c0_i32, %c0_i32_0 : i32, i32
  }
  func.func @transform_8(%arg0: i32) -> (i32, i32) {
    %c0_i32 = arith.constant 0 : i32
    %c0_i32_0 = arith.constant 0 : i32
    %c0_i32_1 = arith.constant 0 : i32
    return %c0_i32, %c0_i32_0 : i32, i32
  }
  func.func @transform_9(%arg0: i32) -> (i32, i32) {
    %c0_i32 = arith.constant 0 : i32
    %c0_i32_0 = arith.constant 0 : i32
    %c0_i32_1 = arith.constant 0 : i32
    return %c0_i32, %c0_i32_0 : i32, i32
  }
  func.func @transform_10(%arg0: i32) -> (i32, i32) {
    %c0_i32 = arith.constant 0 : i32
    %c0_i32_0 = arith.constant 0 : i32
    return %arg0, %c0_i32 : i32, i32
  }
}

</mosaic_0001>

<llo_original>
// kernel: conv_block_forward.7
$region0: #{conv_block_forward.7}
  #allocation0 [shape = 'u32[]', space=smem, size = 0x4, offset = 0x4, fixed_abs, tag = 'smem constant byte address 0x4 - core index']
  #allocation1 [shape = 'u32[144,128]{1,0:T(1,128)}', space=vmem, size = 0x12000, scoped, tag = 'internal scratch']
  %s0 = inlined_call_operand.vmem [shape: f32[128,16], index: 0, kind: input, shape index: {}]
  %s1 = inlined_call_operand.vmem [shape: f32[1,16], index: 1, kind: input, shape index: {}]
  %s2 = inlined_call_operand.vmem [shape: f32[1,16], index: 2, kind: input, shape index: {}]
  %s3 = inlined_call_operand.vmem [shape: f32[1,16], index: 3, kind: input, shape index: {}]
  %s4 = inlined_call_operand.vmem [shape: f32[1,16], index: 4, kind: input, shape index: {}]
  %s5 = inlined_call_operand.vmem [shape: f32[128,16], index: 5, kind: input, shape index: {}]
  %s6 = inlined_call_operand.vmem [shape: f32[1,16], index: 6, kind: input, shape index: {}]
  %s7 = inlined_call_operand.vmem [shape: f32[1,16], index: 7, kind: input, shape index: {}]
  %s8 = inlined_call_operand.vmem [shape: f32[1,16], index: 8, kind: input, shape index: {}]
  %s9 = inlined_call_operand.vmem [shape: f32[1,16], index: 9, kind: input, shape index: {}]
  %s10 = inlined_call_operand.hbm [shape: f32[128,16], index: 10, kind: output, shape index: {}]
  %s11 = sld [smem:[#allocation0]]
  $region50: #{conv_block_forward.7} parent=0
    _
  %s13 = ssub.s32 1, %s11
  %s14 = scalar_select 0, %s13, %s11
  $region1: #{conv_block_forward.7} parent=0
    #allocation2 [shape = 'u8[65536]{0}', space=vmem, size = 0x10000, scoped, tag = 'output window, operand 0, single buffered']
    #allocation3 [shape = 's32[1]{0}', space=sflag, size = 0x4, scoped, tag = 'scoped memory for conv_block_forward.7']
    %15 = vsyncpa [#allocation3], 0
    // Predicated region
    $region2: #{conv_block_forward.7} parent=1 // pred_check
      _
    $region3: #{conv_block_forward.7} parent=1 // pred_check_branch
      %17 = sbr.rel (0) target = $region5
    $region4: #{conv_block_forward.7} parent=1 // pred_region
      _
    $region5: #{conv_block_forward.7} parent=1 // pred_fallthru
      _
    // Predicated region
    $region6: #{conv_block_forward.7} parent=1 // pred_check
      _
    $region7: #{conv_block_forward.7} parent=1 // pred_check_branch
      %19 = sbr.rel (0) target = $region9
    $region8: #{conv_block_forward.7} parent=1 // pred_region
      _
    $region9: #{conv_block_forward.7} parent=1 // pred_fallthru
      _
    // Predicated region
    $region10: #{conv_block_forward.7} parent=1 // pred_check
      _
    $region11: #{conv_block_forward.7} parent=1 // pred_check_branch
      %21 = sbr.rel (0) target = $region13
    $region12: #{conv_block_forward.7} parent=1 // pred_region
      _
    $region13: #{conv_block_forward.7} parent=1 // pred_fallthru
      _
    // Predicated region
    $region14: #{conv_block_forward.7} parent=1 // pred_check
      _
    $region15: #{conv_block_forward.7} parent=1 // pred_check_branch
      %23 = sbr.rel (0) target = $region17
    $region16: #{conv_block_forward.7} parent=1 // pred_region
      _
    $region17: #{conv_block_forward.7} parent=1 // pred_fallthru
      _
    // Predicated region
    $region18: #{conv_block_forward.7} parent=1 // pred_check
      _
    $region19: #{conv_block_forward.7} parent=1 // pred_check_branch
      %25 = sbr.rel (0) target = $region21
    $region20: #{conv_block_forward.7} parent=1 // pred_region
      _
    $region21: #{conv_block_forward.7} parent=1 // pred_fallthru
      _
    // Predicated region
    $region22: #{conv_block_forward.7} parent=1 // pred_check
      _
    $region23: #{conv_block_forward.7} parent=1 // pred_check_branch
      %27 = sbr.rel (0) target = $region25
    $region24: #{conv_block_forward.7} parent=1 // pred_region
      _
    $region25: #{conv_block_forward.7} parent=1 // pred_fallthru
      _
    // Predicated region
    $region26: #{conv_block_forward.7} parent=1 // pred_check
      _
    $region27: #{conv_block_forward.7} parent=1 // pred_check_branch
      %29 = sbr.rel (0) target = $region29
    $region28: #{conv_block_forward.7} parent=1 // pred_region
      _
    $region29: #{conv_block_forward.7} parent=1 // pred_fallthru
      _
    // Predicated region
    $region30: #{conv_block_forward.7} parent=1 // pred_check
      _
    $region31: #{conv_block_forward.7} parent=1 // pred_check_branch
      %31 = sbr.rel (0) target = $region33
    $region32: #{conv_block_forward.7} parent=1 // pred_region
      _
    $region33: #{conv_block_forward.7} parent=1 // pred_fallthru
      _
    // Predicated region
    $region34: #{conv_block_forward.7} parent=1 // pred_check
      _
    $region35: #{conv_block_forward.7} parent=1 // pred_check_branch
      %33 = sbr.rel (0) target = $region37
    $region36: #{conv_block_forward.7} parent=1 // pred_region
      _
    $region37: #{conv_block_forward.7} parent=1 // pred_fallthru
      _
    // Predicated region
    $region38: #{conv_block_forward.7} parent=1 // pred_check
      _
    $region39: #{conv_block_forward.7} parent=1 // pred_check_branch
      %35 = sbr.rel (0) target = $region41
    $region40: #{conv_block_forward.7} parent=1 // pred_region
      _
    $region41: #{conv_block_forward.7} parent=1 // pred_fallthru
      _
    %v36 = vld [vmem:[%s0] sm:$0xff]
    %v37 = vld [vmem:[%s0 + $0x8] sm:$0xff]
    %v38 = vld [vmem:[%s0 + $0x10] sm:$0xff]
    %v39 = vld [vmem:[%s0 + $0x18] sm:$0xff]
    %v40 = vld [vmem:[%s0 + $0x20] sm:$0xff]
    %v41 = vld [vmem:[%s0 + $0x28] sm:$0xff]
    %v42 = vld [vmem:[%s0 + $0x30] sm:$0xff]
    %v43 = vld [vmem:[%s0 + $0x38] sm:$0xff]
    %v44 = vld [vmem:[%s0 + $0x40] sm:$0xff]
    %v45 = vld [vmem:[%s0 + $0x48] sm:$0xff]
    %v46 = vld [vmem:[%s0 + $0x50] sm:$0xff]
    %v47 = vld [vmem:[%s0 + $0x58] sm:$0xff]
    %v48 = vld [vmem:[%s0 + $0x60] sm:$0xff]
    %v49 = vld [vmem:[%s0 + $0x68] sm:$0xff]
    %v50 = vld [vmem:[%s0 + $0x70] sm:$0xff]
    %v51 = vld [vmem:[%s0 + $0x78] sm:$0xff]
    %v52 = vld [vmem:[%s1] sm:$0x1]
    %v53 = vld [vmem:[%s2] sm:$0x1]
    %v54 = vld [vmem:[%s3] sm:$0x1]
    %v55 = vld [vmem:[%s4] sm:$0x1]
    %v56 = vmul.f32 %v52, 0.0078125
    %v57 = vmul.f32 %v53, 0.0078125
    %v58 = vmul.f32 %v56, %v56
    %v59 = vsub.f32 %v57, %v58
    %v60 = vadd.f32 %v59, 1e-05
    %v61 = vrsqrt.pop %v60
    %v62 = vmul.f32 %v61, %v54
    %v64 = vlaneseq
    %v65 = vshrl.u32 %v64, 7
    %v66 = vsub.s32 0, %v65
    %v67 = vrot.slane %v62, %v66
    %v69 = vmul.f32 %v36, %v67
    %v70 = vmul.f32 %v37, %v67
    %v71 = vmul.f32 %v38, %v67
    %v72 = vmul.f32 %v39, %v67
    %v73 = vmul.f32 %v40, %v67
    %v74 = vmul.f32 %v41, %v67
    %v75 = vmul.f32 %v42, %v67
    %v76 = vmul.f32 %v43, %v67
    %v77 = vmul.f32 %v44, %v67
    %v78 = vmul.f32 %v45, %v67
    %v79 = vmul.f32 %v46, %v67
    %v80 = vmul.f32 %v47, %v67
    %v81 = vmul.f32 %v48, %v67
    %v82 = vmul.f32 %v49, %v67
    %v83 = vmul.f32 %v50, %v67
    %v84 = vmul.f32 %v51, %v67
    %v85 = vmul.f32 %v56, %v62
    %v86 = vsub.f32 %v55, %v85
    %v88 = vlaneseq
    %v89 = vshrl.u32 %v88, 7
    %v90 = vsub.s32 0, %v89
    %v91 = vrot.slane %v86, %v90
    %v93 = vadd.f32 %v69, %v91
    %v94 = vadd.f32 %v70, %v91
    %v95 = vadd.f32 %v71, %v91
    %v96 = vadd.f32 %v72, %v91
    %v97 = vadd.f32 %v73, %v91
    %v98 = vadd.f32 %v74, %v91
    %v99 = vadd.f32 %v75, %v91
    %v100 = vadd.f32 %v76, %v91
    %v101 = vadd.f32 %v77, %v91
    %v102 = vadd.f32 %v78, %v91
    %v103 = vadd.f32 %v79, %v91
    %v104 = vadd.f32 %v80, %v91
    %v105 = vadd.f32 %v81, %v91
    %v106 = vadd.f32 %v82, %v91
    %v107 = vadd.f32 %v83, %v91
    %v108 = vadd.f32 %v84, %v91
    %v109 = vld [vmem:[%s5] sm:$0xff]
    %v110 = vld [vmem:[%s5 + $0x8] sm:$0xff]
    %v111 = vld [vmem:[%s5 + $0x10] sm:$0xff]
    %v112 = vld [vmem:[%s5 + $0x18] sm:$0xff]
    %v113 = vld [vmem:[%s5 + $0x20] sm:$0xff]
    %v114 = vld [vmem:[%s5 + $0x28] sm:$0xff]
    %v115 = vld [vmem:[%s5 + $0x30] sm:$0xff]
    %v116 = vld [vmem:[%s5 + $0x38] sm:$0xff]
    %v117 = vld [vmem:[%s5 + $0x40] sm:$0xff]
    %v118 = vld [vmem:[%s5 + $0x48] sm:$0xff]
    %v119 = vld [vmem:[%s5 + $0x50] sm:$0xff]
    %v120 = vld [vmem:[%s5 + $0x58] sm:$0xff]
    %v121 = vld [vmem:[%s5 + $0x60] sm:$0xff]
    %v122 = vld [vmem:[%s5 + $0x68] sm:$0xff]
    %v123 = vld [vmem:[%s5 + $0x70] sm:$0xff]
    %v124 = vld [vmem:[%s5 + $0x78] sm:$0xff]
    %v125 = vld [vmem:[%s6] sm:$0x1]
    %v126 = vld [vmem:[%s7] sm:$0x1]
    %v127 = vld [vmem:[%s8] sm:$0x1]
    %v128 = vld [vmem:[%s9] sm:$0x1]
    %v129 = vmul.f32 %v125, 0.0078125
    %v130 = vmul.f32 %v126, 0.0078125
    %v131 = vmul.f32 %v129, %v129
    %v132 = vsub.f32 %v130, %v131
    %v133 = vadd.f32 %v132, 1e-05
    %v134 = vrsqrt.pop %v133
    %v135 = vmul.f32 %v134, %v127
    %v137 = vlaneseq
    %v138 = vshrl.u32 %v137, 7
    %v139 = vsub.s32 0, %v138
    %v140 = vrot.slane %v135, %v139
    %v142 = vmul.f32 %v109, %v140
    %v143 = vmul.f32 %v110, %v140
    %v144 = vmul.f32 %v111, %v140
    %v145 = vmul.f32 %v112, %v140
    %v146 = vmul.f32 %v113, %v140
    %v147 = vmul.f32 %v114, %v140
    %v148 = vmul.f32 %v115, %v140
    %v149 = vmul.f32 %v116, %v140
    %v150 = vmul.f32 %v117, %v140
    %v151 = vmul.f32 %v118, %v140
    %v152 = vmul.f32 %v119, %v140
    %v153 = vmul.f32 %v120, %v140
    %v154 = vmul.f32 %v121, %v140
    %v155 = vmul.f32 %v122, %v140
    %v156 = vmul.f32 %v123, %v140
    %v157 = vmul.f32 %v124, %v140
    %v158 = vmul.f32 %v129, %v135
    %v159 = vsub.f32 %v128, %v158
    %v161 = vlaneseq
    %v162 = vshrl.u32 %v161, 7
    %v163 = vsub.s32 0, %v162
    %v164 = vrot.slane %v159, %v163
    %v166 = vadd.f32 %v142, %v164
    %v167 = vadd.f32 %v143, %v164
    %v168 = vadd.f32 %v144, %v164
    %v169 = vadd.f32 %v145, %v164
    %v170 = vadd.f32 %v146, %v164
    %v171 = vadd.f32 %v147, %v164
    %v172 = vadd.f32 %v148, %v164
    %v173 = vadd.f32 %v149, %v164
    %v174 = vadd.f32 %v150, %v164
    %v175 = vadd.f32 %v151, %v164
    %v176 = vadd.f32 %v152, %v164
    %v177 = vadd.f32 %v153, %v164
    %v178 = vadd.f32 %v154, %v164
    %v179 = vadd.f32 %v155, %v164
    %v180 = vadd.f32 %v156, %v164
    %v181 = vadd.f32 %v157, %v164
    %v182 = vadd.f32 %v93, %v166
    %v183 = vadd.f32 %v94, %v167
    %v184 = vadd.f32 %v95, %v168
    %v185 = vadd.f32 %v96, %v169
    %v186 = vadd.f32 %v97, %v170
    %v187 = vadd.f32 %v98, %v171
    %v188 = vadd.f32 %v99, %v172
    %v189 = vadd.f32 %v100, %v173
    %v190 = vadd.f32 %v101, %v174
    %v191 = vadd.f32 %v102, %v175
    %v192 = vadd.f32 %v103, %v176
    %v193 = vadd.f32 %v104, %v177
    %v194 = vadd.f32 %v105, %v178
    %v195 = vadd.f32 %v106, %v179
    %v196 = vadd.f32 %v107, %v180
    %v197 = vadd.f32 %v108, %v181
    %v198 = vmax.f32 %v182, 0.0
    %v199 = vmax.f32 %v183, 0.0
    %v200 = vmax.f32 %v184, 0.0
    %v201 = vmax.f32 %v185, 0.0
    %v202 = vmax.f32 %v186, 0.0
    %v203 = vmax.f32 %v187, 0.0
    %v204 = vmax.f32 %v188, 0.0
    %v205 = vmax.f32 %v189, 0.0
    %v206 = vmax.f32 %v190, 0.0
    %v207 = vmax.f32 %v191, 0.0
    %v208 = vmax.f32 %v192, 0.0
    %v209 = vmax.f32 %v193, 0.0
    %v210 = vmax.f32 %v194, 0.0
    %v211 = vmax.f32 %v195, 0.0
    %v212 = vmax.f32 %v196, 0.0
    %v213 = vmax.f32 %v197, 0.0
    %vm214 = vcmask 130048
    %215 = vst.msk [vmem:[#allocation2] sm:$0xff] %vm214, %v198
    %216 = vst.msk [vmem:[#allocation2 + $0x8] sm:$0xff] %vm214, %v199
    %217 = vst.msk [vmem:[#allocation2 + $0x10] sm:$0xff] %vm214, %v200
    %218 = vst.msk [vmem:[#allocation2 + $0x18] sm:$0xff] %vm214, %v201
    %219 = vst.msk [vmem:[#allocation2 + $0x20] sm:$0xff] %vm214, %v202
    %220 = vst.msk [vmem:[#allocation2 + $0x28] sm:$0xff] %vm214, %v203
    %221 = vst.msk [vmem:[#allocation2 + $0x30] sm:$0xff] %vm214, %v204
    %222 = vst.msk [vmem:[#allocation2 + $0x38] sm:$0xff] %vm214, %v205
    %223 = vst.msk [vmem:[#allocation2 + $0x40] sm:$0xff] %vm214, %v206
    %224 = vst.msk [vmem:[#allocation2 + $0x48] sm:$0xff] %vm214, %v207
    %225 = vst.msk [vmem:[#allocation2 + $0x50] sm:$0xff] %vm214, %v208
    %226 = vst.msk [vmem:[#allocation2 + $0x58] sm:$0xff] %vm214, %v209
    %227 = vst.msk [vmem:[#allocation2 + $0x60] sm:$0xff] %vm214, %v210
    %228 = vst.msk [vmem:[#allocation2 + $0x68] sm:$0xff] %vm214, %v211
    %229 = vst.msk [vmem:[#allocation2 + $0x70] sm:$0xff] %vm214, %v212
    %230 = vst.msk [vmem:[#allocation2 + $0x78] sm:$0xff] %vm214, %v213
    // Predicated region
    $region42: #{conv_block_forward.7} parent=1 // pred_check
      _
    $region43: #{conv_block_forward.7} parent=1 // pred_check_branch
      %232 = sbr.rel (0) target = $region45
    $region44: #{conv_block_forward.7} parent=1 // pred_region
      %s234 = ssub.s32 2048, 2048
      %235 = vsyncadd [#allocation3], %s234
      %s236 = sshll.u32 [#allocation2], 4
      %s237 = int_to_ptr.vmem [resolvable:$true] %s236
      %242 = dma.vmem_to_hbm [thread:$0]  %s237, 2048, %s10, [#allocation3], 128, 128, 8
    $region45: #{conv_block_forward.7} parent=1 // pred_fallthru
      _
    // Predicated region
    $region46: #{conv_block_forward.7} parent=1 // pred_check
      _
    $region47: #{conv_block_forward.7} parent=1 // pred_check_branch
      %244 = sbr.rel (0) target = $region49
    $region48: #{conv_block_forward.7} parent=1 // pred_region
      %245 = dma.done [#allocation3], 2048
    $region49: #{conv_block_forward.7} parent=1 // pred_fallthru
      _
    %246 = vsyncpa [#allocation3], 1

// kernel: conv_block_forward.6
$region0: #{conv_block_forward.6}
  #allocation0 [shape = 'u32[]', space=smem, size = 0x4, offset = 0x4, fixed_abs, tag = 'smem constant byte address 0x4 - core index']
  #allocation1 [shape = 'u32[144,128]{1,0:T(1,128)}', space=vmem, size = 0x12000, scoped, tag = 'internal scratch']
  %s0 = inlined_call_operand.vmem [shape: f32[128,8], index: 0, kind: input, shape index: {}]
  %s1 = inlined_call_operand.vmem [shape: f32[1,8], index: 1, kind: input, shape index: {}]
  %s2 = inlined_call_operand.vmem [shape: f32[1,8], index: 2, kind: input, shape index: {}]
  %s3 = inlined_call_operand.vmem [shape: f32[1,8], index: 3, kind: input, shape index: {}]
  %s4 = inlined_call_operand.vmem [shape: f32[1,8], index: 4, kind: input, shape index: {}]
  %s5 = inlined_call_operand.vmem [shape: bf16[8,16], index: 5, kind: input, shape index: {}]
  %s6 = inlined_call_operand.vmem [shape: f32[1,16], index: 6, kind: input, shape index: {}]
  %s7 = inlined_call_operand.vmem [shape: f32[128,16], index: 7, kind: output, shape index: {0}]
  %s8 = inlined_call_operand.vmem [shape: f32[1,16], index: 8, kind: output, shape index: {1}]
  %s9 = inlined_call_operand.vmem [shape: f32[1,16], index: 9, kind: output, shape index: {2}]
  %10 = xla_tuple %s7, %s8, %s9
  %s11 = sld [smem:[#allocation0]]
  $region62: #{conv_block_forward.6} parent=0
    _
  %s13 = ssub.s32 1, %s11
  %s14 = scalar_select 0, %s13, %s11
  // Predicated region
  $region2: #{conv_block_forward.6} parent=0 // pred_check
    _
  $region3: #{conv_block_forward.6} parent=0 // pred_check_branch
    %16 = sbr.rel (0) target = $region5
  $region4: #{conv_block_forward.6} parent=0 // pred_region
    _
  $region5: #{conv_block_forward.6} parent=0 // pred_fallthru
    _
  // Predicated region
  $region6: #{conv_block_forward.6} parent=0 // pred_check
    _
  $region7: #{conv_block_forward.6} parent=0 // pred_check_branch
    %18 = sbr.rel (0) target = $region9
  $region8: #{conv_block_forward.6} parent=0 // pred_region
    _
  $region9: #{conv_block_forward.6} parent=0 // pred_fallthru
    _
  // Predicated region
  $region10: #{conv_block_forward.6} parent=0 // pred_check
    _
  $region11: #{conv_block_forward.6} parent=0 // pred_check_branch
    %20 = sbr.rel (0) target = $region13
  $region12: #{conv_block_forward.6} parent=0 // pred_region
    _
  $region13: #{conv_block_forward.6} parent=0 // pred_fallthru
    _
  // Predicated region
  $region14: #{conv_block_forward.6} parent=0 // pred_check
    _
  $region15: #{conv_block_forward.6} parent=0 // pred_check_branch
    %22 = sbr.rel (0) target = $region17
  $region16: #{conv_block_forward.6} parent=0 // pred_region
    _
  $region17: #{conv_block_forward.6} parent=0 // pred_fallthru
    _
  // Predicated region
  $region18: #{conv_block_forward.6} parent=0 // pred_check
    _
  $region19: #{conv_block_forward.6} parent=0 // pred_check_branch
    %24 = sbr.rel (0) target = $region21
  $region20: #{conv_block_forward.6} parent=0 // pred_region
    _
  $region21: #{conv_block_forward.6} parent=0 // pred_fallthru
    _
  // Predicated region
  $region22: #{conv_block_forward.6} parent=0 // pred_check
    _
  $region23: #{conv_block_forward.6} parent=0 // pred_check_branch
    %26 = sbr.rel (0) target = $region25
  $region24: #{conv_block_forward.6} parent=0 // pred_region
    _
  $region25: #{conv_block_forward.6} parent=0 // pred_fallthru
    _
  // Predicated region
  $region26: #{conv_block_forward.6} parent=0 // pred_check
    _
  $region27: #{conv_block_forward.6} parent=0 // pred_check_branch
    %28 = sbr.rel (0) target = $region29
  $region28: #{conv_block_forward.6} parent=0 // pred_region
    _
  $region29: #{conv_block_forward.6} parent=0 // pred_fallthru
    _
  %v30 = vld [vmem:[%s1] sm:$0x1]
  %v31 = vmul.f32 %v30, 0.0078125
  %v32 = vld [vmem:[%s2] sm:$0x1]
  %v33 = vmul.f32 %v32, 0.0078125
  %v34 = vmul.f32 %v31, %v31
  %v35 = vsub.f32 %v33, %v34
  %v36 = vadd.f32 %v35, 1e-05
  %v37 = vrsqrt.pop %v36
  %v38 = vld [vmem:[%s3] sm:$0x1]
  %v39 = vmul.f32 %v37, %v38
  %v40 = vld [vmem:[%s4] sm:$0x1]
  %v41 = vmul.f32 %v31, %v39
  %v42 = vsub.f32 %v40, %v41
  %v43 = vld [vmem:[%s0] sm:$0xff]
  %v44 = vld [vmem:[%s0 + $0x8] sm:$0xff]
  %v45 = vld [vmem:[%s0 + $0x10] sm:$0xff]
  %v46 = vld [vmem:[%s0 + $0x18] sm:$0xff]
  %v47 = vld [vmem:[%s0 + $0x20] sm:$0xff]
  %v48 = vld [vmem:[%s0 + $0x28] sm:$0xff]
  %v49 = vld [vmem:[%s0 + $0x30] sm:$0xff]
  %v50 = vld [vmem:[%s0 + $0x38] sm:$0xff]
  %v51 = vld [vmem:[%s0 + $0x40] sm:$0xff]
  %v52 = vld [vmem:[%s0 + $0x48] sm:$0xff]
  %v53 = vld [vmem:[%s0 + $0x50] sm:$0xff]
  %v54 = vld [vmem:[%s0 + $0x58] sm:$0xff]
  %v55 = vld [vmem:[%s0 + $0x60] sm:$0xff]
  %v56 = vld [vmem:[%s0 + $0x68] sm:$0xff]
  %v57 = vld [vmem:[%s0 + $0x70] sm:$0xff]
  %v58 = vld [vmem:[%s0 + $0x78] sm:$0xff]
  %v60 = vlaneseq
  %v61 = vshrl.u32 %v60, 7
  %v62 = vsub.s32 0, %v61
  %v63 = vrot.slane %v39, %v62
  %v65 = vmul.f32 %v43, %v63
  %v66 = vmul.f32 %v44, %v63
  %v67 = vmul.f32 %v45, %v63
  %v68 = vmul.f32 %v46, %v63
  %v69 = vmul.f32 %v47, %v63
  %v70 = vmul.f32 %v48, %v63
  %v71 = vmul.f32 %v49, %v63
  %v72 = vmul.f32 %v50, %v63
  %v73 = vmul.f32 %v51, %v63
  %v74 = vmul.f32 %v52, %v63
  %v75 = vmul.f32 %v53, %v63
  %v76 = vmul.f32 %v54, %v63
  %v77 = vmul.f32 %v55, %v63
  %v78 = vmul.f32 %v56, %v63
  %v79 = vmul.f32 %v57, %v63
  %v80 = vmul.f32 %v58, %v63
  %v82 = vlaneseq
  %v83 = vshrl.u32 %v82, 7
  %v84 = vsub.s32 0, %v83
  %v85 = vrot.slane %v42, %v84
  %v87 = vadd.f32 %v65, %v85
  %v88 = vadd.f32 %v66, %v85
  %v89 = vadd.f32 %v67, %v85
  %v90 = vadd.f32 %v68, %v85
  %v91 = vadd.f32 %v69, %v85
  %v92 = vadd.f32 %v70, %v85
  %v93 = vadd.f32 %v71, %v85
  %v94 = vadd.f32 %v72, %v85
  %v95 = vadd.f32 %v73, %v85
  %v96 = vadd.f32 %v74, %v85
  %v97 = vadd.f32 %v75, %v85
  %v98 = vadd.f32 %v76, %v85
  %v99 = vadd.f32 %v77, %v85
  %v100 = vadd.f32 %v78, %v85
  %v101 = vadd.f32 %v79, %v85
  %v102 = vadd.f32 %v80, %v85
  %v103 = vmax.f32 %v87, 0.0
  %v104 = vmax.f32 %v88, 0.0
  %v105 = vmax.f32 %v89, 0.0
  %v106 = vmax.f32 %v90, 0.0
  %v107 = vmax.f32 %v91, 0.0
  %v108 = vmax.f32 %v92, 0.0
  %v109 = vmax.f32 %v93, 0.0
  %v110 = vmax.f32 %v94, 0.0
  %v111 = vmax.f32 %v95, 0.0
  %v112 = vmax.f32 %v96, 0.0
  %v113 = vmax.f32 %v97, 0.0
  %v114 = vmax.f32 %v98, 0.0
  %v115 = vmax.f32 %v99, 0.0
  %v116 = vmax.f32 %v100, 0.0
  %v117 = vmax.f32 %v101, 0.0
  %v118 = vmax.f32 %v102, 0.0
  %v119 = vpack.c.bf16 %v104, %v103
  %v120 = vpack.c.bf16 %v106, %v105
  %v121 = vpack.c.bf16 %v108, %v107
  %v122 = vpack.c.bf16 %v110, %v109
  %v123 = vpack.c.bf16 %v112, %v111
  %v124 = vpack.c.bf16 %v114, %v113
  %v125 = vpack.c.bf16 %v116, %v115
  %v126 = vpack.c.bf16 %v118, %v117
  %v127 = vld [vmem:[%s5] sm:$0xf]
  %v128 = vld [vmem:[%s6] sm:$0x1]
  %v130 = vlaneseq
  %v131 = vshrl.u32 %v130, 7
  %v132 = vsub.s32 0, %v131
  %v133 = vrot.slane %v128, %v132
  %vm135 = vcmask 64512
  %v137 = vsel %vm135, %v119, 0
  %v140 = vsel %vm135, %v120, 0
  %v143 = vsel %vm135, %v121, 0
  %v146 = vsel %vm135, %v122, 0
  %v149 = vsel %vm135, %v123, 0
  %v152 = vsel %vm135, %v124, 0
  %v155 = vsel %vm135, %v125, 0
  %v158 = vsel %vm135, %v126, 0
  %vm160 = vcmask 1043456
  %v162 = vsel %vm160, %v127, 0
  %164 = vmatprep.subr.bf16.mxu0 0
  %165 = vmatpush1.bf16.msra.mxu0 0
  %166 = vmatprep.subr.bf16.mxu0 0
  %167 = vmatpush1.bf16.msra.mxu0 0
  %168 = vmatprep.subr.bf16.mxu0 0
  %169 = vmatpush1.bf16.msra.mxu0 0
  %170 = vmatprep.subr.bf16.mxu0 0
  %171 = vmatpush1.bf16.msra.mxu0 0
  %172 = vmatprep.subr.bf16.mxu0 0
  %173 = vmatpush1.bf16.msra.mxu0 0
  %174 = vmatprep.subr.bf16.mxu0 0
  %175 = vmatpush1.bf16.msra.mxu0 0
  %176 = vmatprep.subr.bf16.mxu0 0
  %177 = vmatpush1.bf16.msra.mxu0 0
  %178 = vmatprep.subr.bf16.mxu0 0
  %179 = vmatpush1.bf16.msra.mxu0 %v162
  %180 = vmatprep.subr.bf16.mxu0 0
  %181 = vmatpush2.bf16.msra.mxu0 0
  %182 = vmatprep.subr.bf16.mxu0 0
  %183 = vmatpush2.bf16.msra.mxu0 0
  %184 = vmatprep.subr.bf16.mxu0 0
  %185 = vmatpush2.bf16.msra.mxu0 0
  %186 = vmatprep.subr.bf16.mxu0 0
  %187 = vmatpush2.bf16.msra.mxu0 0
  %188 = vmatprep.subr.bf16.mxu0 0
  %189 = vmatpush2.bf16.msra.mxu0 0
  %190 = vmatprep.subr.bf16.mxu0 0
  %191 = vmatpush2.bf16.msra.mxu0 0
  %192 = vmatprep.subr.bf16.mxu0 0
  %193 = vmatpush2.bf16.msra.mxu0 0
  %194 = vmatprep.subr.bf16.mxu0 0
  %195 = vmatpush2.bf16.msra.mxu0 0
  %196 = vmatprep.mubr.bf16.mxu0 0
  %197 = vmatmul.mubr.bf16.gmra.mxu0 %v137
  %v198 = vpop.f32.mrf.mxu0
  %v199 = vadd.f32 %v133, %v198
  %v200 = vpop.f32.mrf.mxu0
  %v201 = vpop.f32.mrf.mxu0
  %v202 = vadd.f32 %v133, %v201
  %v203 = vpop.f32.mrf.mxu0
  %204 = vmatprep.mubr.bf16.mxu0 0
  %205 = vmatmul.mubr.bf16.gmra.mxu0 %v140
  %v206 = vpop.f32.mrf.mxu0
  %v207 = vadd.f32 %v133, %v206
  %v208 = vpop.f32.mrf.mxu0
  %v209 = vpop.f32.mrf.mxu0
  %v210 = vadd.f32 %v133, %v209
  %v211 = vpop.f32.mrf.mxu0
  %212 = vmatprep.mubr.bf16.mxu0 0
  %213 = vmatmul.mubr.bf16.gmra.mxu0 %v143
  %v214 = vpop.f32.mrf.mxu0
  %v215 = vadd.f32 %v133, %v214
  %v216 = vpop.f32.mrf.mxu0
  %v217 = vpop.f32.mrf.mxu0
  %v218 = vadd.f32 %v133, %v217
  %v219 = vpop.f32.mrf.mxu0
  %220 = vmatprep.mubr.bf16.mxu0 0
  %221 = vmatmul.mubr.bf16.gmra.mxu0 %v146
  %v222 = vpop.f32.mrf.mxu0
  %v223 = vadd.f32 %v133, %v222
  %v224 = vpop.f32.mrf.mxu0
  %v225 = vpop.f32.mrf.mxu0
  %v226 = vadd.f32 %v133, %v225
  %v227 = vpop.f32.mrf.mxu0
  %228 = vmatprep.mubr.bf16.mxu0 0
  %229 = vmatmul.mubr.bf16.gmra.mxu0 %v149
  %v230 = vpop.f32.mrf.mxu0
  %v231 = vadd.f32 %v133, %v230
  %v232 = vpop.f32.mrf.mxu0
  %v233 = vpop.f32.mrf.mxu0
  %v234 = vadd.f32 %v133, %v233
  %v235 = vpop.f32.mrf.mxu0
  %236 = vmatprep.mubr.bf16.mxu0 0
  %237 = vmatmul.mubr.bf16.gmra.mxu0 %v152
  %v238 = vpop.f32.mrf.mxu0
  %v239 = vadd.f32 %v133, %v238
  %v240 = vpop.f32.mrf.mxu0
  %v241 = vpop.f32.mrf.mxu0
  %v242 = vadd.f32 %v133, %v241
  %v243 = vpop.f32.mrf.mxu0
  %244 = vmatprep.mubr.bf16.mxu0 0
  %245 = vmatmul.mubr.bf16.gmra.mxu0 %v155
  %v246 = vpop.f32.mrf.mxu0
  %v247 = vadd.f32 %v133, %v246
  %v248 = vpop.f32.mrf.mxu0
  %v249 = vpop.f32.mrf.mxu0
  %v250 = vadd.f32 %v133, %v249
  %v251 = vpop.f32.mrf.mxu0
  %252 = vmatprep.mubr.bf16.mxu0 0
  %253 = vmatmul.mubr.bf16.gmra.mxu0 %v158
  %v254 = vpop.f32.mrf.mxu0
  %v255 = vadd.f32 %v133, %v254
  %v256 = vpop.f32.mrf.mxu0
  %v257 = vpop.f32.mrf.mxu0
  %v258 = vadd.f32 %v133, %v257
  %v259 = vpop.f32.mrf.mxu0
  %260 = vdwg.mxu0
  %vm261 = vcmask 130048
  %262 = vst.msk [vmem:[%s7] sm:$0xff] %vm261, %v199
  %263 = vst.msk [vmem:[%s7 + $0x8] sm:$0xff] %vm261, %v202
  %264 = vst.msk [vmem:[%s7 + $0x10] sm:$0xff] %vm261, %v207
  %265 = vst.msk [vmem:[%s7 + $0x18] sm:$0xff] %vm261, %v210
  %266 = vst.msk [vmem:[%s7 + $0x20] sm:$0xff] %vm261, %v215
  %267 = vst.msk [vmem:[%s7 + $0x28] sm:$0xff] %vm261, %v218
  %268 = vst.msk [vmem:[%s7 + $0x30] sm:$0xff] %vm261, %v223
  %269 = vst.msk [vmem:[%s7 + $0x38] sm:$0xff] %vm261, %v226
  %270 = vst.msk [vmem:[%s7 + $0x40] sm:$0xff] %vm261, %v231
  %271 = vst.msk [vmem:[%s7 + $0x48] sm:$0xff] %vm261, %v234
  %272 = vst.msk [vmem:[%s7 + $0x50] sm:$0xff] %vm261, %v239
  %273 = vst.msk [vmem:[%s7 + $0x58] sm:$0xff] %vm261, %v242
  %274 = vst.msk [vmem:[%s7 + $0x60] sm:$0xff] %vm261, %v247
  %275 = vst.msk [vmem:[%s7 + $0x68] sm:$0xff] %vm261, %v250
  %276 = vst.msk [vmem:[%s7 + $0x70] sm:$0xff] %vm261, %v255
  %277 = vst.msk [vmem:[%s7 + $0x78] sm:$0xff] %vm261, %v258
  %v278 = vsel %vm261, %v199, 0.0
  %v279 = vsel %vm261, %v202, 0.0
  %v280 = vadd.f32 %v278, %v279
  %v281 = vsel %vm261, %v207, 0.0
  %v282 = vadd.f32 %v280, %v281
  %v283 = vsel %vm261, %v210, 0.0
  %v284 = vadd.f32 %v282, %v283
  %v285 = vsel %vm261, %v215, 0.0
  %v286 = vadd.f32 %v284, %v285
  %v287 = vsel %vm261, %v218, 0.0
  %v288 = vadd.f32 %v286, %v287
  %v289 = vsel %vm261, %v223, 0.0
  %v290 = vadd.f32 %v288, %v289
  %v291 = vsel %vm261, %v226, 0.0
  %v292 = vadd.f32 %v290, %v291
  %v293 = vsel %vm261, %v231, 0.0
  %v294 = vadd.f32 %v292, %v293
  %v295 = vsel %vm261, %v234, 0.0
  %v296 = vadd.f32 %v294, %v295
  %v297 = vsel %vm261, %v239, 0.0
  %v298 = vadd.f32 %v296, %v297
  %v299 = vsel %vm261, %v242, 0.0
  %v300 = vadd.f32 %v298, %v299
  %v301 = vsel %vm261, %v247, 0.0
  %v302 = vadd.f32 %v300, %v301
  %v303 = vsel %vm261, %v250, 0.0
  %v304 = vadd.f32 %v302, %v303
  %v305 = vsel %vm261, %v255, 0.0
  %v306 = vadd.f32 %v304, %v305
  %v307 = vsel %vm261, %v258, 0.0
  %v308 = vadd.f32 %v306, %v307
  %v309 = vrot.slane %v308, 4
  %v310 = vadd.f32 %v308, %v309
  %v311 = vrot.slane %v310, 2
  %v312 = vadd.f32 %v310, %v311
  %v313 = vrot.slane %v312, 1
  %v314 = vadd.f32 %v312, %v313
  %v315 = vmul.f32 %v199, %v199
  %v316 = vmul.f32 %v202, %v202
  %v317 = vmul.f32 %v207, %v207
  %v318 = vmul.f32 %v210, %v210
  %v319 = vmul.f32 %v215, %v215
  %v320 = vmul.f32 %v218, %v218
  %v321 = vmul.f32 %v223, %v223
  %v322 = vmul.f32 %v226, %v226
  %v323 = vmul.f32 %v231, %v231
  %v324 = vmul.f32 %v234, %v234
  %v325 = vmul.f32 %v239, %v239
  %v326 = vmul.f32 %v242, %v242
  %v327 = vmul.f32 %v247, %v247
  %v328 = vmul.f32 %v250, %v250
  %v329 = vmul.f32 %v255, %v255
  %v330 = vmul.f32 %v258, %v258
  %v331 = vsel %vm261, %v315, 0.0
  %v332 = vsel %vm261, %v316, 0.0
  %v333 = vadd.f32 %v331, %v332
  %v334 = vsel %vm261, %v317, 0.0
  %v335 = vadd.f32 %v333, %v334
  %v336 = vsel %vm261, %v318, 0.0
  %v337 = vadd.f32 %v335, %v336
  %v338 = vsel %vm261, %v319, 0.0
  %v339 = vadd.f32 %v337, %v338
  %v340 = vsel %vm261, %v320, 0.0
  %v341 = vadd.f32 %v339, %v340
  %v342 = vsel %vm261, %v321, 0.0
  %v343 = vadd.f32 %v341, %v342
  %v344 = vsel %vm261, %v322, 0.0
  %v345 = vadd.f32 %v343, %v344
  %v346 = vsel %vm261, %v323, 0.0
  %v347 = vadd.f32 %v345, %v346
  %v348 = vsel %vm261, %v324, 0.0
  %v349 = vadd.f32 %v347, %v348
  %v350 = vsel %vm261, %v325, 0.0
  %v351 = vadd.f32 %v349, %v350
  %v352 = vsel %vm261, %v326, 0.0
  %v353 = vadd.f32 %v351, %v352
  %v354 = vsel %vm261, %v327, 0.0
  %v355 = vadd.f32 %v353, %v354
  %v356 = vsel %vm261, %v328, 0.0
  %v357 = vadd.f32 %v355, %v356
  %v358 = vsel %vm261, %v329, 0.0
  %v359 = vadd.f32 %v357, %v358
  %v360 = vsel %vm261, %v330, 0.0
  %v361 = vadd.f32 %v359, %v360
  %v362 = vrot.slane %v361, 4
  %v363 = vadd.f32 %v361, %v362
  %v364 = vrot.slane %v363, 2
  %v365 = vadd.f32 %v363, %v364
  %v366 = vrot.slane %v365, 1
  %v367 = vadd.f32 %v365, %v366
  %p368 = scmp.eq.s32.totalorder 0, 0
  // Predicated region
  $region30: #{conv_block_forward.6} parent=0 // pred_check
    %p369 = pneg %p368
  $region31: #{conv_block_forward.6} parent=0 // pred_check_branch
    %371 = sbr.rel (%p369) target = $region33
  $region32: #{conv_block_forward.6} parent=0 // pred_region
    %vm372 = vcmask 122880
    %373 = vst.msk [vmem:[%s8] sm:$0x1] %vm372, %v314
    %374 = vst.msk [vmem:[%s9] sm:$0x1] %vm372, %v367
  $region33: #{conv_block_forward.6} parent=0 // pred_fallthru
    _
  %p375 = scmp.gt.s32.totalorder 0, 0
  // Predicated region
  $region34: #{conv_block_forward.6} parent=0 // pred_check
    %p376 = pneg %p375
  $region35: #{conv_block_forward.6} parent=0 // pred_check_branch
    %378 = sbr.rel (%p376) target = $region37
  $region36: #{conv_block_forward.6} parent=0 // pred_region
    %v379 = vld [vmem:[%s8] sm:$0x1]
    %v380 = vadd.f32 %v379, %v314
    %vm381 = vcmask 122880
    %382 = vst.msk [vmem:[%s8] sm:$0x1] %vm381, %v380
    %v383 = vld [vmem:[%s9] sm:$0x1]
    %v384 = vadd.f32 %v383, %v367
    %385 = vst.msk [vmem:[%s9] sm:$0x1] %vm381, %v384
  $region37: #{conv_block_forward.6} parent=0 // pred_fallthru
    _
  // Predicated region
  $region38: #{conv_block_forward.6} parent=0 // pred_check
    _
  $region39: #{conv_block_forward.6} parent=0 // pred_check_branch
    %387 = sbr.rel (0) target = $region41
  $region40: #{conv_block_forward.6} parent=0 // pred_region
    _
  $region41: #{conv_block_forward.6} parent=0 // pred_fallthru
    _
  // Predicated region
  $region42: #{conv_block_forward.6} parent=0 // pred_check
    _
  $region43: #{conv_block_forward.6} parent=0 // pred_check_branch
    %389 = sbr.rel (0) target = $region45
  $region44: #{conv_block_forward.6} parent=0 // pred_region
    _
  $region45: #{conv_block_forward.6} parent=0 // pred_fallthru
    _
  // Predicated region
  $region46: #{conv_block_forward.6} parent=0 // pred_check
    _
  $region47: #{conv_block_forward.6} parent=0 // pred_check_branch
    %391 = sbr.rel (0) target = $region49
  $region48: #{conv_block_forward.6} parent=0 // pred_region
    _
  $region49: #{conv_block_forward.6} parent=0 // pred_fallthru
    _
  // Predicated region
  $region50: #{conv_block_forward.6} parent=0 // pred_check
    _
  $region51: #{conv_block_forward.6} parent=0 // pred_check_branch
    %393 = sbr.rel (0) target = $region53
  $region52: #{conv_block_forward.6} parent=0 // pred_region
    _
  $region53: #{conv_block_forward.6} parent=0 // pred_fallthru
    _
  // Predicated region
  $region54: #{conv_block_forward.6} parent=0 // pred_check
    _
  $region55: #{conv_block_forward.6} parent=0 // pred_check_branch
    %395 = sbr.rel (0) target = $region57
  $region56: #{conv_block_forward.6} parent=0 // pred_region
    _
  $region57: #{conv_block_forward.6} parent=0 // pred_fallthru
    _
  // Predicated region
  $region58: #{conv_block_forward.6} parent=0 // pred_check
    _
  $region59: #{conv_block_forward.6} parent=0 // pred_check_branch
    %397 = sbr.rel (0) target = $region61
  $region60: #{conv_block_forward.6} parent=0 // pred_region
    _
  $region61: #{conv_block_forward.6} parent=0 // pred_fallthru
    _

// kernel: conv_block_forward.4
$region0: #{conv_block_forward.4}
  #allocation0 [shape = 'u32[]', space=smem, size = 0x4, offset = 0x4, fixed_abs, tag = 'smem constant byte address 0x4 - core index']
  #allocation1 [shape = 'u32[144,128]{1,0:T(1,128)}', space=vmem, size = 0x12000, scoped, tag = 'internal scratch']
  %s0 = inlined_call_operand.vmem [shape: f32[128,4], index: 0, kind: input, shape index: {}]
  %s1 = inlined_call_operand.vmem [shape: bf16[4,8], index: 1, kind: input, shape index: {}]
  %s2 = inlined_call_operand.vmem [shape: f32[1,8], index: 2, kind: input, shape index: {}]
  %s3 = inlined_call_operand.vmem [shape: bf16[4,16], index: 3, kind: input, shape index: {}]
  %s4 = inlined_call_operand.vmem [shape: f32[1,16], index: 4, kind: input, shape index: {}]
  %s5 = inlined_call_operand.vmem [shape: f32[128,8], index: 5, kind: output, shape index: {0}]
  %s6 = inlined_call_operand.vmem [shape: f32[128,16], index: 6, kind: output, shape index: {1}]
  %s7 = inlined_call_operand.vmem [shape: f32[1,8], index: 7, kind: output, shape index: {2}]
  %s8 = inlined_call_operand.vmem [shape: f32[1,8], index: 8, kind: output, shape index: {3}]
  %s9 = inlined_call_operand.vmem [shape: f32[1,16], index: 9, kind: output, shape index: {4}]
  %s10 = inlined_call_operand.vmem [shape: f32[1,16], index: 10, kind: output, shape index: {5}]
  %11 = xla_tuple %s5, %s6, %s7, %s8, %s9, %s10
  %s12 = sld [smem:[#allocation0]]
  $region78: #{conv_block_forward.4} parent=0
    _
  %s14 = ssub.s32 1, %s12
  %s15 = scalar_select 0, %s14, %s12
  // Predicated region
  $region2: #{conv_block_forward.4} parent=0 // pred_check
    _
  $region3: #{conv_block_forward.4} parent=0 // pred_check_branch
    %17 = sbr.rel (0) target = $region5
  $region4: #{conv_block_forward.4} parent=0 // pred_region
    _
  $region5: #{conv_block_forward.4} parent=0 // pred_fallthru
    _
  // Predicated region
  $region6: #{conv_block_forward.4} parent=0 // pred_check
    _
  $region7: #{conv_block_forward.4} parent=0 // pred_check_branch
    %19 = sbr.rel (0) target = $region9
  $region8: #{conv_block_forward.4} parent=0 // pred_region
    _
  $region9: #{conv_block_forward.4} parent=0 // pred_fallthru
    _
  // Predicated region
  $region10: #{conv_block_forward.4} parent=0 // pred_check
    _
  $region11: #{conv_block_forward.4} parent=0 // pred_check_branch
    %21 = sbr.rel (0) target = $region13
  $region12: #{conv_block_forward.4} parent=0 // pred_region
    _
  $region13: #{conv_block_forward.4} parent=0 // pred_fallthru
    _
  // Predicated region
  $region14: #{conv_block_forward.4} parent=0 // pred_check
    _
  $region15: #{conv_block_forward.4} parent=0 // pred_check_branch
    %23 = sbr.rel (0) target = $region17
  $region16: #{conv_block_forward.4} parent=0 // pred_region
    _
  $region17: #{conv_block_forward.4} parent=0 // pred_fallthru
    _
  // Predicated region
  $region18: #{conv_block_forward.4} parent=0 // pred_check
    _
  $region19: #{conv_block_forward.4} parent=0 // pred_check_branch
    %25 = sbr.rel (0) target = $region21
  $region20: #{conv_block_forward.4} parent=0 // pred_region
    _
  $region21: #{conv_block_forward.4} parent=0 // pred_fallthru
    _
  %v27 = vld [vmem:[%s0] sm:$0xff]
  %v28 = vld [vmem:[%s0 + $0x8] sm:$0xff]
  %v29 = vld [vmem:[%s0 + $0x10] sm:$0xff]
  %v30 = vld [vmem:[%s0 + $0x18] sm:$0xff]
  %v31 = vld [vmem:[%s0 + $0x20] sm:$0xff]
  %v32 = vld [vmem:[%s0 + $0x28] sm:$0xff]
  %v33 = vld [vmem:[%s0 + $0x30] sm:$0xff]
  %v34 = vld [vmem:[%s0 + $0x38] sm:$0xff]
  %v35 = vld [vmem:[%s0 + $0x40] sm:$0xff]
  %v36 = vld [vmem:[%s0 + $0x48] sm:$0xff]
  %v37 = vld [vmem:[%s0 + $0x50] sm:$0xff]
  %v38 = vld [vmem:[%s0 + $0x58] sm:$0xff]
  %v39 = vld [vmem:[%s0 + $0x60] sm:$0xff]
  %v40 = vld [vmem:[%s0 + $0x68] sm:$0xff]
  %v41 = vld [vmem:[%s0 + $0x70] sm:$0xff]
  %v42 = vld [vmem:[%s0 + $0x78] sm:$0xff]
  %v43 = vpack.c.bf16 %v28, %v27
  %v44 = vpack.c.bf16 %v30, %v29
  %v45 = vpack.c.bf16 %v32, %v31
  %v46 = vpack.c.bf16 %v34, %v33
  %v47 = vpack.c.bf16 %v36, %v35
  %v48 = vpack.c.bf16 %v38, %v37
  %v49 = vpack.c.bf16 %v40, %v39
  %v50 = vpack.c.bf16 %v42, %v41
  %v51 = vld [vmem:[%s1] sm:$0x3]
  %v52 = vld [vmem:[%s2] sm:$0x1]
  %v54 = vlaneseq
  %v55 = vshrl.u32 %v54, 7
  %v56 = vsub.s32 0, %v55
  %v57 = vrot.slane %v52, %v56
  %vm59 = vcmask 31744
  %v61 = vsel %vm59, %v43, 0
  %v64 = vsel %vm59, %v44, 0
  %v67 = vsel %vm59, %v45, 0
  %v70 = vsel %vm59, %v46, 0
  %v73 = vsel %vm59, %v47, 0
  %v76 = vsel %vm59, %v48, 0
  %v79 = vsel %vm59, %v49, 0
  %v82 = vsel %vm59, %v50, 0
  %vm84 = vcmask 1041408
  %v86 = vsel %vm84, %v51, 0
  %88 = vmatprep.subr.bf16.mxu0 0
  %89 = vmatpush1.bf16.msra.mxu0 0
  %90 = vmatprep.subr.bf16.mxu0 0
  %91 = vmatpush1.bf16.msra.mxu0 0
  %92 = vmatprep.subr.bf16.mxu0 0
  %93 = vmatpush1.bf16.msra.mxu0 0
  %94 = vmatprep.subr.bf16.mxu0 0
  %95 = vmatpush1.bf16.msra.mxu0 0
  %96 = vmatprep.subr.bf16.mxu0 0
  %97 = vmatpush1.bf16.msra.mxu0 0
  %98 = vmatprep.subr.bf16.mxu0 0
  %99 = vmatpush1.bf16.msra.mxu0 0
  %100 = vmatprep.subr.bf16.mxu0 0
  %101 = vmatpush1.bf16.msra.mxu0 0
  %102 = vmatprep.subr.bf16.mxu0 0
  %103 = vmatpush1.bf16.msra.mxu0 %v86
  %104 = vmatprep.subr.bf16.mxu0 0
  %105 = vmatpush2.bf16.msra.mxu0 0
  %106 = vmatprep.subr.bf16.mxu0 0
  %107 = vmatpush2.bf16.msra.mxu0 0
  %108 = vmatprep.subr.bf16.mxu0 0
  %109 = vmatpush2.bf16.msra.mxu0 0
  %110 = vmatprep.subr.bf16.mxu0 0
  %111 = vmatpush2.bf16.msra.mxu0 0
  %112 = vmatprep.subr.bf16.mxu0 0
  %113 = vmatpush2.bf16.msra.mxu0 0
  %114 = vmatprep.subr.bf16.mxu0 0
  %115 = vmatpush2.bf16.msra.mxu0 0
  %116 = vmatprep.subr.bf16.mxu0 0
  %117 = vmatpush2.bf16.msra.mxu0 0
  %118 = vmatprep.subr.bf16.mxu0 0
  %119 = vmatpush2.bf16.msra.mxu0 0
  %120 = vmatprep.mubr.bf16.mxu0 0
  %121 = vmatmul.mubr.bf16.gmra.mxu0 %v61
  %v122 = vpop.f32.mrf.mxu0
  %v123 = vadd.f32 %v57, %v122
  %v124 = vpop.f32.mrf.mxu0
  %v125 = vpop.f32.mrf.mxu0
  %v126 = vadd.f32 %v57, %v125
  %v127 = vpop.f32.mrf.mxu0
  %128 = vmatprep.mubr.bf16.mxu0 0
  %129 = vmatmul.mubr.bf16.gmra.mxu0 %v64
  %v130 = vpop.f32.mrf.mxu0
  %v131 = vadd.f32 %v57, %v130
  %v132 = vpop.f32.mrf.mxu0
  %v133 = vpop.f32.mrf.mxu0
  %v134 = vadd.f32 %v57, %v133
  %v135 = vpop.f32.mrf.mxu0
  %136 = vmatprep.mubr.bf16.mxu0 0
  %137 = vmatmul.mubr.bf16.gmra.mxu0 %v67
  %v138 = vpop.f32.mrf.mxu0
  %v139 = vadd.f32 %v57, %v138
  %v140 = vpop.f32.mrf.mxu0
  %v141 = vpop.f32.mrf.mxu0
  %v142 = vadd.f32 %v57, %v141
  %v143 = vpop.f32.mrf.mxu0
  %144 = vmatprep.mubr.bf16.mxu0 0
  %145 = vmatmul.mubr.bf16.gmra.mxu0 %v70
  %v146 = vpop.f32.mrf.mxu0
  %v147 = vadd.f32 %v57, %v146
  %v148 = vpop.f32.mrf.mxu0
  %v149 = vpop.f32.mrf.mxu0
  %v150 = vadd.f32 %v57, %v149
  %v151 = vpop.f32.mrf.mxu0
  %152 = vmatprep.mubr.bf16.mxu0 0
  %153 = vmatmul.mubr.bf16.gmra.mxu0 %v73
  %v154 = vpop.f32.mrf.mxu0
  %v155 = vadd.f32 %v57, %v154
  %v156 = vpop.f32.mrf.mxu0
  %v157 = vpop.f32.mrf.mxu0
  %v158 = vadd.f32 %v57, %v157
  %v159 = vpop.f32.mrf.mxu0
  %160 = vmatprep.mubr.bf16.mxu0 0
  %161 = vmatmul.mubr.bf16.gmra.mxu0 %v76
  %v162 = vpop.f32.mrf.mxu0
  %v163 = vadd.f32 %v57, %v162
  %v164 = vpop.f32.mrf.mxu0
  %v165 = vpop.f32.mrf.mxu0
  %v166 = vadd.f32 %v57, %v165
  %v167 = vpop.f32.mrf.mxu0
  %168 = vmatprep.mubr.bf16.mxu0 0
  %169 = vmatmul.mubr.bf16.gmra.mxu0 %v79
  %v170 = vpop.f32.mrf.mxu0
  %v171 = vadd.f32 %v57, %v170
  %v172 = vpop.f32.mrf.mxu0
  %v173 = vpop.f32.mrf.mxu0
  %v174 = vadd.f32 %v57, %v173
  %v175 = vpop.f32.mrf.mxu0
  %176 = vmatprep.mubr.bf16.mxu0 0
  %177 = vmatmul.mubr.bf16.gmra.mxu0 %v82
  %v178 = vpop.f32.mrf.mxu0
  %v179 = vadd.f32 %v57, %v178
  %v180 = vpop.f32.mrf.mxu0
  %v181 = vpop.f32.mrf.mxu0
  %v182 = vadd.f32 %v57, %v181
  %v183 = vpop.f32.mrf.mxu0
  %184 = vdwg.mxu0
  %v185 = vld [vmem:[%s3] sm:$0x3]
  %v186 = vld [vmem:[%s4] sm:$0x1]
  %v188 = vlaneseq
  %v189 = vshrl.u32 %v188, 7
  %v190 = vsub.s32 0, %v189
  %v191 = vrot.slane %v186, %v190
  %v194 = vsel %vm84, %v185, 0
  %196 = vmatprep.subr.bf16.mxu0 0
  %197 = vmatpush1.bf16.msra.mxu0 0
  %198 = vmatprep.subr.bf16.mxu0 0
  %199 = vmatpush1.bf16.msra.mxu0 0
  %200 = vmatprep.subr.bf16.mxu0 0
  %201 = vmatpush1.bf16.msra.mxu0 0
  %202 = vmatprep.subr.bf16.mxu0 0
  %203 = vmatpush1.bf16.msra.mxu0 0
  %204 = vmatprep.subr.bf16.mxu0 0
  %205 = vmatpush1.bf16.msra.mxu0 0
  %206 = vmatprep.subr.bf16.mxu0 0
  %207 = vmatpush1.bf16.msra.mxu0 0
  %208 = vmatprep.subr.bf16.mxu0 0
  %209 = vmatpush1.bf16.msra.mxu0 0
  %210 = vmatprep.subr.bf16.mxu0 0
  %211 = vmatpush1.bf16.msra.mxu0 %v194
  %212 = vmatprep.subr.bf16.mxu0 0
  %213 = vmatpush2.bf16.msra.mxu0 0
  %214 = vmatprep.subr.bf16.mxu0 0
  %215 = vmatpush2.bf16.msra.mxu0 0
  %216 = vmatprep.subr.bf16.mxu0 0
  %217 = vmatpush2.bf16.msra.mxu0 0
  %218 = vmatprep.subr.bf16.mxu0 0
  %219 = vmatpush2.bf16.msra.mxu0 0
  %220 = vmatprep.subr.bf16.mxu0 0
  %221 = vmatpush2.bf16.msra.mxu0 0
  %222 = vmatprep.subr.bf16.mxu0 0
  %223 = vmatpush2.bf16.msra.mxu0 0
  %224 = vmatprep.subr.bf16.mxu0 0
  %225 = vmatpush2.bf16.msra.mxu0 0
  %226 = vmatprep.subr.bf16.mxu0 0
  %227 = vmatpush2.bf16.msra.mxu0 0
  %228 = vmatprep.mubr.bf16.mxu0 0
  %229 = vmatmul.mubr.bf16.gmra.mxu0 %v61
  %v230 = vpop.f32.mrf.mxu0
  %v231 = vadd.f32 %v191, %v230
  %v232 = vpop.f32.mrf.mxu0
  %v233 = vpop.f32.mrf.mxu0
  %v234 = vadd.f32 %v191, %v233
  %v235 = vpop.f32.mrf.mxu0
  %236 = vmatprep.mubr.bf16.mxu0 0
  %237 = vmatmul.mubr.bf16.gmra.mxu0 %v64
  %v238 = vpop.f32.mrf.mxu0
  %v239 = vadd.f32 %v191, %v238
  %v240 = vpop.f32.mrf.mxu0
  %v241 = vpop.f32.mrf.mxu0
  %v242 = vadd.f32 %v191, %v241
  %v243 = vpop.f32.mrf.mxu0
  %244 = vmatprep.mubr.bf16.mxu0 0
  %245 = vmatmul.mubr.bf16.gmra.mxu0 %v67
  %v246 = vpop.f32.mrf.mxu0
  %v247 = vadd.f32 %v191, %v246
  %v248 = vpop.f32.mrf.mxu0
  %v249 = vpop.f32.mrf.mxu0
  %v250 = vadd.f32 %v191, %v249
  %v251 = vpop.f32.mrf.mxu0
  %252 = vmatprep.mubr.bf16.mxu0 0
  %253 = vmatmul.mubr.bf16.gmra.mxu0 %v70
  %v254 = vpop.f32.mrf.mxu0
  %v255 = vadd.f32 %v191, %v254
  %v256 = vpop.f32.mrf.mxu0
  %v257 = vpop.f32.mrf.mxu0
  %v258 = vadd.f32 %v191, %v257
  %v259 = vpop.f32.mrf.mxu0
  %260 = vmatprep.mubr.bf16.mxu0 0
  %261 = vmatmul.mubr.bf16.gmra.mxu0 %v73
  %v262 = vpop.f32.mrf.mxu0
  %v263 = vadd.f32 %v191, %v262
  %v264 = vpop.f32.mrf.mxu0
  %v265 = vpop.f32.mrf.mxu0
  %v266 = vadd.f32 %v191, %v265
  %v267 = vpop.f32.mrf.mxu0
  %268 = vmatprep.mubr.bf16.mxu0 0
  %269 = vmatmul.mubr.bf16.gmra.mxu0 %v76
  %v270 = vpop.f32.mrf.mxu0
  %v271 = vadd.f32 %v191, %v270
  %v272 = vpop.f32.mrf.mxu0
  %v273 = vpop.f32.mrf.mxu0
  %v274 = vadd.f32 %v191, %v273
  %v275 = vpop.f32.mrf.mxu0
  %276 = vmatprep.mubr.bf16.mxu0 0
  %277 = vmatmul.mubr.bf16.gmra.mxu0 %v79
  %v278 = vpop.f32.mrf.mxu0
  %v279 = vadd.f32 %v191, %v278
  %v280 = vpop.f32.mrf.mxu0
  %v281 = vpop.f32.mrf.mxu0
  %v282 = vadd.f32 %v191, %v281
  %v283 = vpop.f32.mrf.mxu0
  %284 = vmatprep.mubr.bf16.mxu0 0
  %285 = vmatmul.mubr.bf16.gmra.mxu0 %v82
  %v286 = vpop.f32.mrf.mxu0
  %v287 = vadd.f32 %v191, %v286
  %v288 = vpop.f32.mrf.mxu0
  %v289 = vpop.f32.mrf.mxu0
  %v290 = vadd.f32 %v191, %v289
  %v291 = vpop.f32.mrf.mxu0
  %292 = vdwg.mxu0
  %vm293 = vcmask 64512
  %294 = vst.msk [vmem:[%s5] sm:$0xff] %vm293, %v123
  %295 = vst.msk [vmem:[%s5 + $0x8] sm:$0xff] %vm293, %v126
  %296 = vst.msk [vmem:[%s5 + $0x10] sm:$0xff] %vm293, %v131
  %297 = vst.msk [vmem:[%s5 + $0x18] sm:$0xff] %vm293, %v134
  %298 = vst.msk [vmem:[%s5 + $0x20] sm:$0xff] %vm293, %v139
  %299 = vst.msk [vmem:[%s5 + $0x28] sm:$0xff] %vm293, %v142
  %300 = vst.msk [vmem:[%s5 + $0x30] sm:$0xff] %vm293, %v147
  %301 = vst.msk [vmem:[%s5 + $0x38] sm:$0xff] %vm293, %v150
  %302 = vst.msk [vmem:[%s5 + $0x40] sm:$0xff] %vm293, %v155
  %303 = vst.msk [vmem:[%s5 + $0x48] sm:$0xff] %vm293, %v158
  %304 = vst.msk [vmem:[%s5 + $0x50] sm:$0xff] %vm293, %v163
  %305 = vst.msk [vmem:[%s5 + $0x58] sm:$0xff] %vm293, %v166
  %306 = vst.msk [vmem:[%s5 + $0x60] sm:$0xff] %vm293, %v171
  %307 = vst.msk [vmem:[%s5 + $0x68] sm:$0xff] %vm293, %v174
  %308 = vst.msk [vmem:[%s5 + $0x70] sm:$0xff] %vm293, %v179
  %309 = vst.msk [vmem:[%s5 + $0x78] sm:$0xff] %vm293, %v182
  %vm310 = vcmask 130048
  %311 = vst.msk [vmem:[%s6] sm:$0xff] %vm310, %v231
  %312 = vst.msk [vmem:[%s6 + $0x8] sm:$0xff] %vm310, %v234
  %313 = vst.msk [vmem:[%s6 + $0x10] sm:$0xff] %vm310, %v239
  %314 = vst.msk [vmem:[%s6 + $0x18] sm:$0xff] %vm310, %v242
  %315 = vst.msk [vmem:[%s6 + $0x20] sm:$0xff] %vm310, %v247
  %316 = vst.msk [vmem:[%s6 + $0x28] sm:$0xff] %vm310, %v250
  %317 = vst.msk [vmem:[%s6 + $0x30] sm:$0xff] %vm310, %v255
  %318 = vst.msk [vmem:[%s6 + $0x38] sm:$0xff] %vm310, %v258
  %319 = vst.msk [vmem:[%s6 + $0x40] sm:$0xff] %vm310, %v263
  %320 = vst.msk [vmem:[%s6 + $0x48] sm:$0xff] %vm310, %v266
  %321 = vst.msk [vmem:[%s6 + $0x50] sm:$0xff] %vm310, %v271
  %322 = vst.msk [vmem:[%s6 + $0x58] sm:$0xff] %vm310, %v274
  %323 = vst.msk [vmem:[%s6 + $0x60] sm:$0xff] %vm310, %v279
  %324 = vst.msk [vmem:[%s6 + $0x68] sm:$0xff] %vm310, %v282
  %325 = vst.msk [vmem:[%s6 + $0x70] sm:$0xff] %vm310, %v287
  %326 = vst.msk [vmem:[%s6 + $0x78] sm:$0xff] %vm310, %v290
  %v327 = vsel %vm293, %v123, 0.0
  %v328 = vsel %vm293, %v126, 0.0
  %v329 = vadd.f32 %v327, %v328
  %v330 = vsel %vm293, %v131, 0.0
  %v331 = vadd.f32 %v329, %v330
  %v332 = vsel %vm293, %v134, 0.0
  %v333 = vadd.f32 %v331, %v332
  %v334 = vsel %vm293, %v139, 0.0
  %v335 = vadd.f32 %v333, %v334
  %v336 = vsel %vm293, %v142, 0.0
  %v337 = vadd.f32 %v335, %v336
  %v338 = vsel %vm293, %v147, 0.0
  %v339 = vadd.f32 %v337, %v338
  %v340 = vsel %vm293, %v150, 0.0
  %v341 = vadd.f32 %v339, %v340
  %v342 = vsel %vm293, %v155, 0.0
  %v343 = vadd.f32 %v341, %v342
  %v344 = vsel %vm293, %v158, 0.0
  %v345 = vadd.f32 %v343, %v344
  %v346 = vsel %vm293, %v163, 0.0
  %v347 = vadd.f32 %v345, %v346
  %v348 = vsel %vm293, %v166, 0.0
  %v349 = vadd.f32 %v347, %v348
  %v350 = vsel %vm293, %v171, 0.0
  %v351 = vadd.f32 %v349, %v350
  %v352 = vsel %vm293, %v174, 0.0
  %v353 = vadd.f32 %v351, %v352
  %v354 = vsel %vm293, %v179, 0.0
  %v355 = vadd.f32 %v353, %v354
  %v356 = vsel %vm293, %v182, 0.0
  %v357 = vadd.f32 %v355, %v356
  %v358 = vrot.slane %v357, 4
  %v359 = vadd.f32 %v357, %v358
  %v360 = vrot.slane %v359, 2
  %v361 = vadd.f32 %v359, %v360
  %v362 = vrot.slane %v361, 1
  %v363 = vadd.f32 %v361, %v362
  %v364 = vmul.f32 %v123, %v123
  %v365 = vmul.f32 %v126, %v126
  %v366 = vmul.f32 %v131, %v131
  %v367 = vmul.f32 %v134, %v134
  %v368 = vmul.f32 %v139, %v139
  %v369 = vmul.f32 %v142, %v142
  %v370 = vmul.f32 %v147, %v147
  %v371 = vmul.f32 %v150, %v150
  %v372 = vmul.f32 %v155, %v155
  %v373 = vmul.f32 %v158, %v158
  %v374 = vmul.f32 %v163, %v163
  %v375 = vmul.f32 %v166, %v166
  %v376 = vmul.f32 %v171, %v171
  %v377 = vmul.f32 %v174, %v174
  %v378 = vmul.f32 %v179, %v179
  %v379 = vmul.f32 %v182, %v182
  %v380 = vsel %vm293, %v364, 0.0
  %v381 = vsel %vm293, %v365, 0.0
  %v382 = vadd.f32 %v380, %v381
  %v383 = vsel %vm293, %v366, 0.0
  %v384 = vadd.f32 %v382, %v383
  %v385 = vsel %vm293, %v367, 0.0
  %v386 = vadd.f32 %v384, %v385
  %v387 = vsel %vm293, %v368, 0.0
  %v388 = vadd.f32 %v386, %v387
  %v389 = vsel %vm293, %v369, 0.0
  %v390 = vadd.f32 %v388, %v389
  %v391 = vsel %vm293, %v370, 0.0
  %v392 = vadd.f32 %v390, %v391
  %v393 = vsel %vm293, %v371, 0.0
  %v394 = vadd.f32 %v392, %v393
  %v395 = vsel %vm293, %v372, 0.0
  %v396 = vadd.f32 %v394, %v395
  %v397 = vsel %vm293, %v373, 0.0
  %v398 = vadd.f32 %v396, %v397
  %v399 = vsel %vm293, %v374, 0.0
  %v400 = vadd.f32 %v398, %v399
  %v401 = vsel %vm293, %v375, 0.0
  %v402 = vadd.f32 %v400, %v401
  %v403 = vsel %vm293, %v376, 0.0
  %v404 = vadd.f32 %v402, %v403
  %v405 = vsel %vm293, %v377, 0.0
  %v406 = vadd.f32 %v404, %v405
  %v407 = vsel %vm293, %v378, 0.0
  %v408 = vadd.f32 %v406, %v407
  %v409 = vsel %vm293, %v379, 0.0
  %v410 = vadd.f32 %v408, %v409
  %v411 = vrot.slane %v410, 4
  %v412 = vadd.f32 %v410, %v411
  %v413 = vrot.slane %v412, 2
  %v414 = vadd.f32 %v412, %v413
  %v415 = vrot.slane %v414, 1
  %v416 = vadd.f32 %v414, %v415
  %v417 = vsel %vm310, %v231, 0.0
  %v418 = vsel %vm310, %v234, 0.0
  %v419 = vadd.f32 %v417, %v418
  %v420 = vsel %vm310, %v239, 0.0
  %v421 = vadd.f32 %v419, %v420
  %v422 = vsel %vm310, %v242, 0.0
  %v423 = vadd.f32 %v421, %v422
  %v424 = vsel %vm310, %v247, 0.0
  %v425 = vadd.f32 %v423, %v424
  %v426 = vsel %vm310, %v250, 0.0
  %v427 = vadd.f32 %v425, %v426
  %v428 = vsel %vm310, %v255, 0.0
  %v429 = vadd.f32 %v427, %v428
  %v430 = vsel %vm310, %v258, 0.0
  %v431 = vadd.f32 %v429, %v430
  %v432 = vsel %vm310, %v263, 0.0
  %v433 = vadd.f32 %v431, %v432
  %v434 = vsel %vm310, %v266, 0.0
  %v435 = vadd.f32 %v433, %v434
  %v436 = vsel %vm310, %v271, 0.0
  %v437 = vadd.f32 %v435, %v436
  %v438 = vsel %vm310, %v274, 0.0
  %v439 = vadd.f32 %v437, %v438
  %v440 = vsel %vm310, %v279, 0.0
  %v441 = vadd.f32 %v439, %v440
  %v442 = vsel %vm310, %v282, 0.0
  %v443 = vadd.f32 %v441, %v442
  %v444 = vsel %vm310, %v287, 0.0
  %v445 = vadd.f32 %v443, %v444
  %v446 = vsel %vm310, %v290, 0.0
  %v447 = vadd.f32 %v445, %v446
  %v448 = vrot.slane %v447, 4
  %v449 = vadd.f32 %v447, %v448
  %v450 = vrot.slane %v449, 2
  %v451 = vadd.f32 %v449, %v450
  %v452 = vrot.slane %v451, 1
  %v453 = vadd.f32 %v451, %v452
  %v454 = vmul.f32 %v231, %v231
  %v455 = vmul.f32 %v234, %v234
  %v456 = vmul.f32 %v239, %v239
  %v457 = vmul.f32 %v242, %v242
  %v458 = vmul.f32 %v247, %v247
  %v459 = vmul.f32 %v250, %v250
  %v460 = vmul.f32 %v255, %v255
  %v461 = vmul.f32 %v258, %v258
  %v462 = vmul.f32 %v263, %v263
  %v463 = vmul.f32 %v266, %v266
  %v464 = vmul.f32 %v271, %v271
  %v465 = vmul.f32 %v274, %v274
  %v466 = vmul.f32 %v279, %v279
  %v467 = vmul.f32 %v282, %v282
  %v468 = vmul.f32 %v287, %v287
  %v469 = vmul.f32 %v290, %v290
  %v470 = vsel %vm310, %v454, 0.0
  %v471 = vsel %vm310, %v455, 0.0
  %v472 = vadd.f32 %v470, %v471
  %v473 = vsel %vm310, %v456, 0.0
  %v474 = vadd.f32 %v472, %v473
  %v475 = vsel %vm310, %v457, 0.0
  %v476 = vadd.f32 %v474, %v475
  %v477 = vsel %vm310, %v458, 0.0
  %v478 = vadd.f32 %v476, %v477
  %v479 = vsel %vm310, %v459, 0.0
  %v480 = vadd.f32 %v478, %v479
  %v481 = vsel %vm310, %v460, 0.0
  %v482 = vadd.f32 %v480, %v481
  %v483 = vsel %vm310, %v461, 0.0
  %v484 = vadd.f32 %v482, %v483
  %v485 = vsel %vm310, %v462, 0.0
  %v486 = vadd.f32 %v484, %v485
  %v487 = vsel %vm310, %v463, 0.0
  %v488 = vadd.f32 %v486, %v487
  %v489 = vsel %vm310, %v464, 0.0
  %v490 = vadd.f32 %v488, %v489
  %v491 = vsel %vm310, %v465, 0.0
  %v492 = vadd.f32 %v490, %v491
  %v493 = vsel %vm310, %v466, 0.0
  %v494 = vadd.f32 %v492, %v493
  %v495 = vsel %vm310, %v467, 0.0
  %v496 = vadd.f32 %v494, %v495
  %v497 = vsel %vm310, %v468, 0.0
  %v498 = vadd.f32 %v496, %v497
  %v499 = vsel %vm310, %v469, 0.0
  %v500 = vadd.f32 %v498, %v499
  %v501 = vrot.slane %v500, 4
  %v502 = vadd.f32 %v500, %v501
  %v503 = vrot.slane %v502, 2
  %v504 = vadd.f32 %v502, %v503
  %v505 = vrot.slane %v504, 1
  %v506 = vadd.f32 %v504, %v505
  %p507 = scmp.eq.s32.totalorder 0, 0
  // Predicated region
  $region22: #{conv_block_forward.4} parent=0 // pred_check
    %p508 = pneg %p507
  $region23: #{conv_block_forward.4} parent=0 // pred_check_branch
    %510 = sbr.rel (%p508) target = $region25
  $region24: #{conv_block_forward.4} parent=0 // pred_region
    %vm511 = vcmask 57344
    %512 = vst.msk [vmem:[%s7] sm:$0x1] %vm511, %v363
    %513 = vst.msk [vmem:[%s8] sm:$0x1] %vm511, %v416
    %vm514 = vcmask 122880
    %515 = vst.msk [vmem:[%s9] sm:$0x1] %vm514, %v453
    %516 = vst.msk [vmem:[%s10] sm:$0x1] %vm514, %v506
  $region25: #{conv_block_forward.4} parent=0 // pred_fallthru
    _
  %p517 = scmp.gt.s32.totalorder 0, 0
  // Predicated region
  $region26: #{conv_block_forward.4} parent=0 // pred_check
    %p518 = pneg %p517
  $region27: #{conv_block_forward.4} parent=0 // pred_check_branch
    %520 = sbr.rel (%p518) target = $region29
  $region28: #{conv_block_forward.4} parent=0 // pred_region
    %v521 = vld [vmem:[%s7] sm:$0x1]
    %v522 = vadd.f32 %v521, %v363
    %vm523 = vcmask 57344
    %524 = vst.msk [vmem:[%s7] sm:$0x1] %vm523, %v522
    %v525 = vld [vmem:[%s8] sm:$0x1]
    %v526 = vadd.f32 %v525, %v416
    %527 = vst.msk [vmem:[%s8] sm:$0x1] %vm523, %v526
    %v528 = vld [vmem:[%s9] sm:$0x1]
    %v529 = vadd.f32 %v528, %v453
    %vm530 = vcmask 122880
    %531 = vst.msk [vmem:[%s9] sm:$0x1] %vm530, %v529
    %v532 = vld [vmem:[%s10] sm:$0x1]
    %v533 = vadd.f32 %v532, %v506
    %534 = vst.msk [vmem:[%s10] sm:$0x1] %vm530, %v533
  $region29: #{conv_block_forward.4} parent=0 // pred_fallthru
    _
  // Predicated region
  $region30: #{conv_block_forward.4} parent=0 // pred_check
    _
  $region31: #{conv_block_forward.4} parent=0 // pred_check_branch
    %536 = sbr.rel (0) target = $region33
  $region32: #{conv_block_forward.4} parent=0 // pred_region
    _
  $region33: #{conv_block_forward.4} parent=0 // pred_fallthru
    _
  // Predicated region
  $region34: #{conv_block_forward.4} parent=0 // pred_check
    _
  $region35: #{conv_block_forward.4} parent=0 // pred_check_branch
    %538 = sbr.rel (0) target = $region37
  $region36: #{conv_block_forward.4} parent=0 // pred_region
    _
  $region37: #{conv_block_forward.4} parent=0 // pred_fallthru
    _
  // Predicated region
  $region38: #{conv_block_forward.4} parent=0 // pred_check
    _
  $region39: #{conv_block_forward.4} parent=0 // pred_check_branch
    %540 = sbr.rel (0) target = $region41
  $region40: #{conv_block_forward.4} parent=0 // pred_region
    _
  $region41: #{conv_block_forward.4} parent=0 // pred_fallthru
    _
  // Predicated region
  $region42: #{conv_block_forward.4} parent=0 // pred_check
    _
  $region43: #{conv_block_forward.4} parent=0 // pred_check_branch
    %542 = sbr.rel (0) target = $region45
  $region44: #{conv_block_forward.4} parent=0 // pred_region
    _
  $region45: #{conv_block_forward.4} parent=0 // pred_fallthru
    _
  // Predicated region
  $region46: #{conv_block_forward.4} parent=0 // pred_check
    _
  $region47: #{conv_block_forward.4} parent=0 // pred_check_branch
    %544 = sbr.rel (0) target = $region49
  $region48: #{conv_block_forward.4} parent=0 // pred_region
    _
  $region49: #{conv_block_forward.4} parent=0 // pred_fallthru
    _
  // Predicated region
  $region50: #{conv_block_forward.4} parent=0 // pred_check
    _
  $region51: #{conv_block_forward.4} parent=0 // pred_check_branch
    %546 = sbr.rel (0) target = $region53
  $region52: #{conv_block_forward.4} parent=0 // pred_region
    _
  $region53: #{conv_block_forward.4} parent=0 // pred_fallthru
    _
  // Predicated region
  $region54: #{conv_block_forward.4} parent=0 // pred_check
    _
  $region55: #{conv_block_forward.4} parent=0 // pred_check_branch
    %548 = sbr.rel (0) target = $region57
  $region56: #{conv_block_forward.4} parent=0 // pred_region
    _
  $region57: #{conv_block_forward.4} parent=0 // pred_fallthru
    _
  // Predicated region
  $region58: #{conv_block_forward.4} parent=0 // pred_check
    _
  $region59: #{conv_block_forward.4} parent=0 // pred_check_branch
    %550 = sbr.rel (0) target = $region61
  $region60: #{conv_block_forward.4} parent=0 // pred_region
    _
  $region61: #{conv_block_forward.4} parent=0 // pred_fallthru
    _
  // Predicated region
  $region62: #{conv_block_forward.4} parent=0 // pred_check
    _
  $region63: #{conv_block_forward.4} parent=0 // pred_check_branch
    %552 = sbr.rel (0) target = $region65
  $region64: #{conv_block_forward.4} parent=0 // pred_region
    _
  $region65: #{conv_block_forward.4} parent=0 // pred_fallthru
    _
  // Predicated region
  $region66: #{conv_block_forward.4} parent=0 // pred_check
    _
  $region67: #{conv_block_forward.4} parent=0 // pred_check_branch
    %554 = sbr.rel (0) target = $region69
  $region68: #{conv_block_forward.4} parent=0 // pred_region
    _
  $region69: #{conv_block_forward.4} parent=0 // pred_fallthru
    _
  // Predicated region
  $region70: #{conv_block_forward.4} parent=0 // pred_check
    _
  $region71: #{conv_block_forward.4} parent=0 // pred_check_branch
    %556 = sbr.rel (0) target = $region73
  $region72: #{conv_block_forward.4} parent=0 // pred_region
    _
  $region73: #{conv_block_forward.4} parent=0 // pred_fallthru
    _
  // Predicated region
  $region74: #{conv_block_forward.4} parent=0 // pred_check
    _
  $region75: #{conv_block_forward.4} parent=0 // pred_check_branch
    %558 = sbr.rel (0) target = $region77
  $region76: #{conv_block_forward.4} parent=0 // pred_region
    _
  $region77: #{conv_block_forward.4} parent=0 // pred_fallthru
    _

// kernel: conv_block_forward.5
$region0: #{conv_block_forward.5}
  #allocation0 [shape = 'u32[]', space=smem, size = 0x4, offset = 0x4, fixed_abs, tag = 'smem constant byte address 0x4 - core index']
  #allocation1 [shape = 'u32[144,128]{1,0:T(1,128)}', space=vmem, size = 0x12000, scoped, tag = 'internal scratch']
  #allocation2 [shape = 'f32[10,10,8]{2,1,0:T(8,128)}', space=vmem, size = 0x14000, scoped, tag = 'scratch operand']
  %s0 = inlined_call_operand.vmem [shape: f32[2,64,8], index: 0, kind: input, shape index: {}]
  %s1 = inlined_call_operand.vmem [shape: f32[1,8], index: 1, kind: input, shape index: {}]
  %s2 = inlined_call_operand.vmem [shape: f32[1,8], index: 2, kind: input, shape index: {}]
  %s3 = inlined_call_operand.vmem [shape: f32[1,8], index: 3, kind: input, shape index: {}]
  %s4 = inlined_call_operand.vmem [shape: f32[1,8], index: 4, kind: input, shape index: {}]
  %s5 = inlined_call_operand.vmem [shape: bf16[9,8,8], index: 5, kind: input, shape index: {}]
  %s6 = inlined_call_operand.vmem [shape: f32[1,8], index: 6, kind: input, shape index: {}]
  %s7 = inlined_call_operand.vmem [shape: f32[2,64,8], index: 7, kind: output, shape index: {0}]
  %s8 = inlined_call_operand.vmem [shape: f32[1,8], index: 8, kind: output, shape index: {1}]
  %s9 = inlined_call_operand.vmem [shape: f32[1,8], index: 9, kind: output, shape index: {2}]
  %10 = xla_tuple %s7, %s8, %s9
  %s11 = sld [smem:[#allocation0]]
  $region85: #{conv_block_forward.5} parent=0
    _
  %s13 = ssub.s32 1, %s11
  %s14 = scalar_select 0, %s13, %s11
  loop: start=0, step=1, limit=4
  $region2: #{conv_block_forward.5} parent=0 // loop_pre_header
    _
  $region3: #{conv_block_forward.5} parent=0 // loop_header
    %s16 = sphi 0, %s20
    %p17 = scmp.ge.s32.totalorder %s16, 4
    %s26 = sphi 0, %s28
    %s29 = sphi 0, %s26
    %s30 = sphi 0, %s29
    %s46 = sphi 0, %s30
    %s50 = sphi 0, %s50
    %s52 = sphi 0, %s50
    %s53 = sphi 0, %s52
    %s67 = sphi 0, %s53
    %s71 = sphi 0, %s71
    %s73 = sphi 0, %s71
    %s74 = sphi 0, %s73
    %s88 = sphi 0, %s74
    %s92 = sphi 0, %s92
    %s94 = sphi 0, %s92
    %s95 = sphi 0, %s94
    %s109 = sphi 0, %s95
    %s113 = sphi 0, %s113
    %s115 = sphi 0, %s113
    %s116 = sphi 0, %s115
    %s130 = sphi 0, %s116
    %s134 = sphi 0, %s134
    %s136 = sphi 0, %s134
    %s137 = sphi 0, %s136
    %s151 = sphi 0, %s137
    %s155 = sphi 0, %s155
    %s157 = sphi 0, %s155
    %s158 = sphi 0, %s157
    %s172 = sphi 0, %s158
    %s178 = sphi 0, %s180
    %s181 = sphi 0, %s178
    %s182 = sphi 0, %s181
    %s198 = sphi 0, %s182
    %s202 = sphi 0, %s202
    %s204 = sphi 0, %s202
    %s205 = sphi 0, %s204
    %s219 = sphi 0, %s205
    %s223 = sphi 0, %s223
    %s225 = sphi 0, %s223
    %s226 = sphi 0, %s225
    %s240 = sphi 0, %s226
  $region4: #{conv_block_forward.5} parent=0 // loop_header_branch
    %19 = sbr.rel (%p17) target = $region8
  $region5: #{conv_block_forward.5} parent=0 // loop_body
    %s21 = ssub.s32 %s16, 1
    %s22 = ssub.s32 %s16, 2
    %s23 = sadd.s32 %s16, 1
    %s24 = ssub.s32 %s16, %s23
    %p25 = scmp.eq.s32.totalorder %s24, 0
    %s27 = sadd.s32 %s26, 1
    %s28 = scalar_select %p25, %s26, %s27
    %p31 = pneg %p25
    %p32 = scmp.eq.s32.totalorder %s16, 1
    %p33 = por %p31, %p32
    %p34 = scmp.ne.s32.totalorder %s26, %s29
    %p35 = scmp.eq.s32.totalorder %s16, 0
    %p36 = por %p34, %p35
    %p37 = scmp.ne.s32.totalorder %s26, %s29
    %p38 = scmp.eq.s32.totalorder %s21, 1
    %p39 = por %p37, %p38
    %p40 = scmp.ne.s32.totalorder %s29, %s30
    %p41 = scmp.eq.s32.totalorder %s21, 0
    %p42 = por %p40, %p41
    %p43 = scmp.ne.s32.totalorder %s29, %s30
    %p44 = scmp.eq.s32.totalorder %s22, 1
    %p45 = por %p43, %p44
    %p47 = scmp.ne.s32.totalorder %s30, %s46
    %p48 = scmp.eq.s32.totalorder %s22, 0
    %p49 = por %p47, %p48
    %s51 = sadd.s32 %s50, 1
    %p54 = scmp.eq.s32.totalorder %s16, 1
    %p55 = scmp.ne.s32.totalorder %s50, %s52
    %p56 = scmp.eq.s32.totalorder %s16, 0
    %p57 = por %p55, %p56
    %p58 = scmp.ne.s32.totalorder %s50, %s52
    %p59 = scmp.eq.s32.totalorder %s21, 1
    %p60 = por %p58, %p59
    %p61 = scmp.ne.s32.totalorder %s52, %s53
    %p62 = scmp.eq.s32.totalorder %s21, 0
    %p63 = por %p61, %p62
    %p64 = scmp.ne.s32.totalorder %s52, %s53
    %p65 = scmp.eq.s32.totalorder %s22, 1
    %p66 = por %p64, %p65
    %p68 = scmp.ne.s32.totalorder %s53, %s67
    %p69 = scmp.eq.s32.totalorder %s22, 0
    %p70 = por %p68, %p69
    %s72 = sadd.s32 %s71, 1
    %p75 = scmp.eq.s32.totalorder %s16, 1
    %p76 = scmp.ne.s32.totalorder %s71, %s73
    %p77 = scmp.eq.s32.totalorder %s16, 0
    %p78 = por %p76, %p77
    %p79 = scmp.ne.s32.totalorder %s71, %s73
    %p80 = scmp.eq.s32.totalorder %s21, 1
    %p81 = por %p79, %p80
    %p82 = scmp.ne.s32.totalorder %s73, %s74
    %p83 = scmp.eq.s32.totalorder %s21, 0
    %p84 = por %p82, %p83
    %p85 = scmp.ne.s32.totalorder %s73, %s74
    %p86 = scmp.eq.s32.totalorder %s22, 1
    %p87 = por %p85, %p86
    %p89 = scmp.ne.s32.totalorder %s74, %s88
    %p90 = scmp.eq.s32.totalorder %s22, 0
    %p91 = por %p89, %p90
    %s93 = sadd.s32 %s92, 1
    %p96 = scmp.eq.s32.totalorder %s16, 1
    %p97 = scmp.ne.s32.totalorder %s92, %s94
    %p98 = scmp.eq.s32.totalorder %s16, 0
    %p99 = por %p97, %p98
    %p100 = scmp.ne.s32.totalorder %s92, %s94
    %p101 = scmp.eq.s32.totalorder %s21, 1
    %p102 = por %p100, %p101
    %p103 = scmp.ne.s32.totalorder %s94, %s95
    %p104 = scmp.eq.s32.totalorder %s21, 0
    %p105 = por %p103, %p104
    %p106 = scmp.ne.s32.totalorder %s94, %s95
    %p107 = scmp.eq.s32.totalorder %s22, 1
    %p108 = por %p106, %p107
    %p110 = scmp.ne.s32.totalorder %s95, %s109
    %p111 = scmp.eq.s32.totalorder %s22, 0
    %p112 = por %p110, %p111
    %s114 = sadd.s32 %s113, 1
    %p117 = scmp.eq.s32.totalorder %s16, 1
    %p118 = scmp.ne.s32.totalorder %s113, %s115
    %p119 = scmp.eq.s32.totalorder %s16, 0
    %p120 = por %p118, %p119
    %p121 = scmp.ne.s32.totalorder %s113, %s115
    %p122 = scmp.eq.s32.totalorder %s21, 1
    %p123 = por %p121, %p122
    %p124 = scmp.ne.s32.totalorder %s115, %s116
    %p125 = scmp.eq.s32.totalorder %s21, 0
    %p126 = por %p124, %p125
    %p127 = scmp.ne.s32.totalorder %s115, %s116
    %p128 = scmp.eq.s32.totalorder %s22, 1
    %p129 = por %p127, %p128
    %p131 = scmp.ne.s32.totalorder %s116, %s130
    %p132 = scmp.eq.s32.totalorder %s22, 0
    %p133 = por %p131, %p132
    %s135 = sadd.s32 %s134, 1
    %p138 = scmp.eq.s32.totalorder %s16, 1
    %p139 = scmp.ne.s32.totalorder %s134, %s136
    %p140 = scmp.eq.s32.totalorder %s16, 0
    %p141 = por %p139, %p140
    %p142 = scmp.ne.s32.totalorder %s134, %s136
    %p143 = scmp.eq.s32.totalorder %s21, 1
    %p144 = por %p142, %p143
    %p145 = scmp.ne.s32.totalorder %s136, %s137
    %p146 = scmp.eq.s32.totalorder %s21, 0
    %p147 = por %p145, %p146
    %p148 = scmp.ne.s32.totalorder %s136, %s137
    %p149 = scmp.eq.s32.totalorder %s22, 1
    %p150 = por %p148, %p149
    %p152 = scmp.ne.s32.totalorder %s137, %s151
    %p153 = scmp.eq.s32.totalorder %s22, 0
    %p154 = por %p152, %p153
    %s156 = sadd.s32 %s155, 1
    %p159 = scmp.eq.s32.totalorder %s16, 1
    %p160 = scmp.ne.s32.totalorder %s155, %s157
    %p161 = scmp.eq.s32.totalorder %s16, 0
    %p162 = por %p160, %p161
    %p163 = scmp.ne.s32.totalorder %s155, %s157
    %p164 = scmp.eq.s32.totalorder %s21, 1
    %p165 = por %p163, %p164
    %p166 = scmp.ne.s32.totalorder %s157, %s158
    %p167 = scmp.eq.s32.totalorder %s21, 0
    %p168 = por %p166, %p167
    %p169 = scmp.ne.s32.totalorder %s157, %s158
    %p170 = scmp.eq.s32.totalorder %s22, 1
    %p171 = por %p169, %p170
    %p173 = scmp.ne.s32.totalorder %s158, %s172
    %p174 = scmp.eq.s32.totalorder %s22, 0
    %p175 = por %p173, %p174
    %s176 = ssub.s32 %s16, %s23
    %p177 = scmp.eq.s32.totalorder %s176, 0
    %s179 = sadd.s32 %s178, 1
    %s180 = scalar_select %p177, %s178, %s179
    %p183 = pneg %p177
    %p184 = scmp.eq.s32.totalorder %s16, 1
    %p185 = por %p183, %p184
    %p186 = scmp.ne.s32.totalorder %s178, %s181
    %p187 = scmp.eq.s32.totalorder %s16, 0
    %p188 = por %p186, %p187
    %p189 = scmp.ne.s32.totalorder %s178, %s181
    %p190 = scmp.eq.s32.totalorder %s21, 1
    %p191 = por %p189, %p190
    %p192 = scmp.ne.s32.totalorder %s181, %s182
    %p193 = scmp.eq.s32.totalorder %s21, 0
    %p194 = por %p192, %p193
    %p195 = scmp.ne.s32.totalorder %s181, %s182
    %p196 = scmp.eq.s32.totalorder %s22, 1
    %p197 = por %p195, %p196
    %p199 = scmp.ne.s32.totalorder %s182, %s198
    %p200 = scmp.eq.s32.totalorder %s22, 0
    %p201 = por %p199, %p200
    %s203 = sadd.s32 %s202, 1
    %p206 = scmp.eq.s32.totalorder %s16, 1
    %p207 = scmp.ne.s32.totalorder %s202, %s204
    %p208 = scmp.eq.s32.totalorder %s16, 0
    %p209 = por %p207, %p208
    %p210 = scmp.ne.s32.totalorder %s202, %s204
    %p211 = scmp.eq.s32.totalorder %s21, 1
    %p212 = por %p210, %p211
    %p213 = scmp.ne.s32.totalorder %s204, %s205
    %p214 = scmp.eq.s32.totalorder %s21, 0
    %p215 = por %p213, %p214
    %p216 = scmp.ne.s32.totalorder %s204, %s205
    %p217 = scmp.eq.s32.totalorder %s22, 1
    %p218 = por %p216, %p217
    %p220 = scmp.ne.s32.totalorder %s205, %s219
    %p221 = scmp.eq.s32.totalorder %s22, 0
    %p222 = por %p220, %p221
    %s224 = sadd.s32 %s223, 1
    %p227 = scmp.eq.s32.totalorder %s16, 1
    %p228 = scmp.ne.s32.totalorder %s223, %s225
    %p229 = scmp.eq.s32.totalorder %s16, 0
    %p230 = por %p228, %p229
    %p231 = scmp.ne.s32.totalorder %s223, %s225
    %p232 = scmp.eq.s32.totalorder %s21, 1
    %p233 = por %p231, %p232
    %p234 = scmp.ne.s32.totalorder %s225, %s226
    %p235 = scmp.eq.s32.totalorder %s21, 0
    %p236 = por %p234, %p235
    %p237 = scmp.ne.s32.totalorder %s225, %s226
    %p238 = scmp.eq.s32.totalorder %s22, 1
    %p239 = por %p237, %p238
    %p241 = scmp.ne.s32.totalorder %s226, %s240
    %p242 = scmp.eq.s32.totalorder %s22, 0
    %p243 = por %p241, %p242
    %p244 = scmp.le.s32.totalorder 1, %s16
    %p245 = scmp.lt.s32.totalorder %s16, 3
    %p246 = pnand %p244, %p245
    %p247 = pneg %p246
    // Predicated region
    $region9: #{conv_block_forward.5} parent=5 // pred_check
      _
    $region10: #{conv_block_forward.5} parent=5 // pred_check_branch
      %249 = sbr.rel (%p246) target = $region12
    $region11: #{conv_block_forward.5} parent=5 // pred_region
      %s250 = ssub.s32 %s16, 1
      // Predicated region
      $region13: #{conv_block_forward.5} parent=11 // pred_check
        %p251 = pneg %p63
      $region14: #{conv_block_forward.5} parent=11 // pred_check_branch
        %253 = sbr.rel (%p251) target = $region16
      $region15: #{conv_block_forward.5} parent=11 // pred_region
        _
      $region16: #{conv_block_forward.5} parent=11 // pred_fallthru
        _
      // Predicated region
      $region17: #{conv_block_forward.5} parent=11 // pred_check
        %p254 = pneg %p84
      $region18: #{conv_block_forward.5} parent=11 // pred_check_branch
        %256 = sbr.rel (%p254) target = $region20
      $region19: #{conv_block_forward.5} parent=11 // pred_region
        _
      $region20: #{conv_block_forward.5} parent=11 // pred_fallthru
        _
      // Predicated region
      $region21: #{conv_block_forward.5} parent=11 // pred_check
        %p257 = pneg %p105
      $region22: #{conv_block_forward.5} parent=11 // pred_check_branch
        %259 = sbr.rel (%p257) target = $region24
      $region23: #{conv_block_forward.5} parent=11 // pred_region
        _
      $region24: #{conv_block_forward.5} parent=11 // pred_fallthru
        _
      // Predicated region
      $region25: #{conv_block_forward.5} parent=11 // pred_check
        %p260 = pneg %p126
      $region26: #{conv_block_forward.5} parent=11 // pred_check_branch
        %262 = sbr.rel (%p260) target = $region28
      $region27: #{conv_block_forward.5} parent=11 // pred_region
        _
      $region28: #{conv_block_forward.5} parent=11 // pred_fallthru
        _
      // Predicated region
      $region29: #{conv_block_forward.5} parent=11 // pred_check
        %p263 = pneg %p147
      $region30: #{conv_block_forward.5} parent=11 // pred_check_branch
        %265 = sbr.rel (%p263) target = $region32
      $region31: #{conv_block_forward.5} parent=11 // pred_region
        _
      $region32: #{conv_block_forward.5} parent=11 // pred_fallthru
        _
      // Predicated region
      $region33: #{conv_block_forward.5} parent=11 // pred_check
        %p266 = pneg %p168
      $region34: #{conv_block_forward.5} parent=11 // pred_check_branch
        %268 = sbr.rel (%p266) target = $region36
      $region35: #{conv_block_forward.5} parent=11 // pred_region
        _
      $region36: #{conv_block_forward.5} parent=11 // pred_fallthru
        _
    $region12: #{conv_block_forward.5} parent=5 // pred_fallthru
      _
    %p269 = scmp.lt.s32.totalorder %s16, 2
    // Predicated region
    $region37: #{conv_block_forward.5} parent=5 // pred_check
      %p270 = pneg %p269
    $region38: #{conv_block_forward.5} parent=5 // pred_check_branch
      %272 = sbr.rel (%p270) target = $region40
    $region39: #{conv_block_forward.5} parent=5 // pred_region
      // Predicated region
      $region41: #{conv_block_forward.5} parent=39 // pred_check
        %p273 = pneg %p36
      $region42: #{conv_block_forward.5} parent=39 // pred_check_branch
        %275 = sbr.rel (%p273) target = $region44
      $region43: #{conv_block_forward.5} parent=39 // pred_region
        %p276 = scmp.lt.s32.totalorder %s16, 1
        %s277 = scalar_select %p276, %s16, 1
        %s278 = smul.addr %s277, 8
        %s279 = smul.addr %s278, 8
        %s280 = scalar_lea.vmem %s0, %s279
      $region44: #{conv_block_forward.5} parent=39 // pred_fallthru
        _
    $region40: #{conv_block_forward.5} parent=5 // pred_fallthru
      _
    %p281 = scmp.le.s32.totalorder 1, %s16
    %p282 = scmp.lt.s32.totalorder %s16, 3
    %p283 = pnand %p281, %p282
    %p284 = pneg %p283
    // Predicated region
    $region45: #{conv_block_forward.5} parent=5 // pred_check
      _
    $region46: #{conv_block_forward.5} parent=5 // pred_check_branch
      %286 = sbr.rel (%p283) target = $region48
    $region47: #{conv_block_forward.5} parent=5 // pred_region
      %s287 = ssub.s32 %s16, 1
      %p288 = scmp.lt.s32.totalorder %s21, 1
      %s289 = scalar_select %p288, %s21, 1
      %s290 = smul.addr %s289, 8
      %s291 = smul.addr %s290, 8
      %s292 = scalar_lea.vmem %s0, %s291
      %p293 = pneg %p42
      %p294 = pneg %p39
      %p295 = pneg %p63
      %p296 = pneg %p60
      %p297 = pneg %p84
      %p298 = pneg %p81
      %p299 = pneg %p105
      %p300 = pneg %p102
      %p301 = pneg %p126
      %p302 = pneg %p123
      %p303 = pneg %p147
      %p304 = pneg %p144
      %p305 = pneg %p168
      %p306 = pneg %p165
      %p307 = pneg %p194
      %p308 = pneg %p191
      %p309 = scmp.lt.s32.totalorder %s21, 1
      %s310 = scalar_select %p309, %s21, 1
      %s311 = smul.addr %s310, 8
      %s312 = smul.addr %s311, 8
      %s313 = scalar_lea.vmem %s7, %s312
      %p314 = pneg %p215
      %p315 = pneg %p212
      %p316 = pneg %p236
      %p317 = pneg %p233
      %p318 = scmp.lt.s32.totalorder %s21, 1
      %s319 = scalar_select %p318, %s21, 1
      %s320 = smul.addr %s319, 8
      %s321 = smul.addr %s320, 8
      %s322 = scalar_lea.vmem %s0, %s321
      %p323 = scmp.lt.s32.totalorder %s21, 1
      %s324 = scalar_select %p323, %s21, 1
      %s325 = smul.addr %s324, 8
      %s326 = smul.addr %s325, 8
      %s327 = scalar_lea.vmem %s7, %s326
      %v329 = vld [vmem:[%s1] sm:$0x1]
      %v330 = vmul.f32 %v329, 0.0078125
      %v331 = vld [vmem:[%s2] sm:$0x1]
      %v332 = vmul.f32 %v331, 0.0078125
      %v333 = vmul.f32 %v330, %v330
      %v334 = vsub.f32 %v332, %v333
      %v335 = vadd.f32 %v334, 1e-05
      %v336 = vrsqrt.pop %v335
      %v337 = vld [vmem:[%s3] sm:$0x1]
      %v338 = vmul.f32 %v336, %v337
      %v339 = vld [vmem:[%s4] sm:$0x1]
      %v340 = vmul.f32 %v330, %v338
      %v341 = vsub.f32 %v339, %v340
      %v342 = vld [vmem:[%s322] sm:$0xff]
      %v343 = vld [vmem:[%s322 + $0x8] sm:$0xff]
      %v344 = vld [vmem:[%s322 + $0x10] sm:$0xff]
      %v345 = vld [vmem:[%s322 + $0x18] sm:$0xff]
      %v346 = vld [vmem:[%s322 + $0x20] sm:$0xff]
      %v347 = vld [vmem:[%s322 + $0x28] sm:$0xff]
      %v348 = vld [vmem:[%s322 + $0x30] sm:$0xff]
      %v349 = vld [vmem:[%s322 + $0x38] sm:$0xff]
      %v351 = vlaneseq
      %v352 = vshrl.u32 %v351, 7
      %v353 = vsub.s32 0, %v352
      %v354 = vrot.slane %v338, %v353
      %v356 = vmul.f32 %v342, %v354
      %v357 = vmul.f32 %v343, %v354
      %v358 = vmul.f32 %v344, %v354
      %v359 = vmul.f32 %v345, %v354
      %v360 = vmul.f32 %v346, %v354
      %v361 = vmul.f32 %v347, %v354
      %v362 = vmul.f32 %v348, %v354
      %v363 = vmul.f32 %v349, %v354
      %v365 = vlaneseq
      %v366 = vshrl.u32 %v365, 7
      %v367 = vsub.s32 0, %v366
      %v368 = vrot.slane %v341, %v367
      %v370 = vadd.f32 %v356, %v368
      %v371 = vadd.f32 %v357, %v368
      %v372 = vadd.f32 %v358, %v368
      %v373 = vadd.f32 %v359, %v368
      %v374 = vadd.f32 %v360, %v368
      %v375 = vadd.f32 %v361, %v368
      %v376 = vadd.f32 %v362, %v368
      %v377 = vadd.f32 %v363, %v368
      %v378 = vmax.f32 %v370, 0.0
      %v379 = vmax.f32 %v371, 0.0
      %v380 = vmax.f32 %v372, 0.0
      %v381 = vmax.f32 %v373, 0.0
      %v382 = vmax.f32 %v374, 0.0
      %v383 = vmax.f32 %v375, 0.0
      %v384 = vmax.f32 %v376, 0.0
      %v385 = vmax.f32 %v377, 0.0
      %vm386 = vcmask 64512
      %387 = vst.msk [vmem:[#allocation2] sm:$0xff] %vm386, 0.0
      %vm388 = vcmask 58368
      %389 = vst.msk [vmem:[#allocation2 + $0x8] sm:$0x3] %vm388, 0.0
      %390 = vst.msk [vmem:[#allocation2 + $0x10] sm:$0xff] %vm386, 0.0
      %391 = vst.msk [vmem:[#allocation2 + $0x18] sm:$0x3] %vm388, 0.0
      %392 = vst.msk [vmem:[#allocation2 + $0x20] sm:$0xff] %vm386, 0.0
      %393 = vst.msk [vmem:[#allocation2 + $0x28] sm:$0x3] %vm388, 0.0
      %394 = vst.msk [vmem:[#allocation2 + $0x30] sm:$0xff] %vm386, 0.0
      %395 = vst.msk [vmem:[#allocation2 + $0x38] sm:$0x3] %vm388, 0.0
      %396 = vst.msk [vmem:[#allocation2 + $0x40] sm:$0xff] %vm386, 0.0
      %397 = vst.msk [vmem:[#allocation2 + $0x48] sm:$0x3] %vm388, 0.0
      %398 = vst.msk [vmem:[#allocation2 + $0x50] sm:$0xff] %vm386, 0.0
      %399 = vst.msk [vmem:[#allocation2 + $0x58] sm:$0x3] %vm388, 0.0
      %400 = vst.msk [vmem:[#allocation2 + $0x60] sm:$0xff] %vm386, 0.0
      %401 = vst.msk [vmem:[#allocation2 + $0x68] sm:$0x3] %vm388, 0.0
      %402 = vst.msk [vmem:[#allocation2 + $0x70] sm:$0xff] %vm386, 0.0
      %403 = vst.msk [vmem:[#allocation2 + $0x78] sm:$0x3] %vm388, 0.0
      %404 = vst.msk [vmem:[#allocation2 + $0x80] sm:$0xff] %vm386, 0.0
      %405 = vst.msk [vmem:[#allocation2 + $0x88] sm:$0x3] %vm388, 0.0
      %406 = vst.msk [vmem:[#allocation2 + $0x90] sm:$0xff] %vm386, 0.0
      %407 = vst.msk [vmem:[#allocation2 + $0x98] sm:$0x3] %vm388, 0.0
      %s408 = scalar_lea.vmem [#allocation2], 16
      %409 = vst.msk [vmem:[%s408 + $0x1] sm:$0xff] %vm386, %v378
      %410 = vst.msk [vmem:[%s408 + $0x11] sm:$0xff] %vm386, %v379
      %411 = vst.msk [vmem:[%s408 + $0x21] sm:$0xff] %vm386, %v380
      %412 = vst.msk [vmem:[%s408 + $0x31] sm:$0xff] %vm386, %v381
      %413 = vst.msk [vmem:[%s408 + $0x41] sm:$0xff] %vm386, %v382
      %414 = vst.msk [vmem:[%s408 + $0x51] sm:$0xff] %vm386, %v383
      %415 = vst.msk [vmem:[%s408 + $0x61] sm:$0xff] %vm386, %v384
      %416 = vst.msk [vmem:[%s408 + $0x71] sm:$0xff] %vm386, %v385
      %v417 = vld [vmem:[#allocation2] sm:$0xff]
      %v418 = vld [vmem:[#allocation2 + $0x10] sm:$0xff]
      %v419 = vld [vmem:[#allocation2 + $0x20] sm:$0xff]
      %v420 = vld [vmem:[#allocation2 + $0x30] sm:$0xff]
      %v421 = vld [vmem:[#allocation2 + $0x40] sm:$0xff]
      %v422 = vld [vmem:[#allocation2 + $0x50] sm:$0xff]
      %v423 = vld [vmem:[#allocation2 + $0x60] sm:$0xff]
      %v424 = vld [vmem:[#allocation2 + $0x70] sm:$0xff]
      %v425 = vpack.c.bf16 %v418, %v417
      %v426 = vpack.c.bf16 %v420, %v419
      %v427 = vpack.c.bf16 %v422, %v421
      %v428 = vpack.c.bf16 %v424, %v423
      %v429 = vld [vmem:[%s5] sm:$0xf]
      %v430 = vld [vmem:[#allocation2 + $0x1] sm:$0xff]
      %v431 = vld [vmem:[#allocation2 + $0x11] sm:$0xff]
      %v432 = vld [vmem:[#allocation2 + $0x21] sm:$0xff]
      %v433 = vld [vmem:[#allocation2 + $0x31] sm:$0xff]
      %v434 = vld [vmem:[#allocation2 + $0x41] sm:$0xff]
      %v435 = vld [vmem:[#allocation2 + $0x51] sm:$0xff]
      %v436 = vld [vmem:[#allocation2 + $0x61] sm:$0xff]
      %v437 = vld [vmem:[#allocation2 + $0x71] sm:$0xff]
      %v438 = vpack.c.bf16 %v431, %v430
      %v439 = vpack.c.bf16 %v433, %v432
      %v440 = vpack.c.bf16 %v435, %v434
      %v441 = vpack.c.bf16 %v437, %v436
      %s442 = scalar_lea.vmem %s5, 4
      %v443 = vld [vmem:[%s442] sm:$0xf]
      %v445 = vsel %vm386, %v438, 0
      %v448 = vsel %vm386, %v439, 0
      %v451 = vsel %vm386, %v440, 0
      %v454 = vsel %vm386, %v441, 0
      %vm456 = vcmask 1043456
      %v458 = vsel %vm456, %v443, 0
      %460 = vmatprep.subr.bf16.mxu0 0
      %461 = vmatpush1.bf16.msra.mxu0 0
      %462 = vmatprep.subr.bf16.mxu0 0
      %463 = vmatpush1.bf16.msra.mxu0 0
      %464 = vmatprep.subr.bf16.mxu0 0
      %465 = vmatpush1.bf16.msra.mxu0 0
      %466 = vmatprep.subr.bf16.mxu0 0
      %467 = vmatpush1.bf16.msra.mxu0 0
      %468 = vmatprep.subr.bf16.mxu0 0
      %469 = vmatpush1.bf16.msra.mxu0 0
      %470 = vmatprep.subr.bf16.mxu0 0
      %471 = vmatpush1.bf16.msra.mxu0 0
      %472 = vmatprep.subr.bf16.mxu0 0
      %473 = vmatpush1.bf16.msra.mxu0 0
      %474 = vmatprep.subr.bf16.mxu0 0
      %475 = vmatpush1.bf16.msra.mxu0 %v458
      %476 = vmatprep.subr.bf16.mxu0 0
      %477 = vmatpush2.bf16.msra.mxu0 0
      %478 = vmatprep.subr.bf16.mxu0 0
      %479 = vmatpush2.bf16.msra.mxu0 0
      %480 = vmatprep.subr.bf16.mxu0 0
      %481 = vmatpush2.bf16.msra.mxu0 0
      %482 = vmatprep.subr.bf16.mxu0 0
      %483 = vmatpush2.bf16.msra.mxu0 0
      %484 = vmatprep.subr.bf16.mxu0 0
      %485 = vmatpush2.bf16.msra.mxu0 0
      %486 = vmatprep.subr.bf16.mxu0 0
      %487 = vmatpush2.bf16.msra.mxu0 0
      %488 = vmatprep.subr.bf16.mxu0 0
      %489 = vmatpush2.bf16.msra.mxu0 0
      %490 = vmatprep.subr.bf16.mxu0 0
      %491 = vmatpush2.bf16.msra.mxu0 0
      %492 = vmatprep.mubr.bf16.mxu0 0
      %493 = vmatmul.mubr.bf16.gmra.mxu0 %v445
      %v494 = vpop.f32.mrf.mxu0
      %v495 = vadd.f32 0.0, %v494
      %v496 = vpop.f32.mrf.mxu0
      %v497 = vpop.f32.mrf.mxu0
      %v498 = vadd.f32 0.0, %v497
      %v499 = vpop.f32.mrf.mxu0
      %500 = vmatprep.mubr.bf16.mxu0 0
      %501 = vmatmul.mubr.bf16.gmra.mxu0 %v448
      %v502 = vpop.f32.mrf.mxu0
      %v503 = vadd.f32 0.0, %v502
      %v504 = vpop.f32.mrf.mxu0
      %v505 = vpop.f32.mrf.mxu0
      %v506 = vadd.f32 0.0, %v505
      %v507 = vpop.f32.mrf.mxu0
      %508 = vmatprep.mubr.bf16.mxu0 0
      %509 = vmatmul.mubr.bf16.gmra.mxu0 %v451
      %v510 = vpop.f32.mrf.mxu0
      %v511 = vadd.f32 0.0, %v510
      %v512 = vpop.f32.mrf.mxu0
      %v513 = vpop.f32.mrf.mxu0
      %v514 = vadd.f32 0.0, %v513
      %v515 = vpop.f32.mrf.mxu0
      %516 = vmatprep.mubr.bf16.mxu0 0
      %517 = vmatmul.mubr.bf16.gmra.mxu0 %v454
      %v518 = vpop.f32.mrf.mxu0
      %v519 = vadd.f32 0.0, %v518
      %v520 = vpop.f32.mrf.mxu0
      %v521 = vpop.f32.mrf.mxu0
      %v522 = vadd.f32 0.0, %v521
      %v523 = vpop.f32.mrf.mxu0
      %524 = vdwg.mxu0
      %v526 = vsel %vm386, %v425, 0
      %v529 = vsel %vm386, %v426, 0
      %v532 = vsel %vm386, %v427, 0
      %v535 = vsel %vm386, %v428, 0
      %v538 = vsel %vm456, %v429, 0
      %540 = vmatprep.subr.bf16.mxu0 0
      %541 = vmatpush1.bf16.msra.mxu0 0
      %542 = vmatprep.subr.bf16.mxu0 0
      %543 = vmatpush1.bf16.msra.mxu0 0
      %544 = vmatprep.subr.bf16.mxu0 0
      %545 = vmatpush1.bf16.msra.mxu0 0
      %546 = vmatprep.subr.bf16.mxu0 0
      %547 = vmatpush1.bf16.msra.mxu0 0
      %548 = vmatprep.subr.bf16.mxu0 0
      %549 = vmatpush1.bf16.msra.mxu0 0
      %550 = vmatprep.subr.bf16.mxu0 0
      %551 = vmatpush1.bf16.msra.mxu0 0
      %552 = vmatprep.subr.bf16.mxu0 0
      %553 = vmatpush1.bf16.msra.mxu0 0
      %554 = vmatprep.subr.bf16.mxu0 0
      %555 = vmatpush1.bf16.msra.mxu0 %v538
      %556 = vmatprep.subr.bf16.mxu0 0
      %557 = vmatpush2.bf16.msra.mxu0 0
      %558 = vmatprep.subr.bf16.mxu0 0
      %559 = vmatpush2.bf16.msra.mxu0 0
      %560 = vmatprep.subr.bf16.mxu0 0
      %561 = vmatpush2.bf16.msra.mxu0 0
      %562 = vmatprep.subr.bf16.mxu0 0
      %563 = vmatpush2.bf16.msra.mxu0 0
      %564 = vmatprep.subr.bf16.mxu0 0
      %565 = vmatpush2.bf16.msra.mxu0 0
      %566 = vmatprep.subr.bf16.mxu0 0
      %567 = vmatpush2.bf16.msra.mxu0 0
      %568 = vmatprep.subr.bf16.mxu0 0
      %569 = vmatpush2.bf16.msra.mxu0 0
      %570 = vmatprep.subr.bf16.mxu0 0
      %571 = vmatpush2.bf16.msra.mxu0 0
      %572 = vmatprep.mubr.bf16.mxu0 0
      %573 = vmatmul.mubr.bf16.gmra.mxu0 %v526
      %v574 = vpop.f32.mrf.mxu0
      %v575 = vadd.f32 %v495, %v574
      %v576 = vpop.f32.mrf.mxu0
      %v577 = vpop.f32.mrf.mxu0
      %v578 = vadd.f32 %v498, %v577
      %v579 = vpop.f32.mrf.mxu0
      %580 = vmatprep.mubr.bf16.mxu0 0
      %581 = vmatmul.mubr.bf16.gmra.mxu0 %v529
      %v582 = vpop.f32.mrf.mxu0
      %v583 = vadd.f32 %v503, %v582
      %v584 = vpop.f32.mrf.mxu0
      %v585 = vpop.f32.mrf.mxu0
      %v586 = vadd.f32 %v506, %v585
      %v587 = vpop.f32.mrf.mxu0
      %588 = vmatprep.mubr.bf16.mxu0 0
      %589 = vmatmul.mubr.bf16.gmra.mxu0 %v532
      %v590 = vpop.f32.mrf.mxu0
      %v591 = vadd.f32 %v511, %v590
      %v592 = vpop.f32.mrf.mxu0
      %v593 = vpop.f32.mrf.mxu0
      %v594 = vadd.f32 %v514, %v593
      %v595 = vpop.f32.mrf.mxu0
      %596 = vmatprep.mubr.bf16.mxu0 0
      %597 = vmatmul.mubr.bf16.gmra.mxu0 %v535
      %v598 = vpop.f32.mrf.mxu0
      %v599 = vadd.f32 %v519, %v598
      %v600 = vpop.f32.mrf.mxu0
      %v601 = vpop.f32.mrf.mxu0
      %v602 = vadd.f32 %v522, %v601
      %v603 = vpop.f32.mrf.mxu0
      %604 = vdwg.mxu0
      %v605 = vld [vmem:[#allocation2 + $0x2] sm:$0xff]
      %v606 = vld [vmem:[#allocation2 + $0x12] sm:$0xff]
      %v607 = vld [vmem:[#allocation2 + $0x22] sm:$0xff]
      %v608 = vld [vmem:[#allocation2 + $0x32] sm:$0xff]
      %v609 = vld [vmem:[#allocation2 + $0x42] sm:$0xff]
      %v610 = vld [vmem:[#allocation2 + $0x52] sm:$0xff]
      %v611 = vld [vmem:[#allocation2 + $0x62] sm:$0xff]
      %v612 = vld [vmem:[#allocation2 + $0x72] sm:$0xff]
      %v613 = vpack.c.bf16 %v606, %v605
      %v614 = vpack.c.bf16 %v608, %v607
      %v615 = vpack.c.bf16 %v610, %v609
      %v616 = vpack.c.bf16 %v612, %v611
      %s617 = scalar_lea.vmem %s5, 8
      %v618 = vld [vmem:[%s617] sm:$0xf]
      %v620 = vsel %vm386, %v613, 0
      %v623 = vsel %vm386, %v614, 0
      %v626 = vsel %vm386, %v615, 0
      %v629 = vsel %vm386, %v616, 0
      %v632 = vsel %vm456, %v618, 0
      %634 = vmatprep.subr.bf16.mxu0 0
      %635 = vmatpush1.bf16.msra.mxu0 0
      %636 = vmatprep.subr.bf16.mxu0 0
      %637 = vmatpush1.bf16.msra.mxu0 0
      %638 = vmatprep.subr.bf16.mxu0 0
      %639 = vmatpush1.bf16.msra.mxu0 0
      %640 = vmatprep.subr.bf16.mxu0 0
      %641 = vmatpush1.bf16.msra.mxu0 0
      %642 = vmatprep.subr.bf16.mxu0 0
      %643 = vmatpush1.bf16.msra.mxu0 0
      %644 = vmatprep.subr.bf16.mxu0 0
      %645 = vmatpush1.bf16.msra.mxu0 0
      %646 = vmatprep.subr.bf16.mxu0 0
      %647 = vmatpush1.bf16.msra.mxu0 0
      %648 = vmatprep.subr.bf16.mxu0 0
      %649 = vmatpush1.bf16.msra.mxu0 %v632
      %650 = vmatprep.subr.bf16.mxu0 0
      %651 = vmatpush2.bf16.msra.mxu0 0
      %652 = vmatprep.subr.bf16.mxu0 0
      %653 = vmatpush2.bf16.msra.mxu0 0
      %654 = vmatprep.subr.bf16.mxu0 0
      %655 = vmatpush2.bf16.msra.mxu0 0
      %656 = vmatprep.subr.bf16.mxu0 0
      %657 = vmatpush2.bf16.msra.mxu0 0
      %658 = vmatprep.subr.bf16.mxu0 0
      %659 = vmatpush2.bf16.msra.mxu0 0
      %660 = vmatprep.subr.bf16.mxu0 0
      %661 = vmatpush2.bf16.msra.mxu0 0
      %662 = vmatprep.subr.bf16.mxu0 0
      %663 = vmatpush2.bf16.msra.mxu0 0
      %664 = vmatprep.subr.bf16.mxu0 0
      %665 = vmatpush2.bf16.msra.mxu0 0
      %666 = vmatprep.mubr.bf16.mxu0 0
      %667 = vmatmul.mubr.bf16.gmra.mxu0 %v620
      %v668 = vpop.f32.mrf.mxu0
      %v669 = vadd.f32 0.0, %v668
      %v670 = vpop.f32.mrf.mxu0
      %v671 = vpop.f32.mrf.mxu0
      %v672 = vadd.f32 0.0, %v671
      %v673 = vpop.f32.mrf.mxu0
      %674 = vmatprep.mubr.bf16.mxu0 0
      %675 = vmatmul.mubr.bf16.gmra.mxu0 %v623
      %v676 = vpop.f32.mrf.mxu0
      %v677 = vadd.f32 0.0, %v676
      %v678 = vpop.f32.mrf.mxu0
      %v679 = vpop.f32.mrf.mxu0
      %v680 = vadd.f32 0.0, %v679
      %v681 = vpop.f32.mrf.mxu0
      %682 = vmatprep.mubr.bf16.mxu0 0
      %683 = vmatmul.mubr.bf16.gmra.mxu0 %v626
      %v684 = vpop.f32.mrf.mxu0
      %v685 = vadd.f32 0.0, %v684
      %v686 = vpop.f32.mrf.mxu0
      %v687 = vpop.f32.mrf.mxu0
      %v688 = vadd.f32 0.0, %v687
      %v689 = vpop.f32.mrf.mxu0
      %690 = vmatprep.mubr.bf16.mxu0 0
      %691 = vmatmul.mubr.bf16.gmra.mxu0 %v629
      %v692 = vpop.f32.mrf.mxu0
      %v693 = vadd.f32 0.0, %v692
      %v694 = vpop.f32.mrf.mxu0
      %v695 = vpop.f32.mrf.mxu0
      %v696 = vadd.f32 0.0, %v695
      %v697 = vpop.f32.mrf.mxu0
      %698 = vdwg.mxu0
      %v699 = vadd.f32 %v575, %v669
      %v700 = vadd.f32 %v578, %v672
      %v701 = vadd.f32 %v583, %v677
      %v702 = vadd.f32 %v586, %v680
      %v703 = vadd.f32 %v591, %v685
      %v704 = vadd.f32 %v594, %v688
      %v705 = vadd.f32 %v599, %v693
      %v706 = vadd.f32 %v602, %v696
      %v707 = vld [vmem:[%s408] sm:$0xff]
      %v708 = vld [vmem:[%s408 + $0x10] sm:$0xff]
      %v709 = vld [vmem:[%s408 + $0x20] sm:$0xff]
      %v710 = vld [vmem:[%s408 + $0x30] sm:$0xff]
      %v711 = vld [vmem:[%s408 + $0x40] sm:$0xff]
      %v712 = vld [vmem:[%s408 + $0x50] sm:$0xff]
      %v713 = vld [vmem:[%s408 + $0x60] sm:$0xff]
      %v714 = vld [vmem:[%s408 + $0x70] sm:$0xff]
      %v715 = vpack.c.bf16 %v708, %v707
      %v716 = vpack.c.bf16 %v710, %v709
      %v717 = vpack.c.bf16 %v712, %v711
      %v718 = vpack.c.bf16 %v714, %v713
      %s719 = scalar_lea.vmem %s5, 12
      %v720 = vld [vmem:[%s719] sm:$0xf]
      %v722 = vsel %vm386, %v715, 0
      %v725 = vsel %vm386, %v716, 0
      %v728 = vsel %vm386, %v717, 0
      %v731 = vsel %vm386, %v718, 0
      %v734 = vsel %vm456, %v720, 0
      %736 = vmatprep.subr.bf16.mxu0 0
      %737 = vmatpush1.bf16.msra.mxu0 0
      %738 = vmatprep.subr.bf16.mxu0 0
      %739 = vmatpush1.bf16.msra.mxu0 0
      %740 = vmatprep.subr.bf16.mxu0 0
      %741 = vmatpush1.bf16.msra.mxu0 0
      %742 = vmatprep.subr.bf16.mxu0 0
      %743 = vmatpush1.bf16.msra.mxu0 0
      %744 = vmatprep.subr.bf16.mxu0 0
      %745 = vmatpush1.bf16.msra.mxu0 0
      %746 = vmatprep.subr.bf16.mxu0 0
      %747 = vmatpush1.bf16.msra.mxu0 0
      %748 = vmatprep.subr.bf16.mxu0 0
      %749 = vmatpush1.bf16.msra.mxu0 0
      %750 = vmatprep.subr.bf16.mxu0 0
      %751 = vmatpush1.bf16.msra.mxu0 %v734
      %752 = vmatprep.subr.bf16.mxu0 0
      %753 = vmatpush2.bf16.msra.mxu0 0
      %754 = vmatprep.subr.bf16.mxu0 0
      %755 = vmatpush2.bf16.msra.mxu0 0
      %756 = vmatprep.subr.bf16.mxu0 0
      %757 = vmatpush2.bf16.msra.mxu0 0
      %758 = vmatprep.subr.bf16.mxu0 0
      %759 = vmatpush2.bf16.msra.mxu0 0
      %760 = vmatprep.subr.bf16.mxu0 0
      %761 = vmatpush2.bf16.msra.mxu0 0
      %762 = vmatprep.subr.bf16.mxu0 0
      %763 = vmatpush2.bf16.msra.mxu0 0
      %764 = vmatprep.subr.bf16.mxu0 0
      %765 = vmatpush2.bf16.msra.mxu0 0
      %766 = vmatprep.subr.bf16.mxu0 0
      %767 = vmatpush2.bf16.msra.mxu0 0
      %768 = vmatprep.mubr.bf16.mxu0 0
      %769 = vmatmul.mubr.bf16.gmra.mxu0 %v722
      %v770 = vpop.f32.mrf.mxu0
      %v771 = vadd.f32 0.0, %v770
      %v772 = vpop.f32.mrf.mxu0
      %v773 = vpop.f32.mrf.mxu0
      %v774 = vadd.f32 0.0, %v773
      %v775 = vpop.f32.mrf.mxu0
      %776 = vmatprep.mubr.bf16.mxu0 0
      %777 = vmatmul.mubr.bf16.gmra.mxu0 %v725
      %v778 = vpop.f32.mrf.mxu0
      %v779 = vadd.f32 0.0, %v778
      %v780 = vpop.f32.mrf.mxu0
      %v781 = vpop.f32.mrf.mxu0
      %v782 = vadd.f32 0.0, %v781
      %v783 = vpop.f32.mrf.mxu0
      %784 = vmatprep.mubr.bf16.mxu0 0
      %785 = vmatmul.mubr.bf16.gmra.mxu0 %v728
      %v786 = vpop.f32.mrf.mxu0
      %v787 = vadd.f32 0.0, %v786
      %v788 = vpop.f32.mrf.mxu0
      %v789 = vpop.f32.mrf.mxu0
      %v790 = vadd.f32 0.0, %v789
      %v791 = vpop.f32.mrf.mxu0
      %792 = vmatprep.mubr.bf16.mxu0 0
      %793 = vmatmul.mubr.bf16.gmra.mxu0 %v731
      %v794 = vpop.f32.mrf.mxu0
      %v795 = vadd.f32 0.0, %v794
      %v796 = vpop.f32.mrf.mxu0
      %v797 = vpop.f32.mrf.mxu0
      %v798 = vadd.f32 0.0, %v797
      %v799 = vpop.f32.mrf.mxu0
      %800 = vdwg.mxu0
      %v801 = vadd.f32 %v699, %v771
      %v802 = vadd.f32 %v700, %v774
      %v803 = vadd.f32 %v701, %v779
      %v804 = vadd.f32 %v702, %v782
      %v805 = vadd.f32 %v703, %v787
      %v806 = vadd.f32 %v704, %v790
      %v807 = vadd.f32 %v705, %v795
      %v808 = vadd.f32 %v706, %v798
      %v809 = vld [vmem:[%s408 + $0x1] sm:$0xff]
      %v810 = vld [vmem:[%s408 + $0x11] sm:$0xff]
      %v811 = vld [vmem:[%s408 + $0x21] sm:$0xff]
      %v812 = vld [vmem:[%s408 + $0x31] sm:$0xff]
      %v813 = vld [vmem:[%s408 + $0x41] sm:$0xff]
      %v814 = vld [vmem:[%s408 + $0x51] sm:$0xff]
      %v815 = vld [vmem:[%s408 + $0x61] sm:$0xff]
      %v816 = vld [vmem:[%s408 + $0x71] sm:$0xff]
      %v817 = vpack.c.bf16 %v810, %v809
      %v818 = vpack.c.bf16 %v812, %v811
      %v819 = vpack.c.bf16 %v814, %v813
      %v820 = vpack.c.bf16 %v816, %v815
      %s821 = scalar_lea.vmem %s5, 16
      %v822 = vld [vmem:[%s821] sm:$0xf]
      %v824 = vsel %vm386, %v817, 0
      %v827 = vsel %vm386, %v818, 0
      %v830 = vsel %vm386, %v819, 0
      %v833 = vsel %vm386, %v820, 0
      %v836 = vsel %vm456, %v822, 0
      %838 = vmatprep.subr.bf16.mxu0 0
      %839 = vmatpush1.bf16.msra.mxu0 0
      %840 = vmatprep.subr.bf16.mxu0 0
      %841 = vmatpush1.bf16.msra.mxu0 0
      %842 = vmatprep.subr.bf16.mxu0 0
      %843 = vmatpush1.bf16.msra.mxu0 0
      %844 = vmatprep.subr.bf16.mxu0 0
      %845 = vmatpush1.bf16.msra.mxu0 0
      %846 = vmatprep.subr.bf16.mxu0 0
      %847 = vmatpush1.bf16.msra.mxu0 0
      %848 = vmatprep.subr.bf16.mxu0 0
      %849 = vmatpush1.bf16.msra.mxu0 0
      %850 = vmatprep.subr.bf16.mxu0 0
      %851 = vmatpush1.bf16.msra.mxu0 0
      %852 = vmatprep.subr.bf16.mxu0 0
      %853 = vmatpush1.bf16.msra.mxu0 %v836
      %854 = vmatprep.subr.bf16.mxu0 0
      %855 = vmatpush2.bf16.msra.mxu0 0
      %856 = vmatprep.subr.bf16.mxu0 0
      %857 = vmatpush2.bf16.msra.mxu0 0
      %858 = vmatprep.subr.bf16.mxu0 0
      %859 = vmatpush2.bf16.msra.mxu0 0
      %860 = vmatprep.subr.bf16.mxu0 0
      %861 = vmatpush2.bf16.msra.mxu0 0
      %862 = vmatprep.subr.bf16.mxu0 0
      %863 = vmatpush2.bf16.msra.mxu0 0
      %864 = vmatprep.subr.bf16.mxu0 0
      %865 = vmatpush2.bf16.msra.mxu0 0
      %866 = vmatprep.subr.bf16.mxu0 0
      %867 = vmatpush2.bf16.msra.mxu0 0
      %868 = vmatprep.subr.bf16.mxu0 0
      %869 = vmatpush2.bf16.msra.mxu0 0
      %870 = vmatprep.mubr.bf16.mxu0 0
      %871 = vmatmul.mubr.bf16.gmra.mxu0 %v824
      %v872 = vpop.f32.mrf.mxu0
      %v873 = vadd.f32 0.0, %v872
      %v874 = vpop.f32.mrf.mxu0
      %v875 = vpop.f32.mrf.mxu0
      %v876 = vadd.f32 0.0, %v875
      %v877 = vpop.f32.mrf.mxu0
      %878 = vmatprep.mubr.bf16.mxu0 0
      %879 = vmatmul.mubr.bf16.gmra.mxu0 %v827
      %v880 = vpop.f32.mrf.mxu0
      %v881 = vadd.f32 0.0, %v880
      %v882 = vpop.f32.mrf.mxu0
      %v883 = vpop.f32.mrf.mxu0
      %v884 = vadd.f32 0.0, %v883
      %v885 = vpop.f32.mrf.mxu0
      %886 = vmatprep.mubr.bf16.mxu0 0
      %887 = vmatmul.mubr.bf16.gmra.mxu0 %v830
      %v888 = vpop.f32.mrf.mxu0
      %v889 = vadd.f32 0.0, %v888
      %v890 = vpop.f32.mrf.mxu0
      %v891 = vpop.f32.mrf.mxu0
      %v892 = vadd.f32 0.0, %v891
      %v893 = vpop.f32.mrf.mxu0
      %894 = vmatprep.mubr.bf16.mxu0 0
      %895 = vmatmul.mubr.bf16.gmra.mxu0 %v833
      %v896 = vpop.f32.mrf.mxu0
      %v897 = vadd.f32 0.0, %v896
      %v898 = vpop.f32.mrf.mxu0
      %v899 = vpop.f32.mrf.mxu0
      %v900 = vadd.f32 0.0, %v899
      %v901 = vpop.f32.mrf.mxu0
      %902 = vdwg.mxu0
      %v903 = vadd.f32 %v801, %v873
      %v904 = vadd.f32 %v802, %v876
      %v905 = vadd.f32 %v803, %v881
      %v906 = vadd.f32 %v804, %v884
      %v907 = vadd.f32 %v805, %v889
      %v908 = vadd.f32 %v806, %v892
      %v909 = vadd.f32 %v807, %v897
      %v910 = vadd.f32 %v808, %v900
      %v911 = vld [vmem:[%s408 + $0x2] sm:$0xff]
      %v912 = vld [vmem:[%s408 + $0x12] sm:$0xff]
      %v913 = vld [vmem:[%s408 + $0x22] sm:$0xff]
      %v914 = vld [vmem:[%s408 + $0x32] sm:$0xff]
      %v915 = vld [vmem:[%s408 + $0x42] sm:$0xff]
      %v916 = vld [vmem:[%s408 + $0x52] sm:$0xff]
      %v917 = vld [vmem:[%s408 + $0x62] sm:$0xff]
      %v918 = vld [vmem:[%s408 + $0x72] sm:$0xff]
      %v919 = vpack.c.bf16 %v912, %v911
      %v920 = vpack.c.bf16 %v914, %v913
      %v921 = vpack.c.bf16 %v916, %v915
      %v922 = vpack.c.bf16 %v918, %v917
      %s923 = scalar_lea.vmem %s5, 20
      %v924 = vld [vmem:[%s923] sm:$0xf]
      %v926 = vsel %vm386, %v919, 0
      %v929 = vsel %vm386, %v920, 0
      %v932 = vsel %vm386, %v921, 0
      %v935 = vsel %vm386, %v922, 0
      %v938 = vsel %vm456, %v924, 0
      %940 = vmatprep.subr.bf16.mxu0 0
      %941 = vmatpush1.bf16.msra.mxu0 0
      %942 = vmatprep.subr.bf16.mxu0 0
      %943 = vmatpush1.bf16.msra.mxu0 0
      %944 = vmatprep.subr.bf16.mxu0 0
      %945 = vmatpush1.bf16.msra.mxu0 0
      %946 = vmatprep.subr.bf16.mxu0 0
      %947 = vmatpush1.bf16.msra.mxu0 0
      %948 = vmatprep.subr.bf16.mxu0 0
      %949 = vmatpush1.bf16.msra.mxu0 0
      %950 = vmatprep.subr.bf16.mxu0 0
      %951 = vmatpush1.bf16.msra.mxu0 0
      %952 = vmatprep.subr.bf16.mxu0 0
      %953 = vmatpush1.bf16.msra.mxu0 0
      %954 = vmatprep.subr.bf16.mxu0 0
      %955 = vmatpush1.bf16.msra.mxu0 %v938
      %956 = vmatprep.subr.bf16.mxu0 0
      %957 = vmatpush2.bf16.msra.mxu0 0
      %958 = vmatprep.subr.bf16.mxu0 0
      %959 = vmatpush2.bf16.msra.mxu0 0
      %960 = vmatprep.subr.bf16.mxu0 0
      %961 = vmatpush2.bf16.msra.mxu0 0
      %962 = vmatprep.subr.bf16.mxu0 0
      %963 = vmatpush2.bf16.msra.mxu0 0
      %964 = vmatprep.subr.bf16.mxu0 0
      %965 = vmatpush2.bf16.msra.mxu0 0
      %966 = vmatprep.subr.bf16.mxu0 0
      %967 = vmatpush2.bf16.msra.mxu0 0
      %968 = vmatprep.subr.bf16.mxu0 0
      %969 = vmatpush2.bf16.msra.mxu0 0
      %970 = vmatprep.subr.bf16.mxu0 0
      %971 = vmatpush2.bf16.msra.mxu0 0
      %972 = vmatprep.mubr.bf16.mxu0 0
      %973 = vmatmul.mubr.bf16.gmra.mxu0 %v926
      %v974 = vpop.f32.mrf.mxu0
      %v975 = vadd.f32 0.0, %v974
      %v976 = vpop.f32.mrf.mxu0
      %v977 = vpop.f32.mrf.mxu0
      %v978 = vadd.f32 0.0, %v977
      %v979 = vpop.f32.mrf.mxu0
      %980 = vmatprep.mubr.bf16.mxu0 0
      %981 = vmatmul.mubr.bf16.gmra.mxu0 %v929
      %v982 = vpop.f32.mrf.mxu0
      %v983 = vadd.f32 0.0, %v982
      %v984 = vpop.f32.mrf.mxu0
      %v985 = vpop.f32.mrf.mxu0
      %v986 = vadd.f32 0.0, %v985
      %v987 = vpop.f32.mrf.mxu0
      %988 = vmatprep.mubr.bf16.mxu0 0
      %989 = vmatmul.mubr.bf16.gmra.mxu0 %v932
      %v990 = vpop.f32.mrf.mxu0
      %v991 = vadd.f32 0.0, %v990
      %v992 = vpop.f32.mrf.mxu0
      %v993 = vpop.f32.mrf.mxu0
      %v994 = vadd.f32 0.0, %v993
      %v995 = vpop.f32.mrf.mxu0
      %996 = vmatprep.mubr.bf16.mxu0 0
      %997 = vmatmul.mubr.bf16.gmra.mxu0 %v935
      %v998 = vpop.f32.mrf.mxu0
      %v999 = vadd.f32 0.0, %v998
      %v1000 = vpop.f32.mrf.mxu0
      %v1001 = vpop.f32.mrf.mxu0
      %v1002 = vadd.f32 0.0, %v1001
      %v1003 = vpop.f32.mrf.mxu0
      %1004 = vdwg.mxu0
      %v1005 = vadd.f32 %v903, %v975
      %v1006 = vadd.f32 %v904, %v978
      %v1007 = vadd.f32 %v905, %v983
      %v1008 = vadd.f32 %v906, %v986
      %v1009 = vadd.f32 %v907, %v991
      %v1010 = vadd.f32 %v908, %v994
      %v1011 = vadd.f32 %v909, %v999
      %v1012 = vadd.f32 %v910, %v1002
      %s1013 = scalar_lea.vmem [#allocation2], 32
      %v1014 = vld [vmem:[%s1013] sm:$0xff]
      %v1015 = vld [vmem:[%s1013 + $0x10] sm:$0xff]
      %v1016 = vld [vmem:[%s1013 + $0x20] sm:$0xff]
      %v1017 = vld [vmem:[%s1013 + $0x30] sm:$0xff]
      %v1018 = vld [vmem:[%s1013 + $0x40] sm:$0xff]
      %v1019 = vld [vmem:[%s1013 + $0x50] sm:$0xff]
      %v1020 = vld [vmem:[%s1013 + $0x60] sm:$0xff]
      %v1021 = vld [vmem:[%s1013 + $0x70] sm:$0xff]
      %v1022 = vpack.c.bf16 %v1015, %v1014
      %v1023 = vpack.c.bf16 %v1017, %v1016
      %v1024 = vpack.c.bf16 %v1019, %v1018
      %v1025 = vpack.c.bf16 %v1021, %v1020
      %s1026 = scalar_lea.vmem %s5, 24
      %v1027 = vld [vmem:[%s1026] sm:$0xf]
      %v1029 = vsel %vm386, %v1022, 0
      %v1032 = vsel %vm386, %v1023, 0
      %v1035 = vsel %vm386, %v1024, 0
      %v1038 = vsel %vm386, %v1025, 0
      %v1041 = vsel %vm456, %v1027, 0
      %1043 = vmatprep.subr.bf16.mxu0 0
      %1044 = vmatpush1.bf16.msra.mxu0 0
      %1045 = vmatprep.subr.bf16.mxu0 0
      %1046 = vmatpush1.bf16.msra.mxu0 0
      %1047 = vmatprep.subr.bf16.mxu0 0
      %1048 = vmatpush1.bf16.msra.mxu0 0
      %1049 = vmatprep.subr.bf16.mxu0 0
      %1050 = vmatpush1.bf16.msra.mxu0 0
      %1051 = vmatprep.subr.bf16.mxu0 0
      %1052 = vmatpush1.bf16.msra.mxu0 0
      %1053 = vmatprep.subr.bf16.mxu0 0
      %1054 = vmatpush1.bf16.msra.mxu0 0
      %1055 = vmatprep.subr.bf16.mxu0 0
      %1056 = vmatpush1.bf16.msra.mxu0 0
      %1057 = vmatprep.subr.bf16.mxu0 0
      %1058 = vmatpush1.bf16.msra.mxu0 %v1041
      %1059 = vmatprep.subr.bf16.mxu0 0
      %1060 = vmatpush2.bf16.msra.mxu0 0
      %1061 = vmatprep.subr.bf16.mxu0 0
      %1062 = vmatpush2.bf16.msra.mxu0 0
      %1063 = vmatprep.subr.bf16.mxu0 0
      %1064 = vmatpush2.bf16.msra.mxu0 0
      %1065 = vmatprep.subr.bf16.mxu0 0
      %1066 = vmatpush2.bf16.msra.mxu0 0
      %1067 = vmatprep.subr.bf16.mxu0 0
      %1068 = vmatpush2.bf16.msra.mxu0 0
      %1069 = vmatprep.subr.bf16.mxu0 0
      %1070 = vmatpush2.bf16.msra.mxu0 0
      %1071 = vmatprep.subr.bf16.mxu0 0
      %1072 = vmatpush2.bf16.msra.mxu0 0
      %1073 = vmatprep.subr.bf16.mxu0 0
      %1074 = vmatpush2.bf16.msra.mxu0 0
      %1075 = vmatprep.mubr.bf16.mxu0 0
      %1076 = vmatmul.mubr.bf16.gmra.mxu0 %v1029
      %v1077 = vpop.f32.mrf.mxu0
      %v1078 = vadd.f32 0.0, %v1077
      %v1079 = vpop.f32.mrf.mxu0
      %v1080 = vpop.f32.mrf.mxu0
      %v1081 = vadd.f32 0.0, %v1080
      %v1082 = vpop.f32.mrf.mxu0
      %1083 = vmatprep.mubr.bf16.mxu0 0
      %1084 = vmatmul.mubr.bf16.gmra.mxu0 %v1032
      %v1085 = vpop.f32.mrf.mxu0
      %v1086 = vadd.f32 0.0, %v1085
      %v1087 = vpop.f32.mrf.mxu0
      %v1088 = vpop.f32.mrf.mxu0
      %v1089 = vadd.f32 0.0, %v1088
      %v1090 = vpop.f32.mrf.mxu0
      %1091 = vmatprep.mubr.bf16.mxu0 0
      %1092 = vmatmul.mubr.bf16.gmra.mxu0 %v1035
      %v1093 = vpop.f32.mrf.mxu0
      %v1094 = vadd.f32 0.0, %v1093
      %v1095 = vpop.f32.mrf.mxu0
      %v1096 = vpop.f32.mrf.mxu0
      %v1097 = vadd.f32 0.0, %v1096
      %v1098 = vpop.f32.mrf.mxu0
      %1099 = vmatprep.mubr.bf16.mxu0 0
      %1100 = vmatmul.mubr.bf16.gmra.mxu0 %v1038
      %v1101 = vpop.f32.mrf.mxu0
      %v1102 = vadd.f32 0.0, %v1101
      %v1103 = vpop.f32.mrf.mxu0
      %v1104 = vpop.f32.mrf.mxu0
      %v1105 = vadd.f32 0.0, %v1104
      %v1106 = vpop.f32.mrf.mxu0
      %1107 = vdwg.mxu0
      %v1108 = vadd.f32 %v1005, %v1078
      %v1109 = vadd.f32 %v1006, %v1081
      %v1110 = vadd.f32 %v1007, %v1086
      %v1111 = vadd.f32 %v1008, %v1089
      %v1112 = vadd.f32 %v1009, %v1094
      %v1113 = vadd.f32 %v1010, %v1097
      %v1114 = vadd.f32 %v1011, %v1102
      %v1115 = vadd.f32 %v1012, %v1105
      %v1116 = vld [vmem:[%s1013 + $0x1] sm:$0xff]
      %v1117 = vld [vmem:[%s1013 + $0x11] sm:$0xff]
      %v1118 = vld [vmem:[%s1013 + $0x21] sm:$0xff]
      %v1119 = vld [vmem:[%s1013 + $0x31] sm:$0xff]
      %v1120 = vld [vmem:[%s1013 + $0x41] sm:$0xff]
      %v1121 = vld [vmem:[%s1013 + $0x51] sm:$0xff]
      %v1122 = vld [vmem:[%s1013 + $0x61] sm:$0xff]
      %v1123 = vld [vmem:[%s1013 + $0x71] sm:$0xff]
      %v1124 = vpack.c.bf16 %v1117, %v1116
      %v1125 = vpack.c.bf16 %v1119, %v1118
      %v1126 = vpack.c.bf16 %v1121, %v1120
      %v1127 = vpack.c.bf16 %v1123, %v1122
      %s1128 = scalar_lea.vmem %s5, 28
      %v1129 = vld [vmem:[%s1128] sm:$0xf]
      %v1131 = vsel %vm386, %v1124, 0
      %v1134 = vsel %vm386, %v1125, 0
      %v1137 = vsel %vm386, %v1126, 0
      %v1140 = vsel %vm386, %v1127, 0
      %v1143 = vsel %vm456, %v1129, 0
      %1145 = vmatprep.subr.bf16.mxu0 0
      %1146 = vmatpush1.bf16.msra.mxu0 0
      %1147 = vmatprep.subr.bf16.mxu0 0
      %1148 = vmatpush1.bf16.msra.mxu0 0
      %1149 = vmatprep.subr.bf16.mxu0 0
      %1150 = vmatpush1.bf16.msra.mxu0 0
      %1151 = vmatprep.subr.bf16.mxu0 0
      %1152 = vmatpush1.bf16.msra.mxu0 0
      %1153 = vmatprep.subr.bf16.mxu0 0
      %1154 = vmatpush1.bf16.msra.mxu0 0
      %1155 = vmatprep.subr.bf16.mxu0 0
      %1156 = vmatpush1.bf16.msra.mxu0 0
      %1157 = vmatprep.subr.bf16.mxu0 0
      %1158 = vmatpush1.bf16.msra.mxu0 0
      %1159 = vmatprep.subr.bf16.mxu0 0
      %1160 = vmatpush1.bf16.msra.mxu0 %v1143
      %1161 = vmatprep.subr.bf16.mxu0 0
      %1162 = vmatpush2.bf16.msra.mxu0 0
      %1163 = vmatprep.subr.bf16.mxu0 0
      %1164 = vmatpush2.bf16.msra.mxu0 0
      %1165 = vmatprep.subr.bf16.mxu0 0
      %1166 = vmatpush2.bf16.msra.mxu0 0
      %1167 = vmatprep.subr.bf16.mxu0 0
      %1168 = vmatpush2.bf16.msra.mxu0 0
      %1169 = vmatprep.subr.bf16.mxu0 0
      %1170 = vmatpush2.bf16.msra.mxu0 0
      %1171 = vmatprep.subr.bf16.mxu0 0
      %1172 = vmatpush2.bf16.msra.mxu0 0
      %1173 = vmatprep.subr.bf16.mxu0 0
      %1174 = vmatpush2.bf16.msra.mxu0 0
      %1175 = vmatprep.subr.bf16.mxu0 0
      %1176 = vmatpush2.bf16.msra.mxu0 0
      %1177 = vmatprep.mubr.bf16.mxu0 0
      %1178 = vmatmul.mubr.bf16.gmra.mxu0 %v1131
      %v1179 = vpop.f32.mrf.mxu0
      %v1180 = vadd.f32 0.0, %v1179
      %v1181 = vpop.f32.mrf.mxu0
      %v1182 = vpop.f32.mrf.mxu0
      %v1183 = vadd.f32 0.0, %v1182
      %v1184 = vpop.f32.mrf.mxu0
      %1185 = vmatprep.mubr.bf16.mxu0 0
      %1186 = vmatmul.mubr.bf16.gmra.mxu0 %v1134
      %v1187 = vpop.f32.mrf.mxu0
      %v1188 = vadd.f32 0.0, %v1187
      %v1189 = vpop.f32.mrf.mxu0
      %v1190 = vpop.f32.mrf.mxu0
      %v1191 = vadd.f32 0.0, %v1190
      %v1192 = vpop.f32.mrf.mxu0
      %1193 = vmatprep.mubr.bf16.mxu0 0
      %1194 = vmatmul.mubr.bf16.gmra.mxu0 %v1137
      %v1195 = vpop.f32.mrf.mxu0
      %v1196 = vadd.f32 0.0, %v1195
      %v1197 = vpop.f32.mrf.mxu0
      %v1198 = vpop.f32.mrf.mxu0
      %v1199 = vadd.f32 0.0, %v1198
      %v1200 = vpop.f32.mrf.mxu0
      %1201 = vmatprep.mubr.bf16.mxu0 0
      %1202 = vmatmul.mubr.bf16.gmra.mxu0 %v1140
      %v1203 = vpop.f32.mrf.mxu0
      %v1204 = vadd.f32 0.0, %v1203
      %v1205 = vpop.f32.mrf.mxu0
      %v1206 = vpop.f32.mrf.mxu0
      %v1207 = vadd.f32 0.0, %v1206
      %v1208 = vpop.f32.mrf.mxu0
      %1209 = vdwg.mxu0
      %v1210 = vadd.f32 %v1108, %v1180
      %v1211 = vadd.f32 %v1109, %v1183
      %v1212 = vadd.f32 %v1110, %v1188
      %v1213 = vadd.f32 %v1111, %v1191
      %v1214 = vadd.f32 %v1112, %v1196
      %v1215 = vadd.f32 %v1113, %v1199
      %v1216 = vadd.f32 %v1114, %v1204
      %v1217 = vadd.f32 %v1115, %v1207
      %v1218 = vld [vmem:[%s1013 + $0x2] sm:$0xff]
      %v1219 = vld [vmem:[%s1013 + $0x12] sm:$0xff]
      %v1220 = vld [vmem:[%s1013 + $0x22] sm:$0xff]
      %v1221 = vld [vmem:[%s1013 + $0x32] sm:$0xff]
      %v1222 = vld [vmem:[%s1013 + $0x42] sm:$0xff]
      %v1223 = vld [vmem:[%s1013 + $0x52] sm:$0xff]
      %v1224 = vld [vmem:[%s1013 + $0x62] sm:$0xff]
      %v1225 = vld [vmem:[%s1013 + $0x72] sm:$0xff]
      %v1226 = vpack.c.bf16 %v1219, %v1218
      %v1227 = vpack.c.bf16 %v1221, %v1220
      %v1228 = vpack.c.bf16 %v1223, %v1222
      %v1229 = vpack.c.bf16 %v1225, %v1224
      %s1230 = scalar_lea.vmem %s5, 32
      %v1231 = vld [vmem:[%s1230] sm:$0xf]
      %v1233 = vsel %vm386, %v1226, 0
      %v1236 = vsel %vm386, %v1227, 0
      %v1239 = vsel %vm386, %v1228, 0
      %v1242 = vsel %vm386, %v1229, 0
      %v1245 = vsel %vm456, %v1231, 0
      %1247 = vmatprep.subr.bf16.mxu0 0
      %1248 = vmatpush1.bf16.msra.mxu0 0
      %1249 = vmatprep.subr.bf16.mxu0 0
      %1250 = vmatpush1.bf16.msra.mxu0 0
      %1251 = vmatprep.subr.bf16.mxu0 0
      %1252 = vmatpush1.bf16.msra.mxu0 0
      %1253 = vmatprep.subr.bf16.mxu0 0
      %1254 = vmatpush1.bf16.msra.mxu0 0
      %1255 = vmatprep.subr.bf16.mxu0 0
      %1256 = vmatpush1.bf16.msra.mxu0 0
      %1257 = vmatprep.subr.bf16.mxu0 0
      %1258 = vmatpush1.bf16.msra.mxu0 0
      %1259 = vmatprep.subr.bf16.mxu0 0
      %1260 = vmatpush1.bf16.msra.mxu0 0
      %1261 = vmatprep.subr.bf16.mxu0 0
      %1262 = vmatpush1.bf16.msra.mxu0 %v1245
      %1263 = vmatprep.subr.bf16.mxu0 0
      %1264 = vmatpush2.bf16.msra.mxu0 0
      %1265 = vmatprep.subr.bf16.mxu0 0
      %1266 = vmatpush2.bf16.msra.mxu0 0
      %1267 = vmatprep.subr.bf16.mxu0 0
      %1268 = vmatpush2.bf16.msra.mxu0 0
      %1269 = vmatprep.subr.bf16.mxu0 0
      %1270 = vmatpush2.bf16.msra.mxu0 0
      %1271 = vmatprep.subr.bf16.mxu0 0
      %1272 = vmatpush2.bf16.msra.mxu0 0
      %1273 = vmatprep.subr.bf16.mxu0 0
      %1274 = vmatpush2.bf16.msra.mxu0 0
      %1275 = vmatprep.subr.bf16.mxu0 0
      %1276 = vmatpush2.bf16.msra.mxu0 0
      %1277 = vmatprep.subr.bf16.mxu0 0
      %1278 = vmatpush2.bf16.msra.mxu0 0
      %1279 = vmatprep.mubr.bf16.mxu0 0
      %1280 = vmatmul.mubr.bf16.gmra.mxu0 %v1233
      %v1281 = vpop.f32.mrf.mxu0
      %v1282 = vadd.f32 0.0, %v1281
      %v1283 = vpop.f32.mrf.mxu0
      %v1284 = vpop.f32.mrf.mxu0
      %v1285 = vadd.f32 0.0, %v1284
      %v1286 = vpop.f32.mrf.mxu0
      %1287 = vmatprep.mubr.bf16.mxu0 0
      %1288 = vmatmul.mubr.bf16.gmra.mxu0 %v1236
      %v1289 = vpop.f32.mrf.mxu0
      %v1290 = vadd.f32 0.0, %v1289
      %v1291 = vpop.f32.mrf.mxu0
      %v1292 = vpop.f32.mrf.mxu0
      %v1293 = vadd.f32 0.0, %v1292
      %v1294 = vpop.f32.mrf.mxu0
      %1295 = vmatprep.mubr.bf16.mxu0 0
      %1296 = vmatmul.mubr.bf16.gmra.mxu0 %v1239
      %v1297 = vpop.f32.mrf.mxu0
      %v1298 = vadd.f32 0.0, %v1297
      %v1299 = vpop.f32.mrf.mxu0
      %v1300 = vpop.f32.mrf.mxu0
      %v1301 = vadd.f32 0.0, %v1300
      %v1302 = vpop.f32.mrf.mxu0
      %1303 = vmatprep.mubr.bf16.mxu0 0
      %1304 = vmatmul.mubr.bf16.gmra.mxu0 %v1242
      %v1305 = vpop.f32.mrf.mxu0
      %v1306 = vadd.f32 0.0, %v1305
      %v1307 = vpop.f32.mrf.mxu0
      %v1308 = vpop.f32.mrf.mxu0
      %v1309 = vadd.f32 0.0, %v1308
      %v1310 = vpop.f32.mrf.mxu0
      %1311 = vdwg.mxu0
      %v1312 = vadd.f32 %v1210, %v1282
      %v1313 = vadd.f32 %v1211, %v1285
      %v1314 = vadd.f32 %v1212, %v1290
      %v1315 = vadd.f32 %v1213, %v1293
      %v1316 = vadd.f32 %v1214, %v1298
      %v1317 = vadd.f32 %v1215, %v1301
      %v1318 = vadd.f32 %v1216, %v1306
      %v1319 = vadd.f32 %v1217, %v1309
      %v1320 = vld [vmem:[%s6] sm:$0x1]
      %v1322 = vlaneseq
      %v1323 = vshrl.u32 %v1322, 7
      %v1324 = vsub.s32 0, %v1323
      %v1325 = vrot.slane %v1320, %v1324
      %v1327 = vadd.f32 %v1312, %v1325
      %v1328 = vadd.f32 %v1313, %v1325
      %v1329 = vadd.f32 %v1314, %v1325
      %v1330 = vadd.f32 %v1315, %v1325
      %v1331 = vadd.f32 %v1316, %v1325
      %v1332 = vadd.f32 %v1317, %v1325
      %v1333 = vadd.f32 %v1318, %v1325
      %v1334 = vadd.f32 %v1319, %v1325
      %1335 = vst.msk [vmem:[%s327] sm:$0xff] %vm386, %v1327
      %1336 = vst.msk [vmem:[%s327 + $0x8] sm:$0xff] %vm386, %v1328
      %1337 = vst.msk [vmem:[%s327 + $0x10] sm:$0xff] %vm386, %v1329
      %1338 = vst.msk [vmem:[%s327 + $0x18] sm:$0xff] %vm386, %v1330
      %1339 = vst.msk [vmem:[%s327 + $0x20] sm:$0xff] %vm386, %v1331
      %1340 = vst.msk [vmem:[%s327 + $0x28] sm:$0xff] %vm386, %v1332
      %1341 = vst.msk [vmem:[%s327 + $0x30] sm:$0xff] %vm386, %v1333
      %1342 = vst.msk [vmem:[%s327 + $0x38] sm:$0xff] %vm386, %v1334
      %v1343 = vsel %vm386, %v1327, 0.0
      %v1344 = vsel %vm386, %v1328, 0.0
      %v1345 = vadd.f32 %v1343, %v1344
      %v1346 = vsel %vm386, %v1329, 0.0
      %v1347 = vadd.f32 %v1345, %v1346
      %v1348 = vsel %vm386, %v1330, 0.0
      %v1349 = vadd.f32 %v1347, %v1348
      %v1350 = vsel %vm386, %v1331, 0.0
      %v1351 = vadd.f32 %v1349, %v1350
      %v1352 = vsel %vm386, %v1332, 0.0
      %v1353 = vadd.f32 %v1351, %v1352
      %v1354 = vsel %vm386, %v1333, 0.0
      %v1355 = vadd.f32 %v1353, %v1354
      %v1356 = vsel %vm386, %v1334, 0.0
      %v1357 = vadd.f32 %v1355, %v1356
      %v1358 = vrot.slane %v1357, 4
      %v1359 = vadd.f32 %v1357, %v1358
      %v1360 = vrot.slane %v1359, 2
      %v1361 = vadd.f32 %v1359, %v1360
      %v1362 = vrot.slane %v1361, 1
      %v1363 = vadd.f32 %v1361, %v1362
      %v1364 = vmul.f32 %v1327, %v1327
      %v1365 = vmul.f32 %v1328, %v1328
      %v1366 = vmul.f32 %v1329, %v1329
      %v1367 = vmul.f32 %v1330, %v1330
      %v1368 = vmul.f32 %v1331, %v1331
      %v1369 = vmul.f32 %v1332, %v1332
      %v1370 = vmul.f32 %v1333, %v1333
      %v1371 = vmul.f32 %v1334, %v1334
      %v1372 = vsel %vm386, %v1364, 0.0
      %v1373 = vsel %vm386, %v1365, 0.0
      %v1374 = vadd.f32 %v1372, %v1373
      %v1375 = vsel %vm386, %v1366, 0.0
      %v1376 = vadd.f32 %v1374, %v1375
      %v1377 = vsel %vm386, %v1367, 0.0
      %v1378 = vadd.f32 %v1376, %v1377
      %v1379 = vsel %vm386, %v1368, 0.0
      %v1380 = vadd.f32 %v1378, %v1379
      %v1381 = vsel %vm386, %v1369, 0.0
      %v1382 = vadd.f32 %v1380, %v1381
      %v1383 = vsel %vm386, %v1370, 0.0
      %v1384 = vadd.f32 %v1382, %v1383
      %v1385 = vsel %vm386, %v1371, 0.0
      %v1386 = vadd.f32 %v1384, %v1385
      %v1387 = vrot.slane %v1386, 4
      %v1388 = vadd.f32 %v1386, %v1387
      %v1389 = vrot.slane %v1388, 2
      %v1390 = vadd.f32 %v1388, %v1389
      %v1391 = vrot.slane %v1390, 1
      %v1392 = vadd.f32 %v1390, %v1391
      %p1393 = scmp.eq.s32.totalorder %s21, 0
      // Predicated region
      $region49: #{conv_block_forward.5} parent=47 // pred_check
        %p1394 = pneg %p1393
      $region50: #{conv_block_forward.5} parent=47 // pred_check_branch
        %1396 = sbr.rel (%p1394) target = $region52
      $region51: #{conv_block_forward.5} parent=47 // pred_region
        %vm1397 = vcmask 57344
        %1398 = vst.msk [vmem:[%s8] sm:$0x1] %vm1397, %v1363
        %1399 = vst.msk [vmem:[%s9] sm:$0x1] %vm1397, %v1392
      $region52: #{conv_block_forward.5} parent=47 // pred_fallthru
        _
      %p1400 = scmp.gt.s32.totalorder %s21, 0
      // Predicated region
      $region53: #{conv_block_forward.5} parent=47 // pred_check
        %p1401 = pneg %p1400
      $region54: #{conv_block_forward.5} parent=47 // pred_check_branch
        %1403 = sbr.rel (%p1401) target = $region56
      $region55: #{conv_block_forward.5} parent=47 // pred_region
        %v1404 = vld [vmem:[%s8] sm:$0x1]
        %v1405 = vadd.f32 %v1404, %v1363
        %vm1406 = vcmask 57344
        %1407 = vst.msk [vmem:[%s8] sm:$0x1] %vm1406, %v1405
        %v1408 = vld [vmem:[%s9] sm:$0x1]
        %v1409 = vadd.f32 %v1408, %v1392
        %1410 = vst.msk [vmem:[%s9] sm:$0x1] %vm1406, %v1409
      $region56: #{conv_block_forward.5} parent=47 // pred_fallthru
        _
      %p1411 = scmp.lt.s32.totalorder %s21, 1
      %s1412 = scalar_select %p1411, %s21, 1
      %s1413 = smul.addr %s1412, 8
      %s1414 = smul.addr %s1413, 8
      %s1415 = scalar_lea.vmem %s7, %s1414
      // Predicated region
      $region57: #{conv_block_forward.5} parent=47 // pred_check
        %p1416 = pneg %p191
      $region58: #{conv_block_forward.5} parent=47 // pred_check_branch
        %1418 = sbr.rel (%p1416) target = $region60
      $region59: #{conv_block_forward.5} parent=47 // pred_region
        _
      $region60: #{conv_block_forward.5} parent=47 // pred_fallthru
        _
      // Predicated region
      $region61: #{conv_block_forward.5} parent=47 // pred_check
        %p1419 = pneg %p212
      $region62: #{conv_block_forward.5} parent=47 // pred_check_branch
        %1421 = sbr.rel (%p1419) target = $region64
      $region63: #{conv_block_forward.5} parent=47 // pred_region
        _
      $region64: #{conv_block_forward.5} parent=47 // pred_fallthru
        _
      // Predicated region
      $region65: #{conv_block_forward.5} parent=47 // pred_check
        %p1422 = pneg %p233
      $region66: #{conv_block_forward.5} parent=47 // pred_check_branch
        %1424 = sbr.rel (%p1422) target = $region68
      $region67: #{conv_block_forward.5} parent=47 // pred_region
        _
      $region68: #{conv_block_forward.5} parent=47 // pred_fallthru
        _
      // Predicated region
      $region69: #{conv_block_forward.5} parent=47 // pred_check
        %p1425 = pneg %p212
      $region70: #{conv_block_forward.5} parent=47 // pred_check_branch
        %1427 = sbr.rel (%p1425) target = $region72
      $region71: #{conv_block_forward.5} parent=47 // pred_region
        _
      $region72: #{conv_block_forward.5} parent=47 // pred_fallthru
        _
      // Predicated region
      $region73: #{conv_block_forward.5} parent=47 // pred_check
        %p1428 = pneg %p233
      $region74: #{conv_block_forward.5} parent=47 // pred_check_branch
        %1430 = sbr.rel (%p1428) target = $region76
      $region75: #{conv_block_forward.5} parent=47 // pred_region
        _
      $region76: #{conv_block_forward.5} parent=47 // pred_fallthru
        _
    $region48: #{conv_block_forward.5} parent=5 // pred_fallthru
      _
    %p1431 = scmp.le.s32.totalorder 2, %s16
    // Predicated region
    $region77: #{conv_block_forward.5} parent=5 // pred_check
      %p1432 = pneg %p1431
    $region78: #{conv_block_forward.5} parent=5 // pred_check_branch
      %1434 = sbr.rel (%p1432) target = $region80
    $region79: #{conv_block_forward.5} parent=5 // pred_region
      %s1435 = ssub.s32 %s16, 2
      // Predicated region
      $region81: #{conv_block_forward.5} parent=79 // pred_check
        %p1436 = pneg %p197
      $region82: #{conv_block_forward.5} parent=79 // pred_check_branch
        %1438 = sbr.rel (%p1436) target = $region84
      $region83: #{conv_block_forward.5} parent=79 // pred_region
        %p1439 = scmp.lt.s32.totalorder %s22, 1
        %s1440 = scalar_select %p1439, %s22, 1
        %s1441 = smul.addr %s1440, 8
        %s1442 = smul.addr %s1441, 8
        %s1443 = scalar_lea.vmem %s7, %s1442
      $region84: #{conv_block_forward.5} parent=79 // pred_fallthru
        _
    $region80: #{conv_block_forward.5} parent=5 // pred_fallthru
      _
  $region6: #{conv_block_forward.5} parent=0 // loop_footer
    %s20 = sadd.s32 1, %s16
  $region7: #{conv_block_forward.5} parent=0 // loop_footer_branch
    %15 = sbr.rel target = $region3
  $region8: #{conv_block_forward.5} parent=0 // loop_exit
    _

</llo_original>
